<compile_context>
chip_gen: v6e
topology: v6e:2x2x1
jax: 0.10.0
libtpu: 0.0.40
codegen_flags: <defaults>
</compile_context>

<pallas_src>
import functools

import jax
import jax.numpy as jnp
from jax import lax
from jax.experimental import pallas as pl
from jax.experimental.pallas import tpu as pltpu


def _round_up(n, m):
    return ((n + m - 1) // m) * m


def _choose_tile(n, cap):
    """Largest multiple-of-8 divisor of n that is <= cap (n itself if n <= cap)."""
    if n <= cap:
        return n
    for t in range(cap - cap % 8, 7, -8):
        if n % t == 0:
            return t
    return n  # fallback: full dim (always a legal block)


def _pick_q_tile(hw, cap, batch):
    """Largest Q tile <= cap, but keep >= 2 parallel grid programs (v7x megacore)."""
    t = _choose_tile(hw, cap)
    while batch * (hw // t) < 2 and t > 8:
        smaller = _choose_tile(hw, max(8, t // 2))
        if smaller == t:
            break
        t = smaller
    return t


def _tpu_config():
    """Generation-specific tile caps and VMEM budget (perf-review item)."""
    kind = ""
    try:
        kind = jax.devices()[0].device_kind.lower()
    except Exception:
        pass
    # v6e-like defaults (also fine for v5p/v4/unknown 128 MiB-VMEM parts):
    # MXU/HBM roofline crossover ~650 flop/byte -> large KV tiles pay off.
    cfg = dict(vmem_limit=100 * 1024 * 1024, tq_cap=1024, tk_cap=1024,
               tp_cap=1024, ta_cap=2048, fuse_hw=1024)
    if not kind:
        cfg["vmem_limit"] = 48 * 1024 * 1024          # safest if detection failed
    elif ("v5e" in kind) or ("v5 lite" in kind) or ("v5lite" in kind):
        # v5e: crossover ~240 flop/byte, 1 vst slot -> keep attention tiles modest.
        cfg.update(tq_cap=256, tk_cap=512, tp_cap=512)
    elif ("v7" in kind) or ("7x" in kind):
        # v7x: 64 MiB physical VMEM per TensorCore -> tighter budget, smaller GN/proj
        # tiles; big KV tiles still fit (~17 MiB at TQ=TK=1024, Cp=512).
        cfg.update(vmem_limit=48 * 1024 * 1024, ta_cap=1024, tp_cap=512)
    return cfg


# --------------------------------------------------------------------------- #
# Fused kernel (small HW): GN + packed QKV + attention + out-proj + residual.
# --------------------------------------------------------------------------- #
def _fused_attn_kernel(x_ref, gmask_ref, gamma_ref, beta_ref,
                       wqkv_ref, bqkv_ref, wout_ref, bout_ref,
                       o_ref, qkv_sc, *, eps, tq, cp):
    qi = pl.program_id(1)

    @pl.when(qi == 0)
    def _():
        # GroupNorm statistics (two-pass), affine, and the packed QKV projection for
        # the whole image -- executed once per batch element; the full x block is
        # resident across the qi axis so no extra HBM traffic is incurred.
        x = x_ref[0]                                               # (HW, Cp) f32
        ch_mean = jnp.mean(x, axis=0, keepdims=True)               # (1, Cp)
        g_mean = jnp.dot(ch_mean, gmask_ref[...],
                         preferred_element_type=jnp.float32)
        xc = x - g_mean
        ch_var = jnp.mean(xc * xc, axis=0, keepdims=True)
        g_var = jnp.dot(ch_var, gmask_ref[...],
                        preferred_element_type=jnp.float32)
        inv = lax.rsqrt(g_var + eps)
        scale = inv * gamma_ref[...]
        shift = beta_ref[...] - g_mean * scale
        xn = (x * scale + shift).astype(jnp.bfloat16)
        qkv = jnp.dot(xn, wqkv_ref[...],
                      preferred_element_type=jnp.float32) + bqkv_ref[...]
        qkv_sc[...] = qkv.astype(jnp.bfloat16)                     # (HW, 3*Cp)

    row0 = pl.multiple_of(qi * tq, tq)
    q = qkv_sc[pl.ds(row0, tq), 0:cp]                              # (TQ, Cp) bf16
    k = qkv_sc[:, cp:2 * cp]                                       # (HW, Cp) bf16
    v = qkv_sc[:, 2 * cp:3 * cp]                                   # (HW, Cp) bf16
    # q @ k^T contracting the channel axis of both operands (same form as the official
    # TPU flash-attention kernel; no K transpose materialised).
    s = lax.dot_general(q, k, dimension_numbers=(((1,), (1,)), ((), ())),
                        preferred_element_type=jnp.float32)        # (TQ, HW)
    m = jnp.max(s, axis=-1, keepdims=True)
    p = jnp.exp(s - m)
    l = jnp.sum(p, axis=-1, keepdims=True)
    out = jnp.dot(p.astype(jnp.bfloat16), v, preferred_element_type=jnp.float32)
    out = out * pl.reciprocal(l, approx=False)                     # exact reciprocal
    xres = x_ref[0, pl.ds(row0, tq), :]                            # (TQ, Cp) f32
    y = jnp.dot(out.astype(jnp.bfloat16), wout_ref[...],
                preferred_element_type=jnp.float32) + bout_ref[...] + xres
    o_ref[0] = y


# --------------------------------------------------------------------------- #
# Kernel A (large HW): HW-tiled GroupNorm stats via Chan/Welford combine.
# --------------------------------------------------------------------------- #
def _gn_stats_kernel(x_ref, gmask_ref, gamma_ref, beta_ref,
                     scale_ref, shift_ref, mean_sc, m2_sc, *, eps, hw, ta):
    pi = pl.program_id(1)
    x = x_ref[0]                                                   # (TA, Cp) f32
    cm = jnp.mean(x, axis=0, keepdims=True)                        # per-tile mean
    xc = x - cm
    cm2 = jnp.sum(xc * xc, axis=0, keepdims=True)                  # per-tile M2

    @pl.when(pi == 0)
    def _():
        mean_sc[...] = cm
        m2_sc[...] = cm2

    @pl.when(pi > 0)
    def _():
        # Chan parallel-variance combine of (mean, M2) -- avoids E[x^2]-E[x]^2
        # cancellation and avoids holding a full-HW f32 block in VMEM.
        n = (pi * ta).astype(jnp.float32)
        m = jnp.float32(ta)
        tot = n + m
        delta = cm - mean_sc[...]
        mean_sc[...] = mean_sc[...] + delta * (m / tot)
        m2_sc[...] = m2_sc[...] + cm2 + delta * delta * (n * m / tot)

    @pl.when(pi == pl.num_programs(1) - 1)
    def _():
        ch_mean = mean_sc[...]
        g_mean = jnp.dot(ch_mean, gmask_ref[...],
                         preferred_element_type=jnp.float32)       # group mean
        t = m2_sc[...] + jnp.float32(hw) * (ch_mean - g_mean) ** 2
        g_var = jnp.dot(t, gmask_ref[...],
                        preferred_element_type=jnp.float32) * (1.0 / hw)
        inv = lax.rsqrt(g_var + eps)
        scale = inv * gamma_ref[...]
        shift = beta_ref[...] - g_mean * scale
        scale_ref[0] = scale
        shift_ref[0] = shift


# --------------------------------------------------------------------------- #
# Kernel B (large HW): fused GN affine + single packed QKV matmul (bf16 MXU).
# --------------------------------------------------------------------------- #
def _qkv_proj_kernel(x_ref, scale_ref, shift_ref, wqkv_ref, bqkv_ref, qkv_ref):
    xn = (x_ref[0] * scale_ref[0] + shift_ref[0]).astype(jnp.bfloat16)   # (TP, Cp)
    qkv = jnp.dot(xn, wqkv_ref[...],
                  preferred_element_type=jnp.float32) + bqkv_ref[...]    # (TP, 3*Cp)
    qkv_ref[0] = qkv.astype(jnp.bfloat16)


# --------------------------------------------------------------------------- #
# Kernel C (large HW): flash attention (online softmax) + out-proj + residual.
# Q/K/V are sliced from the packed (B, HW, 3*Cp) buffer via BlockSpec indices.
# --------------------------------------------------------------------------- #
def _flash_attn_kernel(q_ref, k_ref, v_ref, xres_ref, wout_ref, bout_ref, o_ref,
                       m_sc, l_sc, acc_sc):
    ki = pl.program_id(2)

    @pl.when(ki == 0)
    def _():
        m_sc[...] = jnp.full(m_sc.shape, -jnp.inf, dtype=m_sc.dtype)
        l_sc[...] = jnp.zeros(l_sc.shape, dtype=l_sc.dtype)
        acc_sc[...] = jnp.zeros(acc_sc.shape, dtype=acc_sc.dtype)

    q = q_ref[0]                                                   # (TQ, Cp) bf16
    k = k_ref[0]                                                   # (TK, Cp) bf16
    s = lax.dot_general(q, k, dimension_numbers=(((1,), (1,)), ((), ())),
                        preferred_element_type=jnp.float32)        # (TQ, TK)
    m_new = jnp.maximum(m_sc[...], jnp.max(s, axis=-1, keepdims=True))
    alpha = jnp.exp(m_sc[...] - m_new)
    p = jnp.exp(s - m_new)
    l_sc[...] = alpha * l_sc[...] + jnp.sum(p, axis=-1, keepdims=True)
    acc_sc[...] = alpha * acc_sc[...] + jnp.dot(p.astype(jnp.bfloat16), v_ref[0],
                                                preferred_element_type=jnp.float32)
    m_sc[...] = m_new

    @pl.when(ki == pl.num_programs(2) - 1)
    def _():
        out = acc_sc[...] * pl.reciprocal(l_sc[...], approx=False)
        y = jnp.dot(out.astype(jnp.bfloat16), wout_ref[...],
                    preferred_element_type=jnp.float32) + bout_ref[...] + xres_ref[0]
        o_ref[0] = y


# --------------------------------------------------------------------------- #
# Token-layout core (B, HW, C).  NHWC/token-major callers should use this directly.
# --------------------------------------------------------------------------- #
def _attention_block_tokens(x_tok, params, *, num_groups, eps=1e-5,
                            force_split=False, tile_overrides=None):
    B, HW, C = x_tok.shape
    Cg = C // num_groups
    Cp = _round_up(C, 128)
    cfg = _tpu_config()
    ov = tile_overrides or {}
    vmem_limit = cfg["vmem_limit"]

    x = jnp.pad(x_tok.astype(jnp.float32), ((0, 0), (0, 0), (0, Cp - C)))

    # Group-membership averaging matrix (Cp, Cp); zero rows/cols for padded channels.
    cid = jnp.arange(Cp)
    real = cid < C
    same_group = (cid[:, None] // Cg) == (cid[None, :] // Cg)
    gmask = jnp.where(same_group & real[:, None] & real[None, :],
                      1.0 / Cg, 0.0).astype(jnp.float32)

    def pad_vec(v):                                     # (C,) -> (1, Cp) f32
        return jnp.pad(v.reshape(1, C).astype(jnp.float32), ((0, 0), (0, Cp - C)))

    def pad_mat(w):                                     # (C, C) -> (Cp, Cp) f32
        return jnp.pad(w.astype(jnp.float32), ((0, Cp - C), (0, Cp - C)))

    gamma = pad_vec(params["gn_weight"])
    beta = pad_vec(params["gn_bias"])

    # torch Conv2d 1x1 weight is (out, in, 1, 1); we compute y = x @ W.T + b.
    wqkv = params["qkv_weight"].reshape(3 * C, C).astype(jnp.float32)
    bqkv = params["qkv_bias"].reshape(3 * C).astype(jnp.float32)
    sm_scale = C ** -0.5                                # folded into Wq / bq
    wqkv_p = jnp.concatenate(
        [pad_mat(wqkv[0 * C:1 * C].T * sm_scale),
         pad_mat(wqkv[1 * C:2 * C].T),
         pad_mat(wqkv[2 * C:3 * C].T)], axis=1).astype(jnp.bfloat16)   # (Cp, 3*Cp)
    bqkv_p = jnp.concatenate(
        [pad_vec(bqkv[0 * C:1 * C] * sm_scale),
         pad_vec(bqkv[1 * C:2 * C]),
         pad_vec(bqkv[2 * C:3 * C])], axis=1)                          # (1, 3*Cp)
    wout = pad_mat(params["out_weight"].reshape(C, C).T).astype(jnp.bfloat16)
    bout = pad_vec(params["out_bias"])

    fuse = (HW <= cfg["fuse_hw"]) and not force_split
    if fuse:
        # ------------ single fused kernel (no QKV HBM round trip) -------------
        tq = ov.get("tq", _choose_tile(HW, cfg["tq_cap"]))
        y = pl.pallas_call(
            functools.partial(_fused_attn_kernel, eps=eps, tq=tq, cp=Cp),
            out_shape=jax.ShapeDtypeStruct((B, HW, Cp), jnp.float32),
            grid_spec=pltpu.PrefetchScalarGridSpec(
                num_scalar_prefetch=0,
                grid=(B, HW // tq),
                in_specs=[
                    pl.BlockSpec((1, HW, Cp), lambda b, qi: (b, 0, 0)),   # x (resident)
                    pl.BlockSpec((Cp, Cp), lambda b, qi: (0, 0)),         # gmask
                    pl.BlockSpec((1, Cp), lambda b, qi: (0, 0)),          # gamma
                    pl.BlockSpec((1, Cp), lambda b, qi: (0, 0)),          # beta
                    pl.BlockSpec((Cp, 3 * Cp), lambda b, qi: (0, 0)),     # Wqkv packed
                    pl.BlockSpec((1, 3 * Cp), lambda b, qi: (0, 0)),      # bqkv packed
                    pl.BlockSpec((Cp, Cp), lambda b, qi: (0, 0)),         # Wout
                    pl.BlockSpec((1, Cp), lambda b, qi: (0, 0)),          # bout
                ],
                out_specs=pl.BlockSpec((1, tq, Cp), lambda b, qi: (b, qi, 0)),
                scratch_shapes=[pltpu.VMEM((HW, 3 * Cp), jnp.bfloat16)],  # packed QKV
            ),
            compiler_params=pltpu.CompilerParams(
                dimension_semantics=("parallel", "arbitrary"),
                vmem_limit_bytes=vmem_limit),
        )(x, gmask, gamma, beta, wqkv_p, bqkv_p, wout, bout)
        return y[:, :, :C]

    # ------------------------ split path (large HW) ---------------------------
    # Kernel A: HW-tiled GroupNorm stats -> per-(batch, channel) affine.
    ta = ov.get("ta", _choose_tile(HW, cfg["ta_cap"]))
    scale, shift = pl.pallas_call(
        functools.partial(_gn_stats_kernel, eps=eps, hw=HW, ta=ta),
        out_shape=(jax.ShapeDtypeStruct((B, 1, Cp), jnp.float32),
                   jax.ShapeDtypeStruct((B, 1, Cp), jnp.float32)),
        grid_spec=pltpu.PrefetchScalarGridSpec(
            num_scalar_prefetch=0,
            grid=(B, HW // ta),
            in_specs=[
                pl.BlockSpec((1, ta, Cp), lambda b, p: (b, p, 0)),   # x tile
                pl.BlockSpec((Cp, Cp), lambda b, p: (0, 0)),         # gmask
                pl.BlockSpec((1, Cp), lambda b, p: (0, 0)),          # gamma
                pl.BlockSpec((1, Cp), lambda b, p: (0, 0)),          # beta
            ],
            out_specs=[pl.BlockSpec((1, 1, Cp), lambda b, p: (b, 0, 0)),
                       pl.BlockSpec((1, 1, Cp), lambda b, p: (b, 0, 0))],
            scratch_shapes=[pltpu.VMEM((1, Cp), jnp.float32),        # running mean
                            pltpu.VMEM((1, Cp), jnp.float32)],       # running M2
        ),
        compiler_params=pltpu.CompilerParams(
            dimension_semantics=("parallel", "arbitrary"),
            vmem_limit_bytes=vmem_limit),
    )(x, gmask, gamma, beta)

    # Kernel B: fused GN affine + single packed QKV matmul.
    tp = ov.get("tp", _choose_tile(HW, cfg["tp_cap"]))
    qkv = pl.pallas_call(
        _qkv_proj_kernel,
        out_shape=jax.ShapeDtypeStruct((B, HW, 3 * Cp), jnp.bfloat16),
        grid_spec=pltpu.PrefetchScalarGridSpec(
            num_scalar_prefetch=0,
            grid=(B, HW // tp),
            in_specs=[
                pl.BlockSpec((1, tp, Cp), lambda b, p: (b, p, 0)),   # x tile
                pl.BlockSpec((1, 1, Cp), lambda b, p: (b, 0, 0)),    # scale
                pl.BlockSpec((1, 1, Cp), lambda b, p: (b, 0, 0)),    # shift
                pl.BlockSpec((Cp, 3 * Cp), lambda b, p: (0, 0)),     # Wqkv packed
                pl.BlockSpec((1, 3 * Cp), lambda b, p: (0, 0)),      # bqkv packed
            ],
            out_specs=pl.BlockSpec((1, tp, 3 * Cp), lambda b, p: (b, p, 0)),
        ),
        compiler_params=pltpu.CompilerParams(
            dimension_semantics=("parallel", "parallel"),
            vmem_limit_bytes=vmem_limit),
    )(x, scale, shift, wqkv_p, bqkv_p)

    # Kernel C: flash attention over big per-generation KV tiles + out-proj + residual.
    tq = ov.get("tq", _pick_q_tile(HW, cfg["tq_cap"], B))
    tk = ov.get("tk", _choose_tile(HW, cfg["tk_cap"]))
    y = pl.pallas_call(
        _flash_attn_kernel,
        out_shape=jax.ShapeDtypeStruct((B, HW, Cp), jnp.float32),
        grid_spec=pltpu.PrefetchScalarGridSpec(
            num_scalar_prefetch=0,
            grid=(B, HW // tq, HW // tk),
            in_specs=[
                pl.BlockSpec((1, tq, Cp), lambda b, qi, ki: (b, qi, 0)),   # Q slice
                pl.BlockSpec((1, tk, Cp), lambda b, qi, ki: (b, ki, 1)),   # K slice
                pl.BlockSpec((1, tk, Cp), lambda b, qi, ki: (b, ki, 2)),   # V slice
                pl.BlockSpec((1, tq, Cp), lambda b, qi, ki: (b, qi, 0)),   # residual
                pl.BlockSpec((Cp, Cp), lambda b, qi, ki: (0, 0)),          # Wout
                pl.BlockSpec((1, Cp), lambda b, qi, ki: (0, 0)),           # bout
            ],
            out_specs=pl.BlockSpec((1, tq, Cp), lambda b, qi, ki: (b, qi, 0)),
            scratch_shapes=[pltpu.VMEM((tq, 1), jnp.float32),    # running max m
                            pltpu.VMEM((tq, 1), jnp.float32),    # running sum l
                            pltpu.VMEM((tq, Cp), jnp.float32)],  # accumulator
        ),
        compiler_params=pltpu.CompilerParams(
            dimension_semantics=("parallel", "parallel", "arbitrary"),
            vmem_limit_bytes=vmem_limit),
    )(qkv, qkv, qkv, x, wout, bout)
    return y[:, :, :C]


# --------------------------------------------------------------------------- #
# NCHW wrapper (matches the PyTorch module interface).
# --------------------------------------------------------------------------- #
def attention_block_pallas(x_nchw, params, *, num_groups, eps=1e-5,
                           force_split=False, tile_overrides=None):
    """x_nchw: (B, C, H, W) float32. Returns (B, C, H, W) float32."""
    B, C, H, W = x_nchw.shape
    HW = H * W
    x_tok = jnp.transpose(x_nchw, (0, 2, 3, 1)).reshape(B, HW, C)
    y_tok = _attention_block_tokens(x_tok, params, num_groups=num_groups, eps=eps,
                                    force_split=force_split,
                                    tile_overrides=tile_overrides)
    return jnp.transpose(y_tok.reshape(B, H, W, C), (0, 3, 1, 2))


# --------------------------------------------------------------------------- #
# Pure-JAX reference matching the PyTorch forward, for validation.
# --------------------------------------------------------------------------- #
def attention_block_ref(x_nchw, params, *, num_groups, eps=1e-5):
    B, C, H, W = x_nchw.shape
    Cg = C // num_groups
    x = x_nchw.astype(jnp.float32)
    xg = x.reshape(B, num_groups, Cg, H, W)
    mean = jnp.mean(xg, axis=(2, 3, 4), keepdims=True)
    var = jnp.var(xg, axis=(2, 3, 4), keepdims=True)
    xn = ((xg - mean) / jnp.sqrt(var + eps)).reshape(B, C, H, W)
    xn = xn * params["gn_weight"].reshape(1, C, 1, 1) + params["gn_bias"].reshape(1, C, 1, 1)

    wqkv = params["qkv_weight"].reshape(3 * C, C)
    qkv = jnp.einsum("oc,bchw->bohw", wqkv, xn) + params["qkv_bias"].reshape(1, 3 * C, 1, 1)
    q, k, v = jnp.split(qkv, 3, axis=1)
    q = jnp.transpose(q, (0, 2, 3, 1)).reshape(B, H * W, C)
    k = k.reshape(B, C, H * W)
    v = jnp.transpose(v, (0, 2, 3, 1)).reshape(B, H * W, C)
    scores = jnp.einsum("bqc,bck->bqk", q, k) * (C ** -0.5)
    attn = jax.nn.softmax(scores, axis=-1)
    out = jnp.einsum("bqk,bkc->bqc", attn, v)
    out = jnp.transpose(out.reshape(B, H, W, C), (0, 3, 1, 2))
    wout = params["out_weight"].reshape(C, C)
    out = jnp.einsum("oc,bchw->bohw", wout, out) + params["out_bias"].reshape(1, C, 1, 1)
    return out + x


if __name__ == "__main__":
    B, C, H, W = 2, 4, 16, 16
    num_groups = 2  # must divide C (PyTorch default 32 assumes larger in_channels)

    key = jax.random.PRNGKey(0)
    kx, k1, k2, k3, k4 = jax.random.split(key, 5)
    x = jax.random.normal(kx, (B, C, H, W), dtype=jnp.float32)

    params = {
        "gn_weight": jnp.linspace(0.5, 1.5, C, dtype=jnp.float32),
        "gn_bias": jnp.linspace(-0.1, 0.1, C, dtype=jnp.float32),
        "qkv_weight": 0.2 * jax.random.normal(k1, (3 * C, C, 1, 1), dtype=jnp.float32),
        "qkv_bias": 0.05 * jax.random.normal(k2, (3 * C,), dtype=jnp.float32),
        "out_weight": 0.2 * jax.random.normal(k3, (C, C, 1, 1), dtype=jnp.float32),
        "out_bias": 0.05 * jax.random.normal(k4, (C,), dtype=jnp.float32),
    }

    y_ref = attention_block_ref(x, params, num_groups=num_groups)

    # Small-HW regime: single fused kernel (GN + QKV + attention + out + residual).
    y_fused = jax.block_until_ready(
        attention_block_pallas(x, params, num_groups=num_groups))
    assert y_fused.shape == (B, C, H, W)
    assert jnp.allclose(y_fused, y_ref, atol=2e-2, rtol=2e-2), \
        f"fused max abs err {jnp.max(jnp.abs(y_fused - y_ref))}"

    # Large-HW (split) path, forced with small tiles so the HW-tiled GroupNorm
    # (Chan combine) and the multi-KV-tile online softmax are also exercised.
    y_split = jax.block_until_ready(
        attention_block_pallas(x, params, num_groups=num_groups, force_split=True,
                               tile_overrides=dict(ta=64, tp=128, tq=128, tk=64)))
    assert jnp.allclose(y_split, y_ref, atol=2e-2, rtol=2e-2), \
        f"split max abs err {jnp.max(jnp.abs(y_split - y_ref))}"

    print("KERNEL_OK")
</pallas_src>

<mosaic_0001>
module attributes {stable_mosaic.version = 11 : i64} {
  func.func @_fused_attn_kernel(%arg0: i32, %arg1: i32, %arg2: memref<1x256x128xf32, #tpu.memory_space<vmem>>, %arg3: memref<128x128xf32, #tpu.memory_space<vmem>>, %arg4: memref<1x128xf32, #tpu.memory_space<vmem>>, %arg5: memref<1x128xf32, #tpu.memory_space<vmem>>, %arg6: memref<128x384xbf16, #tpu.memory_space<vmem>>, %arg7: memref<1x384xf32, #tpu.memory_space<vmem>>, %arg8: memref<128x128xbf16, #tpu.memory_space<vmem>>, %arg9: memref<1x128xf32, #tpu.memory_space<vmem>>, %arg10: memref<1x256x128xf32, #tpu.memory_space<vmem>>, %arg11: memref<256x384xbf16, #tpu.memory_space<vmem>>) attributes {dimension_semantics = [#tpu.dimension_semantics<parallel>, #tpu.dimension_semantics<arbitrary>], iteration_bounds = array<i64: 2, 1>, scalar_prefetch = 0 : i64, scratch_operands = 1 : i64, tpu.core_type = #tpu.core_type<tc>, window_params = [{transform_indices = @transform_0, window_bounds = array<i64: 1, 256, 128>}, {pipeline_mode = #tpu.pipeline_mode<synchronous>, transform_indices = @transform_1, window_bounds = array<i64: 128, 128>}, {pipeline_mode = #tpu.pipeline_mode<synchronous>, transform_indices = @transform_2, window_bounds = array<i64: 1, 128>}, {pipeline_mode = #tpu.pipeline_mode<synchronous>, transform_indices = @transform_3, window_bounds = array<i64: 1, 128>}, {pipeline_mode = #tpu.pipeline_mode<synchronous>, transform_indices = @transform_4, window_bounds = array<i64: 128, 384>}, {pipeline_mode = #tpu.pipeline_mode<synchronous>, transform_indices = @transform_5, window_bounds = array<i64: 1, 384>}, {pipeline_mode = #tpu.pipeline_mode<synchronous>, transform_indices = @transform_6, window_bounds = array<i64: 128, 128>}, {pipeline_mode = #tpu.pipeline_mode<synchronous>, transform_indices = @transform_7, window_bounds = array<i64: 1, 128>}, {transform_indices = @transform_8, window_bounds = array<i64: 1, 256, 128>}]} {
    %c0_i32 = arith.constant 0 : i32
    %0 = arith.cmpi eq, %arg1, %c0_i32 : i32
    %1 = arith.extui %0 : i1 to i32
    %c0_i32_0 = arith.constant 0 : i32
    %2 = arith.cmpi ne, %1, %c0_i32_0 : i32
    scf.if %2 {
      %c0_16 = arith.constant 0 : index
      %c0_17 = arith.constant 0 : index
      %c0_18 = arith.constant 0 : index
      %35 = vector.load %arg2[%c0_16, %c0_17, %c0_18] : memref<1x256x128xf32, #tpu.memory_space<vmem>>, vector<1x256x128xf32>
      %36 = vector.shape_cast %35 : vector<1x256x128xf32> to vector<256x128xf32>
      %cst_19 = arith.constant dense<0.000000e+00> : vector<128xf32>
      %37 = vector.multi_reduction <add>, %36, %cst_19 [0] : vector<256x128xf32> to vector<128xf32>
      %38 = vector.shape_cast %37 : vector<128xf32> to vector<1x128xf32>
      %cst_20 = arith.constant 2.560000e+02 : f32
      %39 = vector.broadcast %cst_20 : f32 to vector<1x128xf32>
      %40 = arith.divf %38, %39 : vector<1x128xf32>
      %c0_21 = arith.constant 0 : index
      %c0_22 = arith.constant 0 : index
      %41 = vector.load %arg3[%c0_21, %c0_22] : memref<128x128xf32, #tpu.memory_space<vmem>>, vector<128x128xf32>
      %cst_23 = arith.constant dense<0.000000e+00> : vector<1x128xf32>
      %42 = tpu.matmul %40, %41, %cst_23 {dimension_numbers = #tpu.dot_dimension_numbers<[1], [0], [0], [1], [0, 0, 1, 1], [], []>} : vector<1x128xf32>, vector<128x128xf32>, vector<1x128xf32> -> vector<1x128xf32>
      %43 = vector.broadcast %42 : vector<1x128xf32> to vector<256x128xf32>
      %44 = arith.subf %36, %43 : vector<256x128xf32>
      %45 = arith.mulf %44, %44 : vector<256x128xf32>
      %cst_24 = arith.constant dense<0.000000e+00> : vector<128xf32>
      %46 = vector.multi_reduction <add>, %45, %cst_24 [0] : vector<256x128xf32> to vector<128xf32>
      %47 = vector.shape_cast %46 : vector<128xf32> to vector<1x128xf32>
      %cst_25 = arith.constant 2.560000e+02 : f32
      %48 = vector.broadcast %cst_25 : f32 to vector<1x128xf32>
      %49 = arith.divf %47, %48 : vector<1x128xf32>
      %c0_26 = arith.constant 0 : index
      %c0_27 = arith.constant 0 : index
      %50 = vector.load %arg3[%c0_26, %c0_27] : memref<128x128xf32, #tpu.memory_space<vmem>>, vector<128x128xf32>
      %cst_28 = arith.constant dense<0.000000e+00> : vector<1x128xf32>
      %51 = tpu.matmul %49, %50, %cst_28 {dimension_numbers = #tpu.dot_dimension_numbers<[1], [0], [0], [1], [0, 0, 1, 1], [], []>} : vector<1x128xf32>, vector<128x128xf32>, vector<1x128xf32> -> vector<1x128xf32>
      %cst_29 = arith.constant 9.99999974E-6 : f32
      %52 = vector.broadcast %cst_29 : f32 to vector<1x128xf32>
      %53 = arith.addf %51, %52 : vector<1x128xf32>
      %54 = math.rsqrt %53 : vector<1x128xf32>
      %c0_30 = arith.constant 0 : index
      %c0_31 = arith.constant 0 : index
      %55 = vector.load %arg4[%c0_30, %c0_31] : memref<1x128xf32, #tpu.memory_space<vmem>>, vector<1x128xf32>
      %56 = arith.mulf %54, %55 : vector<1x128xf32>
      %c0_32 = arith.constant 0 : index
      %c0_33 = arith.constant 0 : index
      %57 = vector.load %arg5[%c0_32, %c0_33] : memref<1x128xf32, #tpu.memory_space<vmem>>, vector<1x128xf32>
      %58 = arith.mulf %42, %56 : vector<1x128xf32>
      %59 = arith.subf %57, %58 : vector<1x128xf32>
      %60 = vector.broadcast %56 : vector<1x128xf32> to vector<256x128xf32>
      %61 = arith.mulf %36, %60 : vector<256x128xf32>
      %62 = vector.broadcast %59 : vector<1x128xf32> to vector<256x128xf32>
      %63 = arith.addf %61, %62 : vector<256x128xf32>
      %64 = arith.truncf %63 : vector<256x128xf32> to vector<256x128xbf16>
      %c0_34 = arith.constant 0 : index
      %c0_35 = arith.constant 0 : index
      %65 = vector.load %arg6[%c0_34, %c0_35] : memref<128x384xbf16, #tpu.memory_space<vmem>>, vector<128x384xbf16>
      %cst_36 = arith.constant dense<0.000000e+00> : vector<256x384xf32>
      %66 = tpu.matmul %64, %65, %cst_36 {dimension_numbers = #tpu.dot_dimension_numbers<[1], [0], [0], [1], [0, 0, 1, 1], [], []>} : vector<256x128xbf16>, vector<128x384xbf16>, vector<256x384xf32> -> vector<256x384xf32>
      %c0_37 = arith.constant 0 : index
      %c0_38 = arith.constant 0 : index
      %67 = vector.load %arg7[%c0_37, %c0_38] : memref<1x384xf32, #tpu.memory_space<vmem>>, vector<1x384xf32>
      %68 = vector.broadcast %67 : vector<1x384xf32> to vector<256x384xf32>
      %69 = arith.addf %66, %68 : vector<256x384xf32>
      %70 = arith.truncf %69 : vector<256x384xf32> to vector<256x384xbf16>
      %c0_39 = arith.constant 0 : index
      %c0_40 = arith.constant 0 : index
      %71 = vector.load %arg11[%c0_39, %c0_40] : memref<256x384xbf16, #tpu.memory_space<vmem>>, vector<256x384xbf16>
      tpu.vector_store %arg11[%c0_39, %c0_40], %70 {strides = array<i32>} : memref<256x384xbf16, #tpu.memory_space<vmem>>, vector<256x384xbf16>,
    } else {
    }
    %c256_i32 = arith.constant 256 : i32
    %3 = arith.muli %arg1, %c256_i32 : i32
    %4 = tpu.assume_multiple %3, 256 : i32
    %5 = arith.index_cast %4 : i32 to index
    %c0 = arith.constant 0 : index
    %6 = vector.load %arg11[%5, %c0] : memref<256x384xbf16, #tpu.memory_space<vmem>>, vector<256x128xbf16>
    %c0_1 = arith.constant 0 : index
    %c128 = arith.constant 128 : index
    %7 = vector.load %arg11[%c0_1, %c128] : memref<256x384xbf16, #tpu.memory_space<vmem>>, vector<256x128xbf16>
    %c0_2 = arith.constant 0 : index
    %c256 = arith.constant 256 : index
    %8 = vector.load %arg11[%c0_2, %c256] : memref<256x384xbf16, #tpu.memory_space<vmem>>, vector<256x128xbf16>
    %cst = arith.constant dense<0.000000e+00> : vector<256x256xf32>
    %9 = tpu.matmul %6, %7, %cst {dimension_numbers = #tpu.dot_dimension_numbers<[1], [1], [0], [0], [0, 0, 1, 0], [], []>} : vector<256x128xbf16>, vector<256x128xbf16>, vector<256x256xf32> -> vector<256x256xf32>
    %cst_3 = arith.constant dense<0xFF800000> : vector<256xf32>
    %10 = vector.multi_reduction <maximumf>, %9, %cst_3 [1] : vector<256x256xf32> to vector<256xf32>
    %11 = vector.shape_cast %10 : vector<256xf32> to vector<256x1xf32>
    %12 = vector.broadcast %11 : vector<256x1xf32> to vector<256x256xf32>
    %13 = arith.subf %9, %12 : vector<256x256xf32>
    %14 = math.exp %13 : vector<256x256xf32>
    %cst_4 = arith.constant dense<0.000000e+00> : vector<256xf32>
    %15 = vector.multi_reduction <add>, %14, %cst_4 [1] : vector<256x256xf32> to vector<256xf32>
    %16 = vector.shape_cast %15 : vector<256xf32> to vector<256x1xf32>
    %17 = arith.truncf %14 : vector<256x256xf32> to vector<256x256xbf16>
    %cst_5 = arith.constant dense<0.000000e+00> : vector<256x128xf32>
    %18 = tpu.matmul %17, %8, %cst_5 {dimension_numbers = #tpu.dot_dimension_numbers<[1], [0], [0], [1], [0, 0, 1, 1], [], []>} : vector<256x256xbf16>, vector<256x128xbf16>, vector<256x128xf32> -> vector<256x128xf32>
    %19 = tpu.reciprocal %16 : vector<256x1xf32> -> vector<256x1xf32>
    %20 = vector.broadcast %19 : vector<256x1xf32> to vector<256x128xf32>
    %21 = arith.mulf %18, %20 : vector<256x128xf32>
    %c0_6 = arith.constant 0 : index
    %22 = arith.index_cast %4 : i32 to index
    %c0_7 = arith.constant 0 : index
    %23 = vector.load %arg2[%c0_6, %22, %c0_7] : memref<1x256x128xf32, #tpu.memory_space<vmem>>, vector<1x256x128xf32>
    %24 = vector.shape_cast %23 : vector<1x256x128xf32> to vector<256x128xf32>
    %25 = arith.truncf %21 : vector<256x128xf32> to vector<256x128xbf16>
    %c0_8 = arith.constant 0 : index
    %c0_9 = arith.constant 0 : index
    %26 = vector.load %arg8[%c0_8, %c0_9] : memref<128x128xbf16, #tpu.memory_space<vmem>>, vector<128x128xbf16>
    %cst_10 = arith.constant dense<0.000000e+00> : vector<256x128xf32>
    %27 = tpu.matmul %25, %26, %cst_10 {dimension_numbers = #tpu.dot_dimension_numbers<[1], [0], [0], [1], [0, 0, 1, 1], [], []>} : vector<256x128xbf16>, vector<128x128xbf16>, vector<256x128xf32> -> vector<256x128xf32>
    %c0_11 = arith.constant 0 : index
    %c0_12 = arith.constant 0 : index
    %28 = vector.load %arg9[%c0_11, %c0_12] : memref<1x128xf32, #tpu.memory_space<vmem>>, vector<1x128xf32>
    %29 = vector.broadcast %28 : vector<1x128xf32> to vector<256x128xf32>
    %30 = arith.addf %27, %29 : vector<256x128xf32>
    %31 = arith.addf %30, %24 : vector<256x128xf32>
    %c0_13 = arith.constant 0 : index
    %c0_14 = arith.constant 0 : index
    %c0_15 = arith.constant 0 : index
    %32 = vector.load %arg10[%c0_13, %c0_14, %c0_15] : memref<1x256x128xf32, #tpu.memory_space<vmem>>, vector<1x256x128xf32>
    %33 = vector.shape_cast %32 : vector<1x256x128xf32> to vector<256x128xf32>
    %34 = vector.shape_cast %31 : vector<256x128xf32> to vector<1x256x128xf32>
    tpu.vector_store %arg10[%c0_13, %c0_14, %c0_15], %34 {strides = array<i32>} : memref<1x256x128xf32, #tpu.memory_space<vmem>>, vector<1x256x128xf32>,
    return
  }
  func.func @transform_0(%arg0: i32, %arg1: i32) -> (i32, i32, i32) {
    %c0_i32 = arith.constant 0 : i32
    %c0_i32_0 = arith.constant 0 : i32
    %c0_i32_1 = arith.constant 0 : i32
    return %arg0, %c0_i32, %c0_i32_0 : i32, i32, i32
  }
  func.func @transform_1(%arg0: i32, %arg1: i32) -> (i32, i32) {
    %c0_i32 = arith.constant 0 : i32
    %c0_i32_0 = arith.constant 0 : i32
    %c0_i32_1 = arith.constant 0 : i32
    return %c0_i32, %c0_i32_0 : i32, i32
  }
  func.func @transform_2(%arg0: i32, %arg1: i32) -> (i32, i32) {
    %c0_i32 = arith.constant 0 : i32
    %c0_i32_0 = arith.constant 0 : i32
    %c0_i32_1 = arith.constant 0 : i32
    return %c0_i32, %c0_i32_0 : i32, i32
  }
  func.func @transform_3(%arg0: i32, %arg1: i32) -> (i32, i32) {
    %c0_i32 = arith.constant 0 : i32
    %c0_i32_0 = arith.constant 0 : i32
    %c0_i32_1 = arith.constant 0 : i32
    return %c0_i32, %c0_i32_0 : i32, i32
  }
  func.func @transform_4(%arg0: i32, %arg1: i32) -> (i32, i32) {
    %c0_i32 = arith.constant 0 : i32
    %c0_i32_0 = arith.constant 0 : i32
    %c0_i32_1 = arith.constant 0 : i32
    return %c0_i32, %c0_i32_0 : i32, i32
  }
  func.func @transform_5(%arg0: i32, %arg1: i32) -> (i32, i32) {
    %c0_i32 = arith.constant 0 : i32
    %c0_i32_0 = arith.constant 0 : i32
    %c0_i32_1 = arith.constant 0 : i32
    return %c0_i32, %c0_i32_0 : i32, i32
  }
  func.func @transform_6(%arg0: i32, %arg1: i32) -> (i32, i32) {
    %c0_i32 = arith.constant 0 : i32
    %c0_i32_0 = arith.constant 0 : i32
    %c0_i32_1 = arith.constant 0 : i32
    return %c0_i32, %c0_i32_0 : i32, i32
  }
  func.func @transform_7(%arg0: i32, %arg1: i32) -> (i32, i32) {
    %c0_i32 = arith.constant 0 : i32
    %c0_i32_0 = arith.constant 0 : i32
    %c0_i32_1 = arith.constant 0 : i32
    return %c0_i32, %c0_i32_0 : i32, i32
  }
  func.func @transform_8(%arg0: i32, %arg1: i32) -> (i32, i32, i32) {
    %c0_i32 = arith.constant 0 : i32
    %c0_i32_0 = arith.constant 0 : i32
    return %arg0, %arg1, %c0_i32 : i32, i32, i32
  }
}

</mosaic_0001>

<llo_original>
// kernel: tpu_custom_call.1
$region0: #{tpu_custom_call.1}
  #allocation0 [shape = 'u32[]', space=smem, size = 0x4, offset = 0x4, fixed_abs, tag = 'smem constant byte address 0x4 - core index']
  #allocation1 [shape = 'u32[144,128]{1,0:T(1,128)}', space=vmem, size = 0x12000, scoped, tag = 'internal scratch']
  #allocation2 [shape = 'bf16[256,384]{1,0:T(8,128)(2,1)}', space=vmem, size = 0x30000, scoped, tag = 'scratch operand']
  %s0 = inlined_call_operand.hbm [shape: f32[2,256,128], index: 0, kind: input, shape index: {}]
  %s1 = inlined_call_operand.hbm [shape: f32[128,128], index: 1, kind: input, shape index: {}]
  %s2 = inlined_call_operand.vmem [shape: f32[1,128], index: 2, kind: input, shape index: {}]
  %s3 = inlined_call_operand.vmem [shape: f32[1,128], index: 3, kind: input, shape index: {}]
  %s4 = inlined_call_operand.hbm [shape: bf16[128,384], index: 4, kind: input, shape index: {}]
  %s5 = inlined_call_operand.vmem [shape: f32[1,384], index: 5, kind: input, shape index: {}]
  %s6 = inlined_call_operand.hbm [shape: bf16[128,128], index: 6, kind: input, shape index: {}]
  %s7 = inlined_call_operand.vmem [shape: f32[1,128], index: 7, kind: input, shape index: {}]
  %s8 = inlined_call_operand.hbm [shape: f32[2,256,128], index: 8, kind: output, shape index: {}]
  %s9 = sld [smem:[#allocation0]]
  $region85: #{tpu_custom_call.1} parent=0
    _
  %s11 = ssub.s32 1, %s9
  %s12 = scalar_select 0, %s11, %s9
  $region1: #{tpu_custom_call.1} parent=0
    #allocation3 [shape = 'u8[262144]{0}', space=vmem, size = 0x40000, scoped, tag = 'input window, operand 0']
    #allocation4 [shape = 's32[2]{0}', space=sflag, size = 0x8, scoped, tag = 'scoped memory for tpu_custom_call.1']
    #allocation5 [shape = 's32[2]{0}', space=sflag, size = 0x8, scoped, tag = 'scoped memory for tpu_custom_call.1']
    #allocation6 [shape = 'u8[65536]{0}', space=vmem, size = 0x10000, scoped, tag = 'input window, operand 1, single buffered']
    #allocation7 [shape = 's32[1]{0}', space=sflag, size = 0x4, scoped, tag = 'scoped memory for tpu_custom_call.1']
    #allocation8 [shape = 'u8[98304]{0}', space=vmem, size = 0x18000, scoped, tag = 'input window, operand 4, single buffered']
    #allocation9 [shape = 'u8[32768]{0}', space=vmem, size = 0x8000, scoped, tag = 'input window, operand 6, single buffered']
    #allocation10 [shape = 's32[1]{0}', space=sflag, size = 0x4, scoped, tag = 'scoped memory for tpu_custom_call.1']
    #allocation11 [shape = 'u8[262144]{0}', space=vmem, size = 0x40000, scoped, tag = 'output window, operand 0']
    %13 = vsyncpa [#allocation4], 0
    %s14 = scalar_lea.sflag [#allocation4], 1
    %15 = vsyncpa %s14, 0
    %16 = vsyncpa [#allocation7], 0
    %17 = vsyncpa [#allocation10], 0
    %18 = vsyncpa [#allocation5], 0
    %s19 = scalar_lea.sflag [#allocation5], 1
    %20 = vsyncpa %s19, 0
    loop: start=0, step=1, limit=4
    $region2: #{tpu_custom_call.1} parent=1 // loop_pre_header
      _
    $region3: #{tpu_custom_call.1} parent=1 // loop_header
      %s22 = sphi 0, %s26
      %p23 = scmp.ge.s32.totalorder %s22, 4
      %s29 = sphi 0, %s41
      %s30 = sphi 0, %s37
      %s31 = sphi 0, %s29
      %s32 = sphi 0, %s30
      %s33 = sphi 0, %s31
      %s34 = sphi 0, %s32
      %s44 = sphi 0, %s46
      %s47 = sphi 0, %s44
      %s48 = sphi 0, %s47
      %s64 = sphi 0, %s48
      %s68 = sphi 0, %s68
      %s70 = sphi 0, %s68
      %s71 = sphi 0, %s70
      %s85 = sphi 0, %s71
      %s89 = sphi 0, %s89
      %s91 = sphi 0, %s89
      %s92 = sphi 0, %s91
      %s106 = sphi 0, %s92
      %s110 = sphi 0, %s110
      %s112 = sphi 0, %s110
      %s113 = sphi 0, %s112
      %s127 = sphi 0, %s113
      %s131 = sphi 0, %s131
      %s133 = sphi 0, %s131
      %s134 = sphi 0, %s133
      %s148 = sphi 0, %s134
      %s152 = sphi 0, %s152
      %s154 = sphi 0, %s152
      %s155 = sphi 0, %s154
      %s169 = sphi 0, %s155
      %s173 = sphi 0, %s173
      %s175 = sphi 0, %s173
      %s176 = sphi 0, %s175
      %s190 = sphi 0, %s176
      %s194 = sphi 0, %s194
      %s196 = sphi 0, %s194
      %s197 = sphi 0, %s196
      %s211 = sphi 0, %s197
      %s219 = sphi 0, %s221
      %s222 = sphi 0, %s219
      %s223 = sphi 0, %s222
      %s239 = sphi 0, %s223
    $region4: #{tpu_custom_call.1} parent=1 // loop_header_branch
      %25 = sbr.rel (%p23) target = $region8
    $region5: #{tpu_custom_call.1} parent=1 // loop_body
      %s27 = ssub.s32 %s22, 1
      %s28 = ssub.s32 %s22, 2
      %s35 = sadd.s32 1, %s30
      %p36 = scmp.ge.s32.totalorder %s35, 1
      %s37 = scalar_select %p36, 0, %s35
      %s38 = sadd.s32 1, %s29
      %s39 = scalar_select %p36, %s38, %s29
      %p40 = scmp.ge.s32.totalorder %s39, 2
      %s41 = scalar_select %p40, 0, %s39
      %s42 = ssub.s32 %s29, %s41
      %p43 = scmp.eq.s32.totalorder %s42, 0
      %s45 = sadd.s32 %s44, 1
      %s46 = scalar_select %p43, %s44, %s45
      %p49 = pneg %p43
      %p50 = scmp.eq.s32.totalorder %s22, 1
      %p51 = por %p49, %p50
      %p52 = scmp.ne.s32.totalorder %s44, %s47
      %p53 = scmp.eq.s32.totalorder %s22, 0
      %p54 = por %p52, %p53
      %p55 = scmp.ne.s32.totalorder %s44, %s47
      %p56 = scmp.eq.s32.totalorder %s27, 1
      %p57 = por %p55, %p56
      %p58 = scmp.ne.s32.totalorder %s47, %s48
      %p59 = scmp.eq.s32.totalorder %s27, 0
      %p60 = por %p58, %p59
      %p61 = scmp.ne.s32.totalorder %s47, %s48
      %p62 = scmp.eq.s32.totalorder %s28, 1
      %p63 = por %p61, %p62
      %p65 = scmp.ne.s32.totalorder %s48, %s64
      %p66 = scmp.eq.s32.totalorder %s28, 0
      %p67 = por %p65, %p66
      %s69 = sadd.s32 %s68, 1
      %p72 = scmp.eq.s32.totalorder %s22, 1
      %p73 = scmp.ne.s32.totalorder %s68, %s70
      %p74 = scmp.eq.s32.totalorder %s22, 0
      %p75 = por %p73, %p74
      %p76 = scmp.ne.s32.totalorder %s68, %s70
      %p77 = scmp.eq.s32.totalorder %s27, 1
      %p78 = por %p76, %p77
      %p79 = scmp.ne.s32.totalorder %s70, %s71
      %p80 = scmp.eq.s32.totalorder %s27, 0
      %p81 = por %p79, %p80
      %p82 = scmp.ne.s32.totalorder %s70, %s71
      %p83 = scmp.eq.s32.totalorder %s28, 1
      %p84 = por %p82, %p83
      %p86 = scmp.ne.s32.totalorder %s71, %s85
      %p87 = scmp.eq.s32.totalorder %s28, 0
      %p88 = por %p86, %p87
      %s90 = sadd.s32 %s89, 1
      %p93 = scmp.eq.s32.totalorder %s22, 1
      %p94 = scmp.ne.s32.totalorder %s89, %s91
      %p95 = scmp.eq.s32.totalorder %s22, 0
      %p96 = por %p94, %p95
      %p97 = scmp.ne.s32.totalorder %s89, %s91
      %p98 = scmp.eq.s32.totalorder %s27, 1
      %p99 = por %p97, %p98
      %p100 = scmp.ne.s32.totalorder %s91, %s92
      %p101 = scmp.eq.s32.totalorder %s27, 0
      %p102 = por %p100, %p101
      %p103 = scmp.ne.s32.totalorder %s91, %s92
      %p104 = scmp.eq.s32.totalorder %s28, 1
      %p105 = por %p103, %p104
      %p107 = scmp.ne.s32.totalorder %s92, %s106
      %p108 = scmp.eq.s32.totalorder %s28, 0
      %p109 = por %p107, %p108
      %s111 = sadd.s32 %s110, 1
      %p114 = scmp.eq.s32.totalorder %s22, 1
      %p115 = scmp.ne.s32.totalorder %s110, %s112
      %p116 = scmp.eq.s32.totalorder %s22, 0
      %p117 = por %p115, %p116
      %p118 = scmp.ne.s32.totalorder %s110, %s112
      %p119 = scmp.eq.s32.totalorder %s27, 1
      %p120 = por %p118, %p119
      %p121 = scmp.ne.s32.totalorder %s112, %s113
      %p122 = scmp.eq.s32.totalorder %s27, 0
      %p123 = por %p121, %p122
      %p124 = scmp.ne.s32.totalorder %s112, %s113
      %p125 = scmp.eq.s32.totalorder %s28, 1
      %p126 = por %p124, %p125
      %p128 = scmp.ne.s32.totalorder %s113, %s127
      %p129 = scmp.eq.s32.totalorder %s28, 0
      %p130 = por %p128, %p129
      %s132 = sadd.s32 %s131, 1
      %p135 = scmp.eq.s32.totalorder %s22, 1
      %p136 = scmp.ne.s32.totalorder %s131, %s133
      %p137 = scmp.eq.s32.totalorder %s22, 0
      %p138 = por %p136, %p137
      %p139 = scmp.ne.s32.totalorder %s131, %s133
      %p140 = scmp.eq.s32.totalorder %s27, 1
      %p141 = por %p139, %p140
      %p142 = scmp.ne.s32.totalorder %s133, %s134
      %p143 = scmp.eq.s32.totalorder %s27, 0
      %p144 = por %p142, %p143
      %p145 = scmp.ne.s32.totalorder %s133, %s134
      %p146 = scmp.eq.s32.totalorder %s28, 1
      %p147 = por %p145, %p146
      %p149 = scmp.ne.s32.totalorder %s134, %s148
      %p150 = scmp.eq.s32.totalorder %s28, 0
      %p151 = por %p149, %p150
      %s153 = sadd.s32 %s152, 1
      %p156 = scmp.eq.s32.totalorder %s22, 1
      %p157 = scmp.ne.s32.totalorder %s152, %s154
      %p158 = scmp.eq.s32.totalorder %s22, 0
      %p159 = por %p157, %p158
      %p160 = scmp.ne.s32.totalorder %s152, %s154
      %p161 = scmp.eq.s32.totalorder %s27, 1
      %p162 = por %p160, %p161
      %p163 = scmp.ne.s32.totalorder %s154, %s155
      %p164 = scmp.eq.s32.totalorder %s27, 0
      %p165 = por %p163, %p164
      %p166 = scmp.ne.s32.totalorder %s154, %s155
      %p167 = scmp.eq.s32.totalorder %s28, 1
      %p168 = por %p166, %p167
      %p170 = scmp.ne.s32.totalorder %s155, %s169
      %p171 = scmp.eq.s32.totalorder %s28, 0
      %p172 = por %p170, %p171
      %s174 = sadd.s32 %s173, 1
      %p177 = scmp.eq.s32.totalorder %s22, 1
      %p178 = scmp.ne.s32.totalorder %s173, %s175
      %p179 = scmp.eq.s32.totalorder %s22, 0
      %p180 = por %p178, %p179
      %p181 = scmp.ne.s32.totalorder %s173, %s175
      %p182 = scmp.eq.s32.totalorder %s27, 1
      %p183 = por %p181, %p182
      %p184 = scmp.ne.s32.totalorder %s175, %s176
      %p185 = scmp.eq.s32.totalorder %s27, 0
      %p186 = por %p184, %p185
      %p187 = scmp.ne.s32.totalorder %s175, %s176
      %p188 = scmp.eq.s32.totalorder %s28, 1
      %p189 = por %p187, %p188
      %p191 = scmp.ne.s32.totalorder %s176, %s190
      %p192 = scmp.eq.s32.totalorder %s28, 0
      %p193 = por %p191, %p192
      %s195 = sadd.s32 %s194, 1
      %p198 = scmp.eq.s32.totalorder %s22, 1
      %p199 = scmp.ne.s32.totalorder %s194, %s196
      %p200 = scmp.eq.s32.totalorder %s22, 0
      %p201 = por %p199, %p200
      %p202 = scmp.ne.s32.totalorder %s194, %s196
      %p203 = scmp.eq.s32.totalorder %s27, 1
      %p204 = por %p202, %p203
      %p205 = scmp.ne.s32.totalorder %s196, %s197
      %p206 = scmp.eq.s32.totalorder %s27, 0
      %p207 = por %p205, %p206
      %p208 = scmp.ne.s32.totalorder %s196, %s197
      %p209 = scmp.eq.s32.totalorder %s28, 1
      %p210 = por %p208, %p209
      %p212 = scmp.ne.s32.totalorder %s197, %s211
      %p213 = scmp.eq.s32.totalorder %s28, 0
      %p214 = por %p212, %p213
      %s215 = ssub.s32 %s29, %s41
      %s216 = ssub.s32 %s30, %s37
      %s217 = sor.u32 %s215, %s216
      %p218 = scmp.eq.s32.totalorder %s217, 0
      %s220 = sadd.s32 %s219, 1
      %s221 = scalar_select %p218, %s219, %s220
      %p224 = pneg %p218
      %p225 = scmp.eq.s32.totalorder %s22, 1
      %p226 = por %p224, %p225
      %p227 = scmp.ne.s32.totalorder %s219, %s222
      %p228 = scmp.eq.s32.totalorder %s22, 0
      %p229 = por %p227, %p228
      %p230 = scmp.ne.s32.totalorder %s219, %s222
      %p231 = scmp.eq.s32.totalorder %s27, 1
      %p232 = por %p230, %p231
      %p233 = scmp.ne.s32.totalorder %s222, %s223
      %p234 = scmp.eq.s32.totalorder %s27, 0
      %p235 = por %p233, %p234
      %p236 = scmp.ne.s32.totalorder %s222, %s223
      %p237 = scmp.eq.s32.totalorder %s28, 1
      %p238 = por %p236, %p237
      %p240 = scmp.ne.s32.totalorder %s223, %s239
      %p241 = scmp.eq.s32.totalorder %s28, 0
      %p242 = por %p240, %p241
      %p243 = scmp.le.s32.totalorder 1, %s22
      %p244 = scmp.lt.s32.totalorder %s22, 3
      %p245 = pnand %p243, %p244
      %p246 = pneg %p245
      // Predicated region
      $region9: #{tpu_custom_call.1} parent=5 // pred_check
        _
      $region10: #{tpu_custom_call.1} parent=5 // pred_check_branch
        %248 = sbr.rel (%p245) target = $region12
      $region11: #{tpu_custom_call.1} parent=5 // pred_region
        %s249 = ssub.s32 %s22, 1
        // Predicated region
        $region13: #{tpu_custom_call.1} parent=11 // pred_check
          %p250 = pneg %p81
        $region14: #{tpu_custom_call.1} parent=11 // pred_check_branch
          %252 = sbr.rel (%p250) target = $region16
        $region15: #{tpu_custom_call.1} parent=11 // pred_region
          %s254 = ssub.s32 2048, 2048
          %255 = vsyncadd [#allocation7], %s254
          %s256 = sshll.u32 [#allocation6], 4
          %s257 = int_to_ptr.vmem [resolvable:$true] %s256
          %262 = dma.hbm_to_vmem [thread:$0]  %s1, 2048, %s257, [#allocation7], 128, 128, 8
        $region16: #{tpu_custom_call.1} parent=11 // pred_fallthru
          _
        // Predicated region
        $region17: #{tpu_custom_call.1} parent=11 // pred_check
          %p263 = pneg %p102
        $region18: #{tpu_custom_call.1} parent=11 // pred_check_branch
          %265 = sbr.rel (%p263) target = $region20
        $region19: #{tpu_custom_call.1} parent=11 // pred_region
          _
        $region20: #{tpu_custom_call.1} parent=11 // pred_fallthru
          _
        // Predicated region
        $region21: #{tpu_custom_call.1} parent=11 // pred_check
          %p266 = pneg %p123
        $region22: #{tpu_custom_call.1} parent=11 // pred_check_branch
          %268 = sbr.rel (%p266) target = $region24
        $region23: #{tpu_custom_call.1} parent=11 // pred_region
          _
        $region24: #{tpu_custom_call.1} parent=11 // pred_fallthru
          _
        // Predicated region
        $region25: #{tpu_custom_call.1} parent=11 // pred_check
          %p269 = pneg %p144
        $region26: #{tpu_custom_call.1} parent=11 // pred_check_branch
          %271 = sbr.rel (%p269) target = $region28
        $region27: #{tpu_custom_call.1} parent=11 // pred_region
          %s273 = ssub.s32 3072, 3072
          %274 = vsyncadd [#allocation7], %s273
          %s275 = sshll.u32 [#allocation8], 4
          %s276 = int_to_ptr.vmem [resolvable:$true] %s275
          %281 = dma.hbm_to_vmem [thread:$0]  %s4, 3072, %s276, [#allocation7], 192, 192, 12
        $region28: #{tpu_custom_call.1} parent=11 // pred_fallthru
          _
        // Predicated region
        $region29: #{tpu_custom_call.1} parent=11 // pred_check
          %p282 = pneg %p165
        $region30: #{tpu_custom_call.1} parent=11 // pred_check_branch
          %284 = sbr.rel (%p282) target = $region32
        $region31: #{tpu_custom_call.1} parent=11 // pred_region
          _
        $region32: #{tpu_custom_call.1} parent=11 // pred_fallthru
          _
        // Predicated region
        $region33: #{tpu_custom_call.1} parent=11 // pred_check
          %p285 = pneg %p186
        $region34: #{tpu_custom_call.1} parent=11 // pred_check_branch
          %287 = sbr.rel (%p285) target = $region36
        $region35: #{tpu_custom_call.1} parent=11 // pred_region
          %s289 = ssub.s32 1024, 1024
          %290 = vsyncadd [#allocation10], %s289
          %s291 = sshll.u32 [#allocation9], 4
          %s292 = int_to_ptr.vmem [resolvable:$true] %s291
          %297 = dma.hbm_to_vmem [thread:$0]  %s6, 1024, %s292, [#allocation10], 64, 64, 4
        $region36: #{tpu_custom_call.1} parent=11 // pred_fallthru
          _
        // Predicated region
        $region37: #{tpu_custom_call.1} parent=11 // pred_check
          %p298 = pneg %p207
        $region38: #{tpu_custom_call.1} parent=11 // pred_check_branch
          %300 = sbr.rel (%p298) target = $region40
        $region39: #{tpu_custom_call.1} parent=11 // pred_region
          _
        $region40: #{tpu_custom_call.1} parent=11 // pred_fallthru
          _
      $region12: #{tpu_custom_call.1} parent=5 // pred_fallthru
        _
      %p301 = scmp.lt.s32.totalorder %s22, 2
      // Predicated region
      $region41: #{tpu_custom_call.1} parent=5 // pred_check
        %p302 = pneg %p301
      $region42: #{tpu_custom_call.1} parent=5 // pred_check_branch
        %304 = sbr.rel (%p302) target = $region44
      $region43: #{tpu_custom_call.1} parent=5 // pred_region
        // Predicated region
        $region45: #{tpu_custom_call.1} parent=43 // pred_check
          %p305 = pneg %p54
        $region46: #{tpu_custom_call.1} parent=43 // pred_check_branch
          %307 = sbr.rel (%p305) target = $region48
        $region47: #{tpu_custom_call.1} parent=43 // pred_region
          %s308 = sand.u32 %s44, 1
          %s309 = scalar_lea.sflag [#allocation4], %s308
          %s310 = sand.u32 %s44, 1
          %s311 = smul.addr %s310, 256
          %s312 = scalar_lea.vmem [#allocation3], %s311
          %s314 = ssub.s32 4096, 4096
          %315 = vsyncadd %s309, %s314
          %s316 = smul.addr %s29, 32
          %s317 = smul.addr %s316, 128
          %s318 = scalar_lea.hbm %s0, %s317
          %s319 = sshll.u32 %s312, 4
          %s320 = int_to_ptr.vmem [resolvable:$true] %s319
          %325 = dma.hbm_to_vmem [thread:$0]  %s318, 4096, %s320, %s309, 128, 128, 8
        $region48: #{tpu_custom_call.1} parent=43 // pred_fallthru
          _
      $region44: #{tpu_custom_call.1} parent=5 // pred_fallthru
        _
      %p326 = scmp.le.s32.totalorder 1, %s22
      %p327 = scmp.lt.s32.totalorder %s22, 3
      %p328 = pnand %p326, %p327
      %p329 = pneg %p328
      // Predicated region
      $region49: #{tpu_custom_call.1} parent=5 // pred_check
        _
      $region50: #{tpu_custom_call.1} parent=5 // pred_check_branch
        %331 = sbr.rel (%p328) target = $region52
      $region51: #{tpu_custom_call.1} parent=5 // pred_region
        %s332 = ssub.s32 %s22, 1
        %s333 = sand.u32 %s47, 1
        %s334 = scalar_lea.sflag [#allocation4], %s333
        %s335 = sand.u32 %s47, 1
        %s336 = smul.addr %s335, 256
        %s337 = scalar_lea.vmem [#allocation3], %s336
        // Predicated region
        $region53: #{tpu_custom_call.1} parent=51 // pred_check
          %p338 = pneg %p60
        $region54: #{tpu_custom_call.1} parent=51 // pred_check_branch
          %340 = sbr.rel (%p338) target = $region56
        $region55: #{tpu_custom_call.1} parent=51 // pred_region
          %341 = dma.done %s334, 4096
        $region56: #{tpu_custom_call.1} parent=51 // pred_fallthru
          _
        // Predicated region
        $region57: #{tpu_custom_call.1} parent=51 // pred_check
          %p342 = pneg %p81
        $region58: #{tpu_custom_call.1} parent=51 // pred_check_branch
          %344 = sbr.rel (%p342) target = $region60
        $region59: #{tpu_custom_call.1} parent=51 // pred_region
          %345 = dma.done [#allocation7], 2048
        $region60: #{tpu_custom_call.1} parent=51 // pred_fallthru
          _
        // Predicated region
        $region61: #{tpu_custom_call.1} parent=51 // pred_check
          %p346 = pneg %p144
        $region62: #{tpu_custom_call.1} parent=51 // pred_check_branch
          %348 = sbr.rel (%p346) target = $region64
        $region63: #{tpu_custom_call.1} parent=51 // pred_region
          %349 = dma.done [#allocation7], 3072
        $region64: #{tpu_custom_call.1} parent=51 // pred_fallthru
          _
        // Predicated region
        $region65: #{tpu_custom_call.1} parent=51 // pred_check
          %p350 = pneg %p186
        $region66: #{tpu_custom_call.1} parent=51 // pred_check_branch
          %352 = sbr.rel (%p350) target = $region68
        $region67: #{tpu_custom_call.1} parent=51 // pred_region
          %353 = dma.done [#allocation10], 1024
        $region68: #{tpu_custom_call.1} parent=51 // pred_fallthru
          _
        %s354 = sand.u32 %s47, 1
        %s355 = scalar_lea.sflag [#allocation4], %s354
        %s356 = sand.u32 %s47, 1
        %s357 = smul.addr %s356, 256
        %s358 = scalar_lea.vmem [#allocation3], %s357
        %p359 = pneg %p60
        %p360 = pneg %p57
        %p361 = pneg %p81
        %p362 = pneg %p78
        %p363 = pneg %p102
        %p364 = pneg %p99
        %p365 = pneg %p123
        %p366 = pneg %p120
        %p367 = pneg %p144
        %p368 = pneg %p141
        %p369 = pneg %p165
        %p370 = pneg %p162
        %p371 = pneg %p186
        %p372 = pneg %p183
        %p373 = pneg %p207
        %p374 = pneg %p204
        %p375 = pneg %p235
        %p376 = pneg %p232
        %s377 = sand.u32 %s222, 1
        %s378 = scalar_lea.sflag [#allocation5], %s377
        %s379 = sand.u32 %s222, 1
        %s380 = smul.addr %s379, 256
        %s381 = scalar_lea.vmem [#allocation11], %s380
        %s382 = smul.u32 32, %s32
        %p384 = scmp.eq.s32.totalorder %s32, 0
        // Predicated region
        $region69: #{tpu_custom_call.1} parent=51 // pred_check
          %p385 = pneg %p384
        $region70: #{tpu_custom_call.1} parent=51 // pred_check_branch
          %387 = sbr.rel (%p385) target = $region72
        $region71: #{tpu_custom_call.1} parent=51 // pred_region
          %v388 = vld [vmem:[%s337] sm:$0xff]
          %v389 = vld [vmem:[%s337 + $0x8] sm:$0xff]
          %v390 = vld [vmem:[%s337 + $0x10] sm:$0xff]
          %v391 = vld [vmem:[%s337 + $0x18] sm:$0xff]
          %v392 = vld [vmem:[%s337 + $0x20] sm:$0xff]
          %v393 = vld [vmem:[%s337 + $0x28] sm:$0xff]
          %v394 = vld [vmem:[%s337 + $0x30] sm:$0xff]
          %v395 = vld [vmem:[%s337 + $0x38] sm:$0xff]
          %v396 = vld [vmem:[%s337 + $0x40] sm:$0xff]
          %v397 = vld [vmem:[%s337 + $0x48] sm:$0xff]
          %v398 = vld [vmem:[%s337 + $0x50] sm:$0xff]
          %v399 = vld [vmem:[%s337 + $0x58] sm:$0xff]
          %v400 = vld [vmem:[%s337 + $0x60] sm:$0xff]
          %v401 = vld [vmem:[%s337 + $0x68] sm:$0xff]
          %v402 = vld [vmem:[%s337 + $0x70] sm:$0xff]
          %v403 = vld [vmem:[%s337 + $0x78] sm:$0xff]
          %v404 = vld [vmem:[%s337 + $0x80] sm:$0xff]
          %v405 = vld [vmem:[%s337 + $0x88] sm:$0xff]
          %v406 = vld [vmem:[%s337 + $0x90] sm:$0xff]
          %v407 = vld [vmem:[%s337 + $0x98] sm:$0xff]
          %v408 = vld [vmem:[%s337 + $0xa0] sm:$0xff]
          %v409 = vld [vmem:[%s337 + $0xa8] sm:$0xff]
          %v410 = vld [vmem:[%s337 + $0xb0] sm:$0xff]
          %v411 = vld [vmem:[%s337 + $0xb8] sm:$0xff]
          %v412 = vld [vmem:[%s337 + $0xc0] sm:$0xff]
          %v413 = vld [vmem:[%s337 + $0xc8] sm:$0xff]
          %v414 = vld [vmem:[%s337 + $0xd0] sm:$0xff]
          %v415 = vld [vmem:[%s337 + $0xd8] sm:$0xff]
          %v416 = vld [vmem:[%s337 + $0xe0] sm:$0xff]
          %v417 = vld [vmem:[%s337 + $0xe8] sm:$0xff]
          %v418 = vld [vmem:[%s337 + $0xf0] sm:$0xff]
          %v419 = vld [vmem:[%s337 + $0xf8] sm:$0xff]
          %v420 = vadd.f32 %v388, %v389
          %v421 = vadd.f32 %v420, %v390
          %v422 = vadd.f32 %v421, %v391
          %v423 = vadd.f32 %v422, %v392
          %v424 = vadd.f32 %v423, %v393
          %v425 = vadd.f32 %v424, %v394
          %v426 = vadd.f32 %v425, %v395
          %v427 = vadd.f32 %v426, %v396
          %v428 = vadd.f32 %v427, %v397
          %v429 = vadd.f32 %v428, %v398
          %v430 = vadd.f32 %v429, %v399
          %v431 = vadd.f32 %v430, %v400
          %v432 = vadd.f32 %v431, %v401
          %v433 = vadd.f32 %v432, %v402
          %v434 = vadd.f32 %v433, %v403
          %v435 = vadd.f32 %v434, %v404
          %v436 = vadd.f32 %v435, %v405
          %v437 = vadd.f32 %v436, %v406
          %v438 = vadd.f32 %v437, %v407
          %v439 = vadd.f32 %v438, %v408
          %v440 = vadd.f32 %v439, %v409
          %v441 = vadd.f32 %v440, %v410
          %v442 = vadd.f32 %v441, %v411
          %v443 = vadd.f32 %v442, %v412
          %v444 = vadd.f32 %v443, %v413
          %v445 = vadd.f32 %v444, %v414
          %v446 = vadd.f32 %v445, %v415
          %v447 = vadd.f32 %v446, %v416
          %v448 = vadd.f32 %v447, %v417
          %v449 = vadd.f32 %v448, %v418
          %v450 = vadd.f32 %v449, %v419
          %v451 = vrot.slane %v450, 4
          %v452 = vadd.f32 %v450, %v451
          %v453 = vrot.slane %v452, 2
          %v454 = vadd.f32 %v452, %v453
          %v455 = vrot.slane %v454, 1
          %v456 = vadd.f32 %v454, %v455
          %v457 = vrcp.pop 256.0
          %v458 = vmul.f32 %v456, %v457
          %v459 = vld [vmem:[#allocation6] sm:$0xff]
          %v460 = vld [vmem:[#allocation6 + $0x8] sm:$0xff]
          %v461 = vld [vmem:[#allocation6 + $0x10] sm:$0xff]
          %v462 = vld [vmem:[#allocation6 + $0x18] sm:$0xff]
          %v463 = vld [vmem:[#allocation6 + $0x20] sm:$0xff]
          %v464 = vld [vmem:[#allocation6 + $0x28] sm:$0xff]
          %v465 = vld [vmem:[#allocation6 + $0x30] sm:$0xff]
          %v466 = vld [vmem:[#allocation6 + $0x38] sm:$0xff]
          %v467 = vld [vmem:[#allocation6 + $0x40] sm:$0xff]
          %v468 = vld [vmem:[#allocation6 + $0x48] sm:$0xff]
          %v469 = vld [vmem:[#allocation6 + $0x50] sm:$0xff]
          %v470 = vld [vmem:[#allocation6 + $0x58] sm:$0xff]
          %v471 = vld [vmem:[#allocation6 + $0x60] sm:$0xff]
          %v472 = vld [vmem:[#allocation6 + $0x68] sm:$0xff]
          %v473 = vld [vmem:[#allocation6 + $0x70] sm:$0xff]
          %v474 = vld [vmem:[#allocation6 + $0x78] sm:$0xff]
          %475 = vmatprep.subr.mxu0 0.0
          %476 = vmatpush1.msra.mxu0 %v474
          %477 = vmatprep.subr.mxu0 0.0
          %478 = vmatpush1.msra.mxu0 %v473
          %479 = vmatprep.subr.mxu0 0.0
          %480 = vmatpush1.msra.mxu0 %v472
          %481 = vmatprep.subr.mxu0 0.0
          %482 = vmatpush1.msra.mxu0 %v471
          %483 = vmatprep.subr.mxu0 0.0
          %484 = vmatpush1.msra.mxu0 %v470
          %485 = vmatprep.subr.mxu0 0.0
          %486 = vmatpush1.msra.mxu0 %v469
          %487 = vmatprep.subr.mxu0 0.0
          %488 = vmatpush1.msra.mxu0 %v468
          %489 = vmatprep.subr.mxu0 0.0
          %490 = vmatpush1.msra.mxu0 %v467
          %491 = vmatprep.subr.mxu0 0.0
          %492 = vmatpush1.msra.mxu0 %v466
          %493 = vmatprep.subr.mxu0 0.0
          %494 = vmatpush1.msra.mxu0 %v465
          %495 = vmatprep.subr.mxu0 0.0
          %496 = vmatpush1.msra.mxu0 %v464
          %497 = vmatprep.subr.mxu0 0.0
          %498 = vmatpush1.msra.mxu0 %v463
          %499 = vmatprep.subr.mxu0 0.0
          %500 = vmatpush1.msra.mxu0 %v462
          %501 = vmatprep.subr.mxu0 0.0
          %502 = vmatpush1.msra.mxu0 %v461
          %503 = vmatprep.subr.mxu0 0.0
          %504 = vmatpush1.msra.mxu0 %v460
          %505 = vmatprep.subr.mxu0 0.0
          %506 = vmatpush1.msra.mxu0 %v459
          %507 = vmatprep.subr.mxu0 0.0
          %508 = vmatpush2.msra.mxu0 0.0
          %509 = vmatprep.subr.mxu0 0.0
          %510 = vmatpush2.msra.mxu0 0.0
          %511 = vmatprep.subr.mxu0 0.0
          %512 = vmatpush2.msra.mxu0 0.0
          %513 = vmatprep.subr.mxu0 0.0
          %514 = vmatpush2.msra.mxu0 0.0
          %515 = vmatprep.subr.mxu0 0.0
          %516 = vmatpush2.msra.mxu0 0.0
          %517 = vmatprep.subr.mxu0 0.0
          %518 = vmatpush2.msra.mxu0 0.0
          %519 = vmatprep.subr.mxu0 0.0
          %520 = vmatpush2.msra.mxu0 0.0
          %521 = vmatprep.subr.mxu0 0.0
          %522 = vmatpush2.msra.mxu0 0.0
          %523 = vmatprep.subr.mxu0 0.0
          %524 = vmatpush2.msra.mxu0 0.0
          %525 = vmatprep.subr.mxu0 0.0
          %526 = vmatpush2.msra.mxu0 0.0
          %527 = vmatprep.subr.mxu0 0.0
          %528 = vmatpush2.msra.mxu0 0.0
          %529 = vmatprep.subr.mxu0 0.0
          %530 = vmatpush2.msra.mxu0 0.0
          %531 = vmatprep.subr.mxu0 0.0
          %532 = vmatpush2.msra.mxu0 0.0
          %533 = vmatprep.subr.mxu0 0.0
          %534 = vmatpush2.msra.mxu0 0.0
          %535 = vmatprep.subr.mxu0 0.0
          %536 = vmatpush2.msra.mxu0 0.0
          %537 = vmatprep.subr.mxu0 0.0
          %538 = vmatpush2.msra.mxu0 0.0
          %539 = vmatprep.mubr.f32.mxu0 0.0
          %540 = vmatmul.mubr.f32.gmra.mxu0 %v458
          %v541 = vpop.f32.mrf.mxu0
          %v542 = vadd.f32 0.0, %v541
          %v543 = vpop.f32.mrf.mxu0
          %544 = vdwg.mxu0
          %v545 = vlaneseq
          %v546 = vshrl.u32 %v545, 7
          %v547 = vsub.s32 0, %v546
          %v548 = vrot.slane %v542, %v547
          %v549 = vsub.f32 %v388, %v548
          %v550 = vsub.f32 %v389, %v548
          %v551 = vsub.f32 %v390, %v548
          %v552 = vsub.f32 %v391, %v548
          %v553 = vsub.f32 %v392, %v548
          %v554 = vsub.f32 %v393, %v548
          %v555 = vsub.f32 %v394, %v548
          %v556 = vsub.f32 %v395, %v548
          %v557 = vsub.f32 %v396, %v548
          %v558 = vsub.f32 %v397, %v548
          %v559 = vsub.f32 %v398, %v548
          %v560 = vsub.f32 %v399, %v548
          %v561 = vsub.f32 %v400, %v548
          %v562 = vsub.f32 %v401, %v548
          %v563 = vsub.f32 %v402, %v548
          %v564 = vsub.f32 %v403, %v548
          %v565 = vsub.f32 %v404, %v548
          %v566 = vsub.f32 %v405, %v548
          %v567 = vsub.f32 %v406, %v548
          %v568 = vsub.f32 %v407, %v548
          %v569 = vsub.f32 %v408, %v548
          %v570 = vsub.f32 %v409, %v548
          %v571 = vsub.f32 %v410, %v548
          %v572 = vsub.f32 %v411, %v548
          %v573 = vsub.f32 %v412, %v548
          %v574 = vsub.f32 %v413, %v548
          %v575 = vsub.f32 %v414, %v548
          %v576 = vsub.f32 %v415, %v548
          %v577 = vsub.f32 %v416, %v548
          %v578 = vsub.f32 %v417, %v548
          %v579 = vsub.f32 %v418, %v548
          %v580 = vsub.f32 %v419, %v548
          %v581 = vmul.f32 %v549, %v549
          %v582 = vmul.f32 %v550, %v550
          %v583 = vmul.f32 %v551, %v551
          %v584 = vmul.f32 %v552, %v552
          %v585 = vmul.f32 %v553, %v553
          %v586 = vmul.f32 %v554, %v554
          %v587 = vmul.f32 %v555, %v555
          %v588 = vmul.f32 %v556, %v556
          %v589 = vmul.f32 %v557, %v557
          %v590 = vmul.f32 %v558, %v558
          %v591 = vmul.f32 %v559, %v559
          %v592 = vmul.f32 %v560, %v560
          %v593 = vmul.f32 %v561, %v561
          %v594 = vmul.f32 %v562, %v562
          %v595 = vmul.f32 %v563, %v563
          %v596 = vmul.f32 %v564, %v564
          %v597 = vmul.f32 %v565, %v565
          %v598 = vmul.f32 %v566, %v566
          %v599 = vmul.f32 %v567, %v567
          %v600 = vmul.f32 %v568, %v568
          %v601 = vmul.f32 %v569, %v569
          %v602 = vmul.f32 %v570, %v570
          %v603 = vmul.f32 %v571, %v571
          %v604 = vmul.f32 %v572, %v572
          %v605 = vmul.f32 %v573, %v573
          %v606 = vmul.f32 %v574, %v574
          %v607 = vmul.f32 %v575, %v575
          %v608 = vmul.f32 %v576, %v576
          %v609 = vmul.f32 %v577, %v577
          %v610 = vmul.f32 %v578, %v578
          %v611 = vmul.f32 %v579, %v579
          %v612 = vmul.f32 %v580, %v580
          %v613 = vadd.f32 %v581, %v582
          %v614 = vadd.f32 %v613, %v583
          %v615 = vadd.f32 %v614, %v584
          %v616 = vadd.f32 %v615, %v585
          %v617 = vadd.f32 %v616, %v586
          %v618 = vadd.f32 %v617, %v587
          %v619 = vadd.f32 %v618, %v588
          %v620 = vadd.f32 %v619, %v589
          %v621 = vadd.f32 %v620, %v590
          %v622 = vadd.f32 %v621, %v591
          %v623 = vadd.f32 %v622, %v592
          %v624 = vadd.f32 %v623, %v593
          %v625 = vadd.f32 %v624, %v594
          %v626 = vadd.f32 %v625, %v595
          %v627 = vadd.f32 %v626, %v596
          %v628 = vadd.f32 %v627, %v597
          %v629 = vadd.f32 %v628, %v598
          %v630 = vadd.f32 %v629, %v599
          %v631 = vadd.f32 %v630, %v600
          %v632 = vadd.f32 %v631, %v601
          %v633 = vadd.f32 %v632, %v602
          %v634 = vadd.f32 %v633, %v603
          %v635 = vadd.f32 %v634, %v604
          %v636 = vadd.f32 %v635, %v605
          %v637 = vadd.f32 %v636, %v606
          %v638 = vadd.f32 %v637, %v607
          %v639 = vadd.f32 %v638, %v608
          %v640 = vadd.f32 %v639, %v609
          %v641 = vadd.f32 %v640, %v610
          %v642 = vadd.f32 %v641, %v611
          %v643 = vadd.f32 %v642, %v612
          %v644 = vrot.slane %v643, 4
          %v645 = vadd.f32 %v643, %v644
          %v646 = vrot.slane %v645, 2
          %v647 = vadd.f32 %v645, %v646
          %v648 = vrot.slane %v647, 1
          %v649 = vadd.f32 %v647, %v648
          %v650 = vmul.f32 %v649, %v457
          %651 = vmatprep.subr.mxu0 0.0
          %652 = vmatpush1.msra.mxu0 %v474
          %653 = vmatprep.subr.mxu0 0.0
          %654 = vmatpush1.msra.mxu0 %v473
          %655 = vmatprep.subr.mxu0 0.0
          %656 = vmatpush1.msra.mxu0 %v472
          %657 = vmatprep.subr.mxu0 0.0
          %658 = vmatpush1.msra.mxu0 %v471
          %659 = vmatprep.subr.mxu0 0.0
          %660 = vmatpush1.msra.mxu0 %v470
          %661 = vmatprep.subr.mxu0 0.0
          %662 = vmatpush1.msra.mxu0 %v469
          %663 = vmatprep.subr.mxu0 0.0
          %664 = vmatpush1.msra.mxu0 %v468
          %665 = vmatprep.subr.mxu0 0.0
          %666 = vmatpush1.msra.mxu0 %v467
          %667 = vmatprep.subr.mxu0 0.0
          %668 = vmatpush1.msra.mxu0 %v466
          %669 = vmatprep.subr.mxu0 0.0
          %670 = vmatpush1.msra.mxu0 %v465
          %671 = vmatprep.subr.mxu0 0.0
          %672 = vmatpush1.msra.mxu0 %v464
          %673 = vmatprep.subr.mxu0 0.0
          %674 = vmatpush1.msra.mxu0 %v463
          %675 = vmatprep.subr.mxu0 0.0
          %676 = vmatpush1.msra.mxu0 %v462
          %677 = vmatprep.subr.mxu0 0.0
          %678 = vmatpush1.msra.mxu0 %v461
          %679 = vmatprep.subr.mxu0 0.0
          %680 = vmatpush1.msra.mxu0 %v460
          %681 = vmatprep.subr.mxu0 0.0
          %682 = vmatpush1.msra.mxu0 %v459
          %683 = vmatprep.subr.mxu0 0.0
          %684 = vmatpush2.msra.mxu0 0.0
          %685 = vmatprep.subr.mxu0 0.0
          %686 = vmatpush2.msra.mxu0 0.0
          %687 = vmatprep.subr.mxu0 0.0
          %688 = vmatpush2.msra.mxu0 0.0
          %689 = vmatprep.subr.mxu0 0.0
          %690 = vmatpush2.msra.mxu0 0.0
          %691 = vmatprep.subr.mxu0 0.0
          %692 = vmatpush2.msra.mxu0 0.0
          %693 = vmatprep.subr.mxu0 0.0
          %694 = vmatpush2.msra.mxu0 0.0
          %695 = vmatprep.subr.mxu0 0.0
          %696 = vmatpush2.msra.mxu0 0.0
          %697 = vmatprep.subr.mxu0 0.0
          %698 = vmatpush2.msra.mxu0 0.0
          %699 = vmatprep.subr.mxu0 0.0
          %700 = vmatpush2.msra.mxu0 0.0
          %701 = vmatprep.subr.mxu0 0.0
          %702 = vmatpush2.msra.mxu0 0.0
          %703 = vmatprep.subr.mxu0 0.0
          %704 = vmatpush2.msra.mxu0 0.0
          %705 = vmatprep.subr.mxu0 0.0
          %706 = vmatpush2.msra.mxu0 0.0
          %707 = vmatprep.subr.mxu0 0.0
          %708 = vmatpush2.msra.mxu0 0.0
          %709 = vmatprep.subr.mxu0 0.0
          %710 = vmatpush2.msra.mxu0 0.0
          %711 = vmatprep.subr.mxu0 0.0
          %712 = vmatpush2.msra.mxu0 0.0
          %713 = vmatprep.subr.mxu0 0.0
          %714 = vmatpush2.msra.mxu0 0.0
          %715 = vmatprep.mubr.f32.mxu0 0.0
          %716 = vmatmul.mubr.f32.gmra.mxu0 %v650
          %v717 = vpop.f32.mrf.mxu0
          %v718 = vadd.f32 1e-05, %v717
          %v719 = vpop.f32.mrf.mxu0
          %720 = vdwg.mxu0
          %v721 = vrsqrt.pop %v718
          %v722 = vld [vmem:[%s2] sm:$0x1]
          %v723 = vmul.f32 %v721, %v722
          %v724 = vld [vmem:[%s3] sm:$0x1]
          %v725 = vmul.f32 %v542, %v723
          %v726 = vsub.f32 %v724, %v725
          %v727 = vlaneseq
          %v728 = vshrl.u32 %v727, 7
          %v729 = vsub.s32 0, %v728
          %v730 = vrot.slane %v723, %v729
          %v731 = vmul.f32 %v388, %v730
          %v732 = vmul.f32 %v389, %v730
          %v733 = vmul.f32 %v390, %v730
          %v734 = vmul.f32 %v391, %v730
          %v735 = vmul.f32 %v392, %v730
          %v736 = vmul.f32 %v393, %v730
          %v737 = vmul.f32 %v394, %v730
          %v738 = vmul.f32 %v395, %v730
          %v739 = vmul.f32 %v396, %v730
          %v740 = vmul.f32 %v397, %v730
          %v741 = vmul.f32 %v398, %v730
          %v742 = vmul.f32 %v399, %v730
          %v743 = vmul.f32 %v400, %v730
          %v744 = vmul.f32 %v401, %v730
          %v745 = vmul.f32 %v402, %v730
          %v746 = vmul.f32 %v403, %v730
          %v747 = vmul.f32 %v404, %v730
          %v748 = vmul.f32 %v405, %v730
          %v749 = vmul.f32 %v406, %v730
          %v750 = vmul.f32 %v407, %v730
          %v751 = vmul.f32 %v408, %v730
          %v752 = vmul.f32 %v409, %v730
          %v753 = vmul.f32 %v410, %v730
          %v754 = vmul.f32 %v411, %v730
          %v755 = vmul.f32 %v412, %v730
          %v756 = vmul.f32 %v413, %v730
          %v757 = vmul.f32 %v414, %v730
          %v758 = vmul.f32 %v415, %v730
          %v759 = vmul.f32 %v416, %v730
          %v760 = vmul.f32 %v417, %v730
          %v761 = vmul.f32 %v418, %v730
          %v762 = vmul.f32 %v419, %v730
          %v764 = vlaneseq
          %v765 = vshrl.u32 %v764, 7
          %v766 = vsub.s32 0, %v765
          %v767 = vrot.slane %v726, %v766
          %v769 = vadd.f32 %v731, %v767
          %v770 = vadd.f32 %v732, %v767
          %v771 = vadd.f32 %v733, %v767
          %v772 = vadd.f32 %v734, %v767
          %v773 = vadd.f32 %v735, %v767
          %v774 = vadd.f32 %v736, %v767
          %v775 = vadd.f32 %v737, %v767
          %v776 = vadd.f32 %v738, %v767
          %v777 = vadd.f32 %v739, %v767
          %v778 = vadd.f32 %v740, %v767
          %v779 = vadd.f32 %v741, %v767
          %v780 = vadd.f32 %v742, %v767
          %v781 = vadd.f32 %v743, %v767
          %v782 = vadd.f32 %v744, %v767
          %v783 = vadd.f32 %v745, %v767
          %v784 = vadd.f32 %v746, %v767
          %v785 = vadd.f32 %v747, %v767
          %v786 = vadd.f32 %v748, %v767
          %v787 = vadd.f32 %v749, %v767
          %v788 = vadd.f32 %v750, %v767
          %v789 = vadd.f32 %v751, %v767
          %v790 = vadd.f32 %v752, %v767
          %v791 = vadd.f32 %v753, %v767
          %v792 = vadd.f32 %v754, %v767
          %v793 = vadd.f32 %v755, %v767
          %v794 = vadd.f32 %v756, %v767
          %v795 = vadd.f32 %v757, %v767
          %v796 = vadd.f32 %v758, %v767
          %v797 = vadd.f32 %v759, %v767
          %v798 = vadd.f32 %v760, %v767
          %v799 = vadd.f32 %v761, %v767
          %v800 = vadd.f32 %v762, %v767
          %v801 = vpack.c.bf16 %v770, %v769
          %v802 = vpack.c.bf16 %v772, %v771
          %v803 = vpack.c.bf16 %v774, %v773
          %v804 = vpack.c.bf16 %v776, %v775
          %v805 = vpack.c.bf16 %v778, %v777
          %v806 = vpack.c.bf16 %v780, %v779
          %v807 = vpack.c.bf16 %v782, %v781
          %v808 = vpack.c.bf16 %v784, %v783
          %v809 = vpack.c.bf16 %v786, %v785
          %v810 = vpack.c.bf16 %v788, %v787
          %v811 = vpack.c.bf16 %v790, %v789
          %v812 = vpack.c.bf16 %v792, %v791
          %v813 = vpack.c.bf16 %v794, %v793
          %v814 = vpack.c.bf16 %v796, %v795
          %v815 = vpack.c.bf16 %v798, %v797
          %v816 = vpack.c.bf16 %v800, %v799
          %v817 = vld [vmem:[#allocation8] sm:$0xff]
          %v818 = vld [vmem:[#allocation8 + $0x8] sm:$0xf]
          %v819 = vld [vmem:[#allocation8 + $0xc] sm:$0xff]
          %v820 = vld [vmem:[#allocation8 + $0x14] sm:$0xf]
          %v821 = vld [vmem:[#allocation8 + $0x18] sm:$0xff]
          %v822 = vld [vmem:[#allocation8 + $0x20] sm:$0xf]
          %v823 = vld [vmem:[#allocation8 + $0x24] sm:$0xff]
          %v824 = vld [vmem:[#allocation8 + $0x2c] sm:$0xf]
          %v825 = vld [vmem:[#allocation8 + $0x30] sm:$0xff]
          %v826 = vld [vmem:[#allocation8 + $0x38] sm:$0xf]
          %v827 = vld [vmem:[#allocation8 + $0x3c] sm:$0xff]
          %v828 = vld [vmem:[#allocation8 + $0x44] sm:$0xf]
          %v829 = vld [vmem:[#allocation8 + $0x48] sm:$0xff]
          %v830 = vld [vmem:[#allocation8 + $0x50] sm:$0xf]
          %v831 = vld [vmem:[#allocation8 + $0x54] sm:$0xff]
          %v832 = vld [vmem:[#allocation8 + $0x5c] sm:$0xf]
          %v833 = vld [vmem:[#allocation8 + $0x60] sm:$0xff]
          %v834 = vld [vmem:[#allocation8 + $0x68] sm:$0xf]
          %v835 = vld [vmem:[#allocation8 + $0x6c] sm:$0xff]
          %v836 = vld [vmem:[#allocation8 + $0x74] sm:$0xf]
          %v837 = vld [vmem:[#allocation8 + $0x78] sm:$0xff]
          %v838 = vld [vmem:[#allocation8 + $0x80] sm:$0xf]
          %v839 = vld [vmem:[#allocation8 + $0x84] sm:$0xff]
          %v840 = vld [vmem:[#allocation8 + $0x8c] sm:$0xf]
          %v841 = vld [vmem:[#allocation8 + $0x90] sm:$0xff]
          %v842 = vld [vmem:[#allocation8 + $0x98] sm:$0xf]
          %v843 = vld [vmem:[#allocation8 + $0x9c] sm:$0xff]
          %v844 = vld [vmem:[#allocation8 + $0xa4] sm:$0xf]
          %v845 = vld [vmem:[#allocation8 + $0xa8] sm:$0xff]
          %v846 = vld [vmem:[#allocation8 + $0xb0] sm:$0xf]
          %v847 = vld [vmem:[#allocation8 + $0xb4] sm:$0xff]
          %v848 = vld [vmem:[#allocation8 + $0xbc] sm:$0xf]
          %v849 = vld [vmem:[%s5] sm:$0x7]
          %v851 = vlaneseq
          %v852 = vshrl.u32 %v851, 7
          %v853 = vsub.s32 0, %v852
          %v854 = vrot.slane %v849, %v853
          %v855 = vlaneseq
          %v856 = vshrl.u32 %v855, 7
          %v857 = vsub.s32 1, %v856
          %v858 = vrot.slane %v849, %v857
          %v859 = vlaneseq
          %v860 = vshrl.u32 %v859, 7
          %v861 = vsub.s32 2, %v860
          %v862 = vrot.slane %v849, %v861
          %v898 = vunpack.c.l.b16 %v817
          %v899 = vunpack.c.h.b16 %v817
          %v900 = vunpack.c.l.b16 %v818
          %v901 = vunpack.c.l.b16 %v819
          %v902 = vunpack.c.h.b16 %v819
          %v903 = vunpack.c.l.b16 %v820
          %v904 = vunpack.c.l.b16 %v821
          %v905 = vunpack.c.h.b16 %v821
          %v906 = vunpack.c.l.b16 %v822
          %v907 = vunpack.c.l.b16 %v823
          %v908 = vunpack.c.h.b16 %v823
          %v909 = vunpack.c.l.b16 %v824
          %v910 = vunpack.c.l.b16 %v825
          %v911 = vunpack.c.h.b16 %v825
          %v912 = vunpack.c.l.b16 %v826
          %v913 = vunpack.c.l.b16 %v827
          %v914 = vunpack.c.h.b16 %v827
          %v915 = vunpack.c.l.b16 %v828
          %v916 = vunpack.c.l.b16 %v829
          %v917 = vunpack.c.h.b16 %v829
          %v918 = vunpack.c.l.b16 %v830
          %v919 = vunpack.c.l.b16 %v831
          %v920 = vunpack.c.h.b16 %v831
          %v921 = vunpack.c.l.b16 %v832
          %v922 = vunpack.c.l.b16 %v833
          %v923 = vunpack.c.h.b16 %v833
          %v924 = vunpack.c.l.b16 %v834
          %v925 = vunpack.c.l.b16 %v835
          %v926 = vunpack.c.h.b16 %v835
          %v927 = vunpack.c.l.b16 %v836
          %v928 = vunpack.c.l.b16 %v837
          %v929 = vunpack.c.h.b16 %v837
          %v930 = vunpack.c.l.b16 %v838
          %v931 = vunpack.c.l.b16 %v839
          %v932 = vunpack.c.h.b16 %v839
          %v933 = vunpack.c.l.b16 %v840
          %v934 = vunpack.c.l.b16 %v841
          %v935 = vunpack.c.h.b16 %v841
          %v936 = vunpack.c.l.b16 %v842
          %v937 = vunpack.c.l.b16 %v843
          %v938 = vunpack.c.h.b16 %v843
          %v939 = vunpack.c.l.b16 %v844
          %v940 = vunpack.c.l.b16 %v845
          %v941 = vunpack.c.h.b16 %v845
          %v942 = vunpack.c.l.b16 %v846
          %v943 = vunpack.c.l.b16 %v847
          %v944 = vunpack.c.h.b16 %v847
          %v945 = vunpack.c.l.b16 %v848
          %v946 = vpack.c.b16 %v901, %v898
          %v947 = vpack.c.b16 %v902, %v899
          %v948 = vpack.c.b16 %v903, %v900
          %v949 = vpack.c.b16 %v907, %v904
          %v950 = vpack.c.b16 %v908, %v905
          %v951 = vpack.c.b16 %v909, %v906
          %v952 = vpack.c.b16 %v913, %v910
          %v953 = vpack.c.b16 %v914, %v911
          %v954 = vpack.c.b16 %v915, %v912
          %v955 = vpack.c.b16 %v919, %v916
          %v956 = vpack.c.b16 %v920, %v917
          %v957 = vpack.c.b16 %v921, %v918
          %v958 = vpack.c.b16 %v925, %v922
          %v959 = vpack.c.b16 %v926, %v923
          %v960 = vpack.c.b16 %v927, %v924
          %v961 = vpack.c.b16 %v931, %v928
          %v962 = vpack.c.b16 %v932, %v929
          %v963 = vpack.c.b16 %v933, %v930
          %v964 = vpack.c.b16 %v937, %v934
          %v965 = vpack.c.b16 %v938, %v935
          %v966 = vpack.c.b16 %v939, %v936
          %v967 = vpack.c.b16 %v943, %v940
          %v968 = vpack.c.b16 %v944, %v941
          %v969 = vpack.c.b16 %v945, %v942
          %994 = vmatprep.subr.bf16.mxu0 %v968
          %995 = vmatpush1.bf16.msra.mxu0 %v967
          %996 = vmatprep.subr.bf16.mxu0 %v965
          %997 = vmatpush1.bf16.msra.mxu0 %v964
          %998 = vmatprep.subr.bf16.mxu0 %v962
          %999 = vmatpush1.bf16.msra.mxu0 %v961
          %1000 = vmatprep.subr.bf16.mxu0 %v959
          %1001 = vmatpush1.bf16.msra.mxu0 %v958
          %1002 = vmatprep.subr.bf16.mxu0 %v956
          %1003 = vmatpush1.bf16.msra.mxu0 %v955
          %1004 = vmatprep.subr.bf16.mxu0 %v953
          %1005 = vmatpush1.bf16.msra.mxu0 %v952
          %1006 = vmatprep.subr.bf16.mxu0 %v950
          %1007 = vmatpush1.bf16.msra.mxu0 %v949
          %1008 = vmatprep.subr.bf16.mxu0 %v947
          %1009 = vmatpush1.bf16.msra.mxu0 %v946
          %1010 = vmatprep.subr.bf16.mxu0 0
          %1011 = vmatpush2.bf16.msra.mxu0 0
          %1012 = vmatprep.subr.bf16.mxu0 0
          %1013 = vmatpush2.bf16.msra.mxu0 0
          %1014 = vmatprep.subr.bf16.mxu0 0
          %1015 = vmatpush2.bf16.msra.mxu0 0
          %1016 = vmatprep.subr.bf16.mxu0 0
          %1017 = vmatpush2.bf16.msra.mxu0 0
          %1018 = vmatprep.subr.bf16.mxu0 0
          %1019 = vmatpush2.bf16.msra.mxu0 0
          %1020 = vmatprep.subr.bf16.mxu0 0
          %1021 = vmatpush2.bf16.msra.mxu0 0
          %1022 = vmatprep.subr.bf16.mxu0 0
          %1023 = vmatpush2.bf16.msra.mxu0 0
          %1024 = vmatprep.subr.bf16.mxu0 0
          %1025 = vmatpush2.bf16.msra.mxu0 0
          %1026 = vmatprep.mubr.bf16.mxu0 0
          %1027 = vmatmul.mubr.bf16.gmra.mxu0 %v801
          %v1028 = vpop.f32.mrf.mxu0
          %v1029 = vadd.f32 %v854, %v1028
          %v1030 = vpop.f32.mrf.mxu0
          %v1031 = vadd.f32 %v858, %v1030
          %v1032 = vpop.f32.mrf.mxu0
          %v1033 = vadd.f32 %v854, %v1032
          %v1034 = vpop.f32.mrf.mxu0
          %v1035 = vadd.f32 %v858, %v1034
          %1036 = vmatprep.mubr.bf16.mxu0 0
          %1037 = vmatmul.mubr.bf16.gmra.mxu0 %v802
          %v1038 = vpop.f32.mrf.mxu0
          %v1039 = vadd.f32 %v854, %v1038
          %v1040 = vpop.f32.mrf.mxu0
          %v1041 = vadd.f32 %v858, %v1040
          %v1042 = vpop.f32.mrf.mxu0
          %v1043 = vadd.f32 %v854, %v1042
          %v1044 = vpop.f32.mrf.mxu0
          %v1045 = vadd.f32 %v858, %v1044
          %1046 = vmatprep.mubr.bf16.mxu0 0
          %1047 = vmatmul.mubr.bf16.gmra.mxu0 %v803
          %v1048 = vpop.f32.mrf.mxu0
          %v1049 = vadd.f32 %v854, %v1048
          %v1050 = vpop.f32.mrf.mxu0
          %v1051 = vadd.f32 %v858, %v1050
          %v1052 = vpop.f32.mrf.mxu0
          %v1053 = vadd.f32 %v854, %v1052
          %v1054 = vpop.f32.mrf.mxu0
          %v1055 = vadd.f32 %v858, %v1054
          %1056 = vmatprep.mubr.bf16.mxu0 0
          %1057 = vmatmul.mubr.bf16.gmra.mxu0 %v804
          %v1058 = vpop.f32.mrf.mxu0
          %v1059 = vadd.f32 %v854, %v1058
          %v1060 = vpop.f32.mrf.mxu0
          %v1061 = vadd.f32 %v858, %v1060
          %v1062 = vpop.f32.mrf.mxu0
          %v1063 = vadd.f32 %v854, %v1062
          %v1064 = vpop.f32.mrf.mxu0
          %v1065 = vadd.f32 %v858, %v1064
          %1066 = vmatprep.mubr.bf16.mxu0 0
          %1067 = vmatmul.mubr.bf16.gmra.mxu0 %v805
          %v1068 = vpop.f32.mrf.mxu0
          %v1069 = vadd.f32 %v854, %v1068
          %v1070 = vpop.f32.mrf.mxu0
          %v1071 = vadd.f32 %v858, %v1070
          %v1072 = vpop.f32.mrf.mxu0
          %v1073 = vadd.f32 %v854, %v1072
          %v1074 = vpop.f32.mrf.mxu0
          %v1075 = vadd.f32 %v858, %v1074
          %1076 = vmatprep.mubr.bf16.mxu0 0
          %1077 = vmatmul.mubr.bf16.gmra.mxu0 %v806
          %v1078 = vpop.f32.mrf.mxu0
          %v1079 = vadd.f32 %v854, %v1078
          %v1080 = vpop.f32.mrf.mxu0
          %v1081 = vadd.f32 %v858, %v1080
          %v1082 = vpop.f32.mrf.mxu0
          %v1083 = vadd.f32 %v854, %v1082
          %v1084 = vpop.f32.mrf.mxu0
          %v1085 = vadd.f32 %v858, %v1084
          %1086 = vmatprep.mubr.bf16.mxu0 0
          %1087 = vmatmul.mubr.bf16.gmra.mxu0 %v807
          %v1088 = vpop.f32.mrf.mxu0
          %v1089 = vadd.f32 %v854, %v1088
          %v1090 = vpop.f32.mrf.mxu0
          %v1091 = vadd.f32 %v858, %v1090
          %v1092 = vpop.f32.mrf.mxu0
          %v1093 = vadd.f32 %v854, %v1092
          %v1094 = vpop.f32.mrf.mxu0
          %v1095 = vadd.f32 %v858, %v1094
          %1096 = vmatprep.mubr.bf16.mxu0 0
          %1097 = vmatmul.mubr.bf16.gmra.mxu0 %v808
          %v1098 = vpop.f32.mrf.mxu0
          %v1099 = vadd.f32 %v854, %v1098
          %v1100 = vpop.f32.mrf.mxu0
          %v1101 = vadd.f32 %v858, %v1100
          %v1102 = vpop.f32.mrf.mxu0
          %v1103 = vadd.f32 %v854, %v1102
          %v1104 = vpop.f32.mrf.mxu0
          %v1105 = vadd.f32 %v858, %v1104
          %1106 = vmatprep.mubr.bf16.mxu0 0
          %1107 = vmatmul.mubr.bf16.gmra.mxu0 %v809
          %v1108 = vpop.f32.mrf.mxu0
          %v1109 = vadd.f32 %v854, %v1108
          %v1110 = vpop.f32.mrf.mxu0
          %v1111 = vadd.f32 %v858, %v1110
          %v1112 = vpop.f32.mrf.mxu0
          %v1113 = vadd.f32 %v854, %v1112
          %v1114 = vpop.f32.mrf.mxu0
          %v1115 = vadd.f32 %v858, %v1114
          %1116 = vmatprep.mubr.bf16.mxu0 0
          %1117 = vmatmul.mubr.bf16.gmra.mxu0 %v810
          %v1118 = vpop.f32.mrf.mxu0
          %v1119 = vadd.f32 %v854, %v1118
          %v1120 = vpop.f32.mrf.mxu0
          %v1121 = vadd.f32 %v858, %v1120
          %v1122 = vpop.f32.mrf.mxu0
          %v1123 = vadd.f32 %v854, %v1122
          %v1124 = vpop.f32.mrf.mxu0
          %v1125 = vadd.f32 %v858, %v1124
          %1126 = vmatprep.mubr.bf16.mxu0 0
          %1127 = vmatmul.mubr.bf16.gmra.mxu0 %v811
          %v1128 = vpop.f32.mrf.mxu0
          %v1129 = vadd.f32 %v854, %v1128
          %v1130 = vpop.f32.mrf.mxu0
          %v1131 = vadd.f32 %v858, %v1130
          %v1132 = vpop.f32.mrf.mxu0
          %v1133 = vadd.f32 %v854, %v1132
          %v1134 = vpop.f32.mrf.mxu0
          %v1135 = vadd.f32 %v858, %v1134
          %1136 = vmatprep.mubr.bf16.mxu0 0
          %1137 = vmatmul.mubr.bf16.gmra.mxu0 %v812
          %v1138 = vpop.f32.mrf.mxu0
          %v1139 = vadd.f32 %v854, %v1138
          %v1140 = vpop.f32.mrf.mxu0
          %v1141 = vadd.f32 %v858, %v1140
          %v1142 = vpop.f32.mrf.mxu0
          %v1143 = vadd.f32 %v854, %v1142
          %v1144 = vpop.f32.mrf.mxu0
          %v1145 = vadd.f32 %v858, %v1144
          %1146 = vmatprep.mubr.bf16.mxu0 0
          %1147 = vmatmul.mubr.bf16.gmra.mxu0 %v813
          %v1148 = vpop.f32.mrf.mxu0
          %v1149 = vadd.f32 %v854, %v1148
          %v1150 = vpop.f32.mrf.mxu0
          %v1151 = vadd.f32 %v858, %v1150
          %v1152 = vpop.f32.mrf.mxu0
          %v1153 = vadd.f32 %v854, %v1152
          %v1154 = vpop.f32.mrf.mxu0
          %v1155 = vadd.f32 %v858, %v1154
          %1156 = vmatprep.mubr.bf16.mxu0 0
          %1157 = vmatmul.mubr.bf16.gmra.mxu0 %v814
          %v1158 = vpop.f32.mrf.mxu0
          %v1159 = vadd.f32 %v854, %v1158
          %v1160 = vpop.f32.mrf.mxu0
          %v1161 = vadd.f32 %v858, %v1160
          %v1162 = vpop.f32.mrf.mxu0
          %v1163 = vadd.f32 %v854, %v1162
          %v1164 = vpop.f32.mrf.mxu0
          %v1165 = vadd.f32 %v858, %v1164
          %1166 = vmatprep.mubr.bf16.mxu0 0
          %1167 = vmatmul.mubr.bf16.gmra.mxu0 %v815
          %v1168 = vpop.f32.mrf.mxu0
          %v1169 = vadd.f32 %v854, %v1168
          %v1170 = vpop.f32.mrf.mxu0
          %v1171 = vadd.f32 %v858, %v1170
          %v1172 = vpop.f32.mrf.mxu0
          %v1173 = vadd.f32 %v854, %v1172
          %v1174 = vpop.f32.mrf.mxu0
          %v1175 = vadd.f32 %v858, %v1174
          %1176 = vmatprep.mubr.bf16.mxu0 0
          %1177 = vmatmul.mubr.bf16.gmra.mxu0 %v816
          %v1178 = vpop.f32.mrf.mxu0
          %v1179 = vadd.f32 %v854, %v1178
          %v1180 = vpop.f32.mrf.mxu0
          %v1181 = vadd.f32 %v858, %v1180
          %v1182 = vpop.f32.mrf.mxu0
          %v1183 = vadd.f32 %v854, %v1182
          %v1184 = vpop.f32.mrf.mxu0
          %v1185 = vadd.f32 %v858, %v1184
          %1186 = vdwg.mxu0
          %1187 = vmatprep.subr.bf16.mxu0 0
          %1188 = vmatpush1.bf16.msra.mxu0 %v969
          %1189 = vmatprep.subr.bf16.mxu0 0
          %1190 = vmatpush1.bf16.msra.mxu0 %v966
          %1191 = vmatprep.subr.bf16.mxu0 0
          %1192 = vmatpush1.bf16.msra.mxu0 %v963
          %1193 = vmatprep.subr.bf16.mxu0 0
          %1194 = vmatpush1.bf16.msra.mxu0 %v960
          %1195 = vmatprep.subr.bf16.mxu0 0
          %1196 = vmatpush1.bf16.msra.mxu0 %v957
          %1197 = vmatprep.subr.bf16.mxu0 0
          %1198 = vmatpush1.bf16.msra.mxu0 %v954
          %1199 = vmatprep.subr.bf16.mxu0 0
          %1200 = vmatpush1.bf16.msra.mxu0 %v951
          %1201 = vmatprep.subr.bf16.mxu0 0
          %1202 = vmatpush1.bf16.msra.mxu0 %v948
          %1203 = vmatprep.subr.bf16.mxu0 0
          %1204 = vmatpush2.bf16.msra.mxu0 0
          %1205 = vmatprep.subr.bf16.mxu0 0
          %1206 = vmatpush2.bf16.msra.mxu0 0
          %1207 = vmatprep.subr.bf16.mxu0 0
          %1208 = vmatpush2.bf16.msra.mxu0 0
          %1209 = vmatprep.subr.bf16.mxu0 0
          %1210 = vmatpush2.bf16.msra.mxu0 0
          %1211 = vmatprep.subr.bf16.mxu0 0
          %1212 = vmatpush2.bf16.msra.mxu0 0
          %1213 = vmatprep.subr.bf16.mxu0 0
          %1214 = vmatpush2.bf16.msra.mxu0 0
          %1215 = vmatprep.subr.bf16.mxu0 0
          %1216 = vmatpush2.bf16.msra.mxu0 0
          %1217 = vmatprep.subr.bf16.mxu0 0
          %1218 = vmatpush2.bf16.msra.mxu0 0
          %1219 = vmatprep.mubr.bf16.mxu0 0
          %1220 = vmatmul.mubr.bf16.gmra.mxu0 %v801
          %v1221 = vpop.f32.mrf.mxu0
          %v1222 = vadd.f32 %v862, %v1221
          %v1223 = vpop.f32.mrf.mxu0
          %v1224 = vpop.f32.mrf.mxu0
          %v1225 = vadd.f32 %v862, %v1224
          %v1226 = vpop.f32.mrf.mxu0
          %1227 = vmatprep.mubr.bf16.mxu0 0
          %1228 = vmatmul.mubr.bf16.gmra.mxu0 %v802
          %v1229 = vpop.f32.mrf.mxu0
          %v1230 = vadd.f32 %v862, %v1229
          %v1231 = vpop.f32.mrf.mxu0
          %v1232 = vpop.f32.mrf.mxu0
          %v1233 = vadd.f32 %v862, %v1232
          %v1234 = vpop.f32.mrf.mxu0
          %1235 = vmatprep.mubr.bf16.mxu0 0
          %1236 = vmatmul.mubr.bf16.gmra.mxu0 %v803
          %v1237 = vpop.f32.mrf.mxu0
          %v1238 = vadd.f32 %v862, %v1237
          %v1239 = vpop.f32.mrf.mxu0
          %v1240 = vpop.f32.mrf.mxu0
          %v1241 = vadd.f32 %v862, %v1240
          %v1242 = vpop.f32.mrf.mxu0
          %1243 = vmatprep.mubr.bf16.mxu0 0
          %1244 = vmatmul.mubr.bf16.gmra.mxu0 %v804
          %v1245 = vpop.f32.mrf.mxu0
          %v1246 = vadd.f32 %v862, %v1245
          %v1247 = vpop.f32.mrf.mxu0
          %v1248 = vpop.f32.mrf.mxu0
          %v1249 = vadd.f32 %v862, %v1248
          %v1250 = vpop.f32.mrf.mxu0
          %1251 = vmatprep.mubr.bf16.mxu0 0
          %1252 = vmatmul.mubr.bf16.gmra.mxu0 %v805
          %v1253 = vpop.f32.mrf.mxu0
          %v1254 = vadd.f32 %v862, %v1253
          %v1255 = vpop.f32.mrf.mxu0
          %v1256 = vpop.f32.mrf.mxu0
          %v1257 = vadd.f32 %v862, %v1256
          %v1258 = vpop.f32.mrf.mxu0
          %1259 = vmatprep.mubr.bf16.mxu0 0
          %1260 = vmatmul.mubr.bf16.gmra.mxu0 %v806
          %v1261 = vpop.f32.mrf.mxu0
          %v1262 = vadd.f32 %v862, %v1261
          %v1263 = vpop.f32.mrf.mxu0
          %v1264 = vpop.f32.mrf.mxu0
          %v1265 = vadd.f32 %v862, %v1264
          %v1266 = vpop.f32.mrf.mxu0
          %1267 = vmatprep.mubr.bf16.mxu0 0
          %1268 = vmatmul.mubr.bf16.gmra.mxu0 %v807
          %v1269 = vpop.f32.mrf.mxu0
          %v1270 = vadd.f32 %v862, %v1269
          %v1271 = vpop.f32.mrf.mxu0
          %v1272 = vpop.f32.mrf.mxu0
          %v1273 = vadd.f32 %v862, %v1272
          %v1274 = vpop.f32.mrf.mxu0
          %1275 = vmatprep.mubr.bf16.mxu0 0
          %1276 = vmatmul.mubr.bf16.gmra.mxu0 %v808
          %v1277 = vpop.f32.mrf.mxu0
          %v1278 = vadd.f32 %v862, %v1277
          %v1279 = vpop.f32.mrf.mxu0
          %v1280 = vpop.f32.mrf.mxu0
          %v1281 = vadd.f32 %v862, %v1280
          %v1282 = vpop.f32.mrf.mxu0
          %1283 = vmatprep.mubr.bf16.mxu0 0
          %1284 = vmatmul.mubr.bf16.gmra.mxu0 %v809
          %v1285 = vpop.f32.mrf.mxu0
          %v1286 = vadd.f32 %v862, %v1285
          %v1287 = vpop.f32.mrf.mxu0
          %v1288 = vpop.f32.mrf.mxu0
          %v1289 = vadd.f32 %v862, %v1288
          %v1290 = vpop.f32.mrf.mxu0
          %1291 = vmatprep.mubr.bf16.mxu0 0
          %1292 = vmatmul.mubr.bf16.gmra.mxu0 %v810
          %v1293 = vpop.f32.mrf.mxu0
          %v1294 = vadd.f32 %v862, %v1293
          %v1295 = vpop.f32.mrf.mxu0
          %v1296 = vpop.f32.mrf.mxu0
          %v1297 = vadd.f32 %v862, %v1296
          %v1298 = vpop.f32.mrf.mxu0
          %1299 = vmatprep.mubr.bf16.mxu0 0
          %1300 = vmatmul.mubr.bf16.gmra.mxu0 %v811
          %v1301 = vpop.f32.mrf.mxu0
          %v1302 = vadd.f32 %v862, %v1301
          %v1303 = vpop.f32.mrf.mxu0
          %v1304 = vpop.f32.mrf.mxu0
          %v1305 = vadd.f32 %v862, %v1304
          %v1306 = vpop.f32.mrf.mxu0
          %1307 = vmatprep.mubr.bf16.mxu0 0
          %1308 = vmatmul.mubr.bf16.gmra.mxu0 %v812
          %v1309 = vpop.f32.mrf.mxu0
          %v1310 = vadd.f32 %v862, %v1309
          %v1311 = vpop.f32.mrf.mxu0
          %v1312 = vpop.f32.mrf.mxu0
          %v1313 = vadd.f32 %v862, %v1312
          %v1314 = vpop.f32.mrf.mxu0
          %1315 = vmatprep.mubr.bf16.mxu0 0
          %1316 = vmatmul.mubr.bf16.gmra.mxu0 %v813
          %v1317 = vpop.f32.mrf.mxu0
          %v1318 = vadd.f32 %v862, %v1317
          %v1319 = vpop.f32.mrf.mxu0
          %v1320 = vpop.f32.mrf.mxu0
          %v1321 = vadd.f32 %v862, %v1320
          %v1322 = vpop.f32.mrf.mxu0
          %1323 = vmatprep.mubr.bf16.mxu0 0
          %1324 = vmatmul.mubr.bf16.gmra.mxu0 %v814
          %v1325 = vpop.f32.mrf.mxu0
          %v1326 = vadd.f32 %v862, %v1325
          %v1327 = vpop.f32.mrf.mxu0
          %v1328 = vpop.f32.mrf.mxu0
          %v1329 = vadd.f32 %v862, %v1328
          %v1330 = vpop.f32.mrf.mxu0
          %1331 = vmatprep.mubr.bf16.mxu0 0
          %1332 = vmatmul.mubr.bf16.gmra.mxu0 %v815
          %v1333 = vpop.f32.mrf.mxu0
          %v1334 = vadd.f32 %v862, %v1333
          %v1335 = vpop.f32.mrf.mxu0
          %v1336 = vpop.f32.mrf.mxu0
          %v1337 = vadd.f32 %v862, %v1336
          %v1338 = vpop.f32.mrf.mxu0
          %1339 = vmatprep.mubr.bf16.mxu0 0
          %1340 = vmatmul.mubr.bf16.gmra.mxu0 %v816
          %v1341 = vpop.f32.mrf.mxu0
          %v1342 = vadd.f32 %v862, %v1341
          %v1343 = vpop.f32.mrf.mxu0
          %v1344 = vpop.f32.mrf.mxu0
          %v1345 = vadd.f32 %v862, %v1344
          %v1346 = vpop.f32.mrf.mxu0
          %1347 = vdwg.mxu0
          %v1348 = vpack.c.bf16 %v1033, %v1029
          %v1349 = vpack.c.bf16 %v1035, %v1031
          %v1350 = vpack.c.bf16 %v1225, %v1222
          %v1351 = vpack.c.bf16 %v1043, %v1039
          %v1352 = vpack.c.bf16 %v1045, %v1041
          %v1353 = vpack.c.bf16 %v1233, %v1230
          %v1354 = vpack.c.bf16 %v1053, %v1049
          %v1355 = vpack.c.bf16 %v1055, %v1051
          %v1356 = vpack.c.bf16 %v1241, %v1238
          %v1357 = vpack.c.bf16 %v1063, %v1059
          %v1358 = vpack.c.bf16 %v1065, %v1061
          %v1359 = vpack.c.bf16 %v1249, %v1246
          %v1360 = vpack.c.bf16 %v1073, %v1069
          %v1361 = vpack.c.bf16 %v1075, %v1071
          %v1362 = vpack.c.bf16 %v1257, %v1254
          %v1363 = vpack.c.bf16 %v1083, %v1079
          %v1364 = vpack.c.bf16 %v1085, %v1081
          %v1365 = vpack.c.bf16 %v1265, %v1262
          %v1366 = vpack.c.bf16 %v1093, %v1089
          %v1367 = vpack.c.bf16 %v1095, %v1091
          %v1368 = vpack.c.bf16 %v1273, %v1270
          %v1369 = vpack.c.bf16 %v1103, %v1099
          %v1370 = vpack.c.bf16 %v1105, %v1101
          %v1371 = vpack.c.bf16 %v1281, %v1278
          %v1372 = vpack.c.bf16 %v1113, %v1109
          %v1373 = vpack.c.bf16 %v1115, %v1111
          %v1374 = vpack.c.bf16 %v1289, %v1286
          %v1375 = vpack.c.bf16 %v1123, %v1119
          %v1376 = vpack.c.bf16 %v1125, %v1121
          %v1377 = vpack.c.bf16 %v1297, %v1294
          %v1378 = vpack.c.bf16 %v1133, %v1129
          %v1379 = vpack.c.bf16 %v1135, %v1131
          %v1380 = vpack.c.bf16 %v1305, %v1302
          %v1381 = vpack.c.bf16 %v1143, %v1139
          %v1382 = vpack.c.bf16 %v1145, %v1141
          %v1383 = vpack.c.bf16 %v1313, %v1310
          %v1384 = vpack.c.bf16 %v1153, %v1149
          %v1385 = vpack.c.bf16 %v1155, %v1151
          %v1386 = vpack.c.bf16 %v1321, %v1318
          %v1387 = vpack.c.bf16 %v1163, %v1159
          %v1388 = vpack.c.bf16 %v1165, %v1161
          %v1389 = vpack.c.bf16 %v1329, %v1326
          %v1390 = vpack.c.bf16 %v1173, %v1169
          %v1391 = vpack.c.bf16 %v1175, %v1171
          %v1392 = vpack.c.bf16 %v1337, %v1334
          %v1393 = vpack.c.bf16 %v1183, %v1179
          %v1394 = vpack.c.bf16 %v1185, %v1181
          %v1395 = vpack.c.bf16 %v1345, %v1342
          %v1444 = vunpack.c.l.b16 %v1348
          %v1445 = vunpack.c.l.b16 %v1349
          %v1446 = vunpack.c.l.b16 %v1350
          %v1447 = vunpack.c.h.b16 %v1348
          %v1448 = vunpack.c.h.b16 %v1349
          %v1449 = vunpack.c.h.b16 %v1350
          %v1450 = vunpack.c.l.b16 %v1351
          %v1451 = vunpack.c.l.b16 %v1352
          %v1452 = vunpack.c.l.b16 %v1353
          %v1453 = vunpack.c.h.b16 %v1351
          %v1454 = vunpack.c.h.b16 %v1352
          %v1455 = vunpack.c.h.b16 %v1353
          %v1456 = vunpack.c.l.b16 %v1354
          %v1457 = vunpack.c.l.b16 %v1355
          %v1458 = vunpack.c.l.b16 %v1356
          %v1459 = vunpack.c.h.b16 %v1354
          %v1460 = vunpack.c.h.b16 %v1355
          %v1461 = vunpack.c.h.b16 %v1356
          %v1462 = vunpack.c.l.b16 %v1357
          %v1463 = vunpack.c.l.b16 %v1358
          %v1464 = vunpack.c.l.b16 %v1359
          %v1465 = vunpack.c.h.b16 %v1357
          %v1466 = vunpack.c.h.b16 %v1358
          %v1467 = vunpack.c.h.b16 %v1359
          %v1468 = vunpack.c.l.b16 %v1360
          %v1469 = vunpack.c.l.b16 %v1361
          %v1470 = vunpack.c.l.b16 %v1362
          %v1471 = vunpack.c.h.b16 %v1360
          %v1472 = vunpack.c.h.b16 %v1361
          %v1473 = vunpack.c.h.b16 %v1362
          %v1474 = vunpack.c.l.b16 %v1363
          %v1475 = vunpack.c.l.b16 %v1364
          %v1476 = vunpack.c.l.b16 %v1365
          %v1477 = vunpack.c.h.b16 %v1363
          %v1478 = vunpack.c.h.b16 %v1364
          %v1479 = vunpack.c.h.b16 %v1365
          %v1480 = vunpack.c.l.b16 %v1366
          %v1481 = vunpack.c.l.b16 %v1367
          %v1482 = vunpack.c.l.b16 %v1368
          %v1483 = vunpack.c.h.b16 %v1366
          %v1484 = vunpack.c.h.b16 %v1367
          %v1485 = vunpack.c.h.b16 %v1368
          %v1486 = vunpack.c.l.b16 %v1369
          %v1487 = vunpack.c.l.b16 %v1370
          %v1488 = vunpack.c.l.b16 %v1371
          %v1489 = vunpack.c.h.b16 %v1369
          %v1490 = vunpack.c.h.b16 %v1370
          %v1491 = vunpack.c.h.b16 %v1371
          %v1492 = vunpack.c.l.b16 %v1372
          %v1493 = vunpack.c.l.b16 %v1373
          %v1494 = vunpack.c.l.b16 %v1374
          %v1495 = vunpack.c.h.b16 %v1372
          %v1496 = vunpack.c.h.b16 %v1373
          %v1497 = vunpack.c.h.b16 %v1374
          %v1498 = vunpack.c.l.b16 %v1375
          %v1499 = vunpack.c.l.b16 %v1376
          %v1500 = vunpack.c.l.b16 %v1377
          %v1501 = vunpack.c.h.b16 %v1375
          %v1502 = vunpack.c.h.b16 %v1376
          %v1503 = vunpack.c.h.b16 %v1377
          %v1504 = vunpack.c.l.b16 %v1378
          %v1505 = vunpack.c.l.b16 %v1379
          %v1506 = vunpack.c.l.b16 %v1380
          %v1507 = vunpack.c.h.b16 %v1378
          %v1508 = vunpack.c.h.b16 %v1379
          %v1509 = vunpack.c.h.b16 %v1380
          %v1510 = vunpack.c.l.b16 %v1381
          %v1511 = vunpack.c.l.b16 %v1382
          %v1512 = vunpack.c.l.b16 %v1383
          %v1513 = vunpack.c.h.b16 %v1381
          %v1514 = vunpack.c.h.b16 %v1382
          %v1515 = vunpack.c.h.b16 %v1383
          %v1516 = vunpack.c.l.b16 %v1384
          %v1517 = vunpack.c.l.b16 %v1385
          %v1518 = vunpack.c.l.b16 %v1386
          %v1519 = vunpack.c.h.b16 %v1384
          %v1520 = vunpack.c.h.b16 %v1385
          %v1521 = vunpack.c.h.b16 %v1386
          %v1522 = vunpack.c.l.b16 %v1387
          %v1523 = vunpack.c.l.b16 %v1388
          %v1524 = vunpack.c.l.b16 %v1389
          %v1525 = vunpack.c.h.b16 %v1387
          %v1526 = vunpack.c.h.b16 %v1388
          %v1527 = vunpack.c.h.b16 %v1389
          %v1528 = vunpack.c.l.b16 %v1390
          %v1529 = vunpack.c.l.b16 %v1391
          %v1530 = vunpack.c.l.b16 %v1392
          %v1531 = vunpack.c.h.b16 %v1390
          %v1532 = vunpack.c.h.b16 %v1391
          %v1533 = vunpack.c.h.b16 %v1392
          %v1534 = vunpack.c.l.b16 %v1393
          %v1535 = vunpack.c.l.b16 %v1394
          %v1536 = vunpack.c.l.b16 %v1395
          %v1537 = vunpack.c.h.b16 %v1393
          %v1538 = vunpack.c.h.b16 %v1394
          %v1539 = vunpack.c.h.b16 %v1395
          %v1540 = vpack.c.b16 %v1445, %v1444
          %v1541 = vpack.c.b16 %v1446, %v1446
          %v1542 = vpack.c.b16 %v1448, %v1447
          %v1543 = vpack.c.b16 %v1449, %v1449
          %v1544 = vpack.c.b16 %v1451, %v1450
          %v1545 = vpack.c.b16 %v1452, %v1452
          %v1546 = vpack.c.b16 %v1454, %v1453
          %v1547 = vpack.c.b16 %v1455, %v1455
          %v1548 = vpack.c.b16 %v1457, %v1456
          %v1549 = vpack.c.b16 %v1458, %v1458
          %v1550 = vpack.c.b16 %v1460, %v1459
          %v1551 = vpack.c.b16 %v1461, %v1461
          %v1552 = vpack.c.b16 %v1463, %v1462
          %v1553 = vpack.c.b16 %v1464, %v1464
          %v1554 = vpack.c.b16 %v1466, %v1465
          %v1555 = vpack.c.b16 %v1467, %v1467
          %v1556 = vpack.c.b16 %v1469, %v1468
          %v1557 = vpack.c.b16 %v1470, %v1470
          %v1558 = vpack.c.b16 %v1472, %v1471
          %v1559 = vpack.c.b16 %v1473, %v1473
          %v1560 = vpack.c.b16 %v1475, %v1474
          %v1561 = vpack.c.b16 %v1476, %v1476
          %v1562 = vpack.c.b16 %v1478, %v1477
          %v1563 = vpack.c.b16 %v1479, %v1479
          %v1564 = vpack.c.b16 %v1481, %v1480
          %v1565 = vpack.c.b16 %v1482, %v1482
          %v1566 = vpack.c.b16 %v1484, %v1483
          %v1567 = vpack.c.b16 %v1485, %v1485
          %v1568 = vpack.c.b16 %v1487, %v1486
          %v1569 = vpack.c.b16 %v1488, %v1488
          %v1570 = vpack.c.b16 %v1490, %v1489
          %v1571 = vpack.c.b16 %v1491, %v1491
          %v1572 = vpack.c.b16 %v1493, %v1492
          %v1573 = vpack.c.b16 %v1494, %v1494
          %v1574 = vpack.c.b16 %v1496, %v1495
          %v1575 = vpack.c.b16 %v1497, %v1497
          %v1576 = vpack.c.b16 %v1499, %v1498
          %v1577 = vpack.c.b16 %v1500, %v1500
          %v1578 = vpack.c.b16 %v1502, %v1501
          %v1579 = vpack.c.b16 %v1503, %v1503
          %v1580 = vpack.c.b16 %v1505, %v1504
          %v1581 = vpack.c.b16 %v1506, %v1506
          %v1582 = vpack.c.b16 %v1508, %v1507
          %v1583 = vpack.c.b16 %v1509, %v1509
          %v1584 = vpack.c.b16 %v1511, %v1510
          %v1585 = vpack.c.b16 %v1512, %v1512
          %v1586 = vpack.c.b16 %v1514, %v1513
          %v1587 = vpack.c.b16 %v1515, %v1515
          %v1588 = vpack.c.b16 %v1517, %v1516
          %v1589 = vpack.c.b16 %v1518, %v1518
          %v1590 = vpack.c.b16 %v1520, %v1519
          %v1591 = vpack.c.b16 %v1521, %v1521
          %v1592 = vpack.c.b16 %v1523, %v1522
          %v1593 = vpack.c.b16 %v1524, %v1524
          %v1594 = vpack.c.b16 %v1526, %v1525
          %v1595 = vpack.c.b16 %v1527, %v1527
          %v1596 = vpack.c.b16 %v1529, %v1528
          %v1597 = vpack.c.b16 %v1530, %v1530
          %v1598 = vpack.c.b16 %v1532, %v1531
          %v1599 = vpack.c.b16 %v1533, %v1533
          %v1600 = vpack.c.b16 %v1535, %v1534
          %v1601 = vpack.c.b16 %v1536, %v1536
          %v1602 = vpack.c.b16 %v1538, %v1537
          %v1603 = vpack.c.b16 %v1539, %v1539
          %1668 = vst [vmem:[#allocation2] sm:$0xff] %v1540
          %1669 = vst [vmem:[#allocation2 + $0x8] sm:$0xf] %v1541
          %1670 = vst [vmem:[#allocation2 + $0xc] sm:$0xff] %v1542
          %1671 = vst [vmem:[#allocation2 + $0x14] sm:$0xf] %v1543
          %1672 = vst [vmem:[#allocation2 + $0x18] sm:$0xff] %v1544
          %1673 = vst [vmem:[#allocation2 + $0x20] sm:$0xf] %v1545
          %1674 = vst [vmem:[#allocation2 + $0x24] sm:$0xff] %v1546
          %1675 = vst [vmem:[#allocation2 + $0x2c] sm:$0xf] %v1547
          %1676 = vst [vmem:[#allocation2 + $0x30] sm:$0xff] %v1548
          %1677 = vst [vmem:[#allocation2 + $0x38] sm:$0xf] %v1549
          %1678 = vst [vmem:[#allocation2 + $0x3c] sm:$0xff] %v1550
          %1679 = vst [vmem:[#allocation2 + $0x44] sm:$0xf] %v1551
          %1680 = vst [vmem:[#allocation2 + $0x48] sm:$0xff] %v1552
          %1681 = vst [vmem:[#allocation2 + $0x50] sm:$0xf] %v1553
          %1682 = vst [vmem:[#allocation2 + $0x54] sm:$0xff] %v1554
          %1683 = vst [vmem:[#allocation2 + $0x5c] sm:$0xf] %v1555
          %1684 = vst [vmem:[#allocation2 + $0x60] sm:$0xff] %v1556
          %1685 = vst [vmem:[#allocation2 + $0x68] sm:$0xf] %v1557
          %1686 = vst [vmem:[#allocation2 + $0x6c] sm:$0xff] %v1558
          %1687 = vst [vmem:[#allocation2 + $0x74] sm:$0xf] %v1559
          %1688 = vst [vmem:[#allocation2 + $0x78] sm:$0xff] %v1560
          %1689 = vst [vmem:[#allocation2 + $0x80] sm:$0xf] %v1561
          %1690 = vst [vmem:[#allocation2 + $0x84] sm:$0xff] %v1562
          %1691 = vst [vmem:[#allocation2 + $0x8c] sm:$0xf] %v1563
          %1692 = vst [vmem:[#allocation2 + $0x90] sm:$0xff] %v1564
          %1693 = vst [vmem:[#allocation2 + $0x98] sm:$0xf] %v1565
          %1694 = vst [vmem:[#allocation2 + $0x9c] sm:$0xff] %v1566
          %1695 = vst [vmem:[#allocation2 + $0xa4] sm:$0xf] %v1567
          %1696 = vst [vmem:[#allocation2 + $0xa8] sm:$0xff] %v1568
          %1697 = vst [vmem:[#allocation2 + $0xb0] sm:$0xf] %v1569
          %1698 = vst [vmem:[#allocation2 + $0xb4] sm:$0xff] %v1570
          %1699 = vst [vmem:[#allocation2 + $0xbc] sm:$0xf] %v1571
          %1700 = vst [vmem:[#allocation2 + $0xc0] sm:$0xff] %v1572
          %1701 = vst [vmem:[#allocation2 + $0xc8] sm:$0xf] %v1573
          %1702 = vst [vmem:[#allocation2 + $0xcc] sm:$0xff] %v1574
          %1703 = vst [vmem:[#allocation2 + $0xd4] sm:$0xf] %v1575
          %1704 = vst [vmem:[#allocation2 + $0xd8] sm:$0xff] %v1576
          %1705 = vst [vmem:[#allocation2 + $0xe0] sm:$0xf] %v1577
          %1706 = vst [vmem:[#allocation2 + $0xe4] sm:$0xff] %v1578
          %1707 = vst [vmem:[#allocation2 + $0xec] sm:$0xf] %v1579
          %1708 = vst [vmem:[#allocation2 + $0xf0] sm:$0xff] %v1580
          %1709 = vst [vmem:[#allocation2 + $0xf8] sm:$0xf] %v1581
          %1710 = vst [vmem:[#allocation2 + $0xfc] sm:$0xff] %v1582
          %1711 = vst [vmem:[#allocation2 + $0x104] sm:$0xf] %v1583
          %1712 = vst [vmem:[#allocation2 + $0x108] sm:$0xff] %v1584
          %1713 = vst [vmem:[#allocation2 + $0x110] sm:$0xf] %v1585
          %1714 = vst [vmem:[#allocation2 + $0x114] sm:$0xff] %v1586
          %1715 = vst [vmem:[#allocation2 + $0x11c] sm:$0xf] %v1587
          %1716 = vst [vmem:[#allocation2 + $0x120] sm:$0xff] %v1588
          %1717 = vst [vmem:[#allocation2 + $0x128] sm:$0xf] %v1589
          %1718 = vst [vmem:[#allocation2 + $0x12c] sm:$0xff] %v1590
          %1719 = vst [vmem:[#allocation2 + $0x134] sm:$0xf] %v1591
          %1720 = vst [vmem:[#allocation2 + $0x138] sm:$0xff] %v1592
          %1721 = vst [vmem:[#allocation2 + $0x140] sm:$0xf] %v1593
          %1722 = vst [vmem:[#allocation2 + $0x144] sm:$0xff] %v1594
          %1723 = vst [vmem:[#allocation2 + $0x14c] sm:$0xf] %v1595
          %1724 = vst [vmem:[#allocation2 + $0x150] sm:$0xff] %v1596
          %1725 = vst [vmem:[#allocation2 + $0x158] sm:$0xf] %v1597
          %1726 = vst [vmem:[#allocation2 + $0x15c] sm:$0xff] %v1598
          %1727 = vst [vmem:[#allocation2 + $0x164] sm:$0xf] %v1599
          %1728 = vst [vmem:[#allocation2 + $0x168] sm:$0xff] %v1600
          %1729 = vst [vmem:[#allocation2 + $0x170] sm:$0xf] %v1601
          %1730 = vst [vmem:[#allocation2 + $0x174] sm:$0xff] %v1602
          %1731 = vst [vmem:[#allocation2 + $0x17c] sm:$0xf] %v1603
        $region72: #{tpu_custom_call.1} parent=51 // pred_fallthru
          _
        %s1732 = smul.u32 %s32, 256
        %s1733 = sshra.s32 %s1732, 3
        %s1734 = sand.u32 %s1732, 7
        %s1735 = smul.u32 %s1733, 3
        %s1736 = smul.addr %s1735, 4
        %s1737 = scalar_lea.vmem [#allocation2], %s1736
        %v1738 = vld [vmem:[%s1737] sm:$0xf]
        %v1739 = vld [vmem:[%s1737 + $0xc] sm:$0xf]
        %v1740 = vld [vmem:[%s1737 + $0x18] sm:$0xf]
        %v1741 = vld [vmem:[%s1737 + $0x24] sm:$0xf]
        %v1742 = vld [vmem:[%s1737 + $0x30] sm:$0xf]
        %v1743 = vld [vmem:[%s1737 + $0x3c] sm:$0xf]
        %v1744 = vld [vmem:[%s1737 + $0x48] sm:$0xf]
        %v1745 = vld [vmem:[%s1737 + $0x54] sm:$0xf]
        %v1746 = vld [vmem:[%s1737 + $0x60] sm:$0xf]
        %v1747 = vld [vmem:[%s1737 + $0x6c] sm:$0xf]
        %v1748 = vld [vmem:[%s1737 + $0x78] sm:$0xf]
        %v1749 = vld [vmem:[%s1737 + $0x84] sm:$0xf]
        %v1750 = vld [vmem:[%s1737 + $0x90] sm:$0xf]
        %v1751 = vld [vmem:[%s1737 + $0x9c] sm:$0xf]
        %v1752 = vld [vmem:[%s1737 + $0xa8] sm:$0xf]
        %v1753 = vld [vmem:[%s1737 + $0xb4] sm:$0xf]
        %v1754 = vld [vmem:[%s1737 + $0xc0] sm:$0xf]
        %v1755 = vld [vmem:[%s1737 + $0xcc] sm:$0xf]
        %v1756 = vld [vmem:[%s1737 + $0xd8] sm:$0xf]
        %v1757 = vld [vmem:[%s1737 + $0xe4] sm:$0xf]
        %v1758 = vld [vmem:[%s1737 + $0xf0] sm:$0xf]
        %v1759 = vld [vmem:[%s1737 + $0xfc] sm:$0xf]
        %v1760 = vld [vmem:[%s1737 + $0x108] sm:$0xf]
        %v1761 = vld [vmem:[%s1737 + $0x114] sm:$0xf]
        %v1762 = vld [vmem:[%s1737 + $0x120] sm:$0xf]
        %v1763 = vld [vmem:[%s1737 + $0x12c] sm:$0xf]
        %v1764 = vld [vmem:[%s1737 + $0x138] sm:$0xf]
        %v1765 = vld [vmem:[%s1737 + $0x144] sm:$0xf]
        %v1766 = vld [vmem:[%s1737 + $0x150] sm:$0xf]
        %v1767 = vld [vmem:[%s1737 + $0x15c] sm:$0xf]
        %v1768 = vld [vmem:[%s1737 + $0x168] sm:$0xf]
        %v1769 = vld [vmem:[%s1737 + $0x174] sm:$0xf]
        %v1770 = vld [vmem:[#allocation2 + $0x4] sm:$0xf]
        %v1771 = vld [vmem:[#allocation2 + $0x10] sm:$0xf]
        %v1772 = vld [vmem:[#allocation2 + $0x1c] sm:$0xf]
        %v1773 = vld [vmem:[#allocation2 + $0x28] sm:$0xf]
        %v1774 = vld [vmem:[#allocation2 + $0x34] sm:$0xf]
        %v1775 = vld [vmem:[#allocation2 + $0x40] sm:$0xf]
        %v1776 = vld [vmem:[#allocation2 + $0x4c] sm:$0xf]
        %v1777 = vld [vmem:[#allocation2 + $0x58] sm:$0xf]
        %v1778 = vld [vmem:[#allocation2 + $0x64] sm:$0xf]
        %v1779 = vld [vmem:[#allocation2 + $0x70] sm:$0xf]
        %v1780 = vld [vmem:[#allocation2 + $0x7c] sm:$0xf]
        %v1781 = vld [vmem:[#allocation2 + $0x88] sm:$0xf]
        %v1782 = vld [vmem:[#allocation2 + $0x94] sm:$0xf]
        %v1783 = vld [vmem:[#allocation2 + $0xa0] sm:$0xf]
        %v1784 = vld [vmem:[#allocation2 + $0xac] sm:$0xf]
        %v1785 = vld [vmem:[#allocation2 + $0xb8] sm:$0xf]
        %v1786 = vld [vmem:[#allocation2 + $0xc4] sm:$0xf]
        %v1787 = vld [vmem:[#allocation2 + $0xd0] sm:$0xf]
        %v1788 = vld [vmem:[#allocation2 + $0xdc] sm:$0xf]
        %v1789 = vld [vmem:[#allocation2 + $0xe8] sm:$0xf]
        %v1790 = vld [vmem:[#allocation2 + $0xf4] sm:$0xf]
        %v1791 = vld [vmem:[#allocation2 + $0x100] sm:$0xf]
        %v1792 = vld [vmem:[#allocation2 + $0x10c] sm:$0xf]
        %v1793 = vld [vmem:[#allocation2 + $0x118] sm:$0xf]
        %v1794 = vld [vmem:[#allocation2 + $0x124] sm:$0xf]
        %v1795 = vld [vmem:[#allocation2 + $0x130] sm:$0xf]
        %v1796 = vld [vmem:[#allocation2 + $0x13c] sm:$0xf]
        %v1797 = vld [vmem:[#allocation2 + $0x148] sm:$0xf]
        %v1798 = vld [vmem:[#allocation2 + $0x154] sm:$0xf]
        %v1799 = vld [vmem:[#allocation2 + $0x160] sm:$0xf]
        %v1800 = vld [vmem:[#allocation2 + $0x16c] sm:$0xf]
        %v1801 = vld [vmem:[#allocation2 + $0x178] sm:$0xf]
        %v1802 = vld [vmem:[#allocation2 + $0x8] sm:$0xf]
        %v1803 = vld [vmem:[#allocation2 + $0x14] sm:$0xf]
        %v1804 = vld [vmem:[#allocation2 + $0x20] sm:$0xf]
        %v1805 = vld [vmem:[#allocation2 + $0x2c] sm:$0xf]
        %v1806 = vld [vmem:[#allocation2 + $0x38] sm:$0xf]
        %v1807 = vld [vmem:[#allocation2 + $0x44] sm:$0xf]
        %v1808 = vld [vmem:[#allocation2 + $0x50] sm:$0xf]
        %v1809 = vld [vmem:[#allocation2 + $0x5c] sm:$0xf]
        %v1810 = vld [vmem:[#allocation2 + $0x68] sm:$0xf]
        %v1811 = vld [vmem:[#allocation2 + $0x74] sm:$0xf]
        %v1812 = vld [vmem:[#allocation2 + $0x80] sm:$0xf]
        %v1813 = vld [vmem:[#allocation2 + $0x8c] sm:$0xf]
        %v1814 = vld [vmem:[#allocation2 + $0x98] sm:$0xf]
        %v1815 = vld [vmem:[#allocation2 + $0xa4] sm:$0xf]
        %v1816 = vld [vmem:[#allocation2 + $0xb0] sm:$0xf]
        %v1817 = vld [vmem:[#allocation2 + $0xbc] sm:$0xf]
        %v1818 = vld [vmem:[#allocation2 + $0xc8] sm:$0xf]
        %v1819 = vld [vmem:[#allocation2 + $0xd4] sm:$0xf]
        %v1820 = vld [vmem:[#allocation2 + $0xe0] sm:$0xf]
        %v1821 = vld [vmem:[#allocation2 + $0xec] sm:$0xf]
        %v1822 = vld [vmem:[#allocation2 + $0xf8] sm:$0xf]
        %v1823 = vld [vmem:[#allocation2 + $0x104] sm:$0xf]
        %v1824 = vld [vmem:[#allocation2 + $0x110] sm:$0xf]
        %v1825 = vld [vmem:[#allocation2 + $0x11c] sm:$0xf]
        %v1826 = vld [vmem:[#allocation2 + $0x128] sm:$0xf]
        %v1827 = vld [vmem:[#allocation2 + $0x134] sm:$0xf]
        %v1828 = vld [vmem:[#allocation2 + $0x140] sm:$0xf]
        %v1829 = vld [vmem:[#allocation2 + $0x14c] sm:$0xf]
        %v1830 = vld [vmem:[#allocation2 + $0x158] sm:$0xf]
        %v1831 = vld [vmem:[#allocation2 + $0x164] sm:$0xf]
        %v1832 = vld [vmem:[#allocation2 + $0x170] sm:$0xf]
        %v1833 = vld [vmem:[#allocation2 + $0x17c] sm:$0xf]
        %v1866 = vunpack.c.l.b16 %v1738
        %v1867 = vunpack.c.l.b16 %v1739
        %v1868 = vunpack.c.l.b16 %v1740
        %v1869 = vunpack.c.l.b16 %v1741
        %v1870 = vunpack.c.l.b16 %v1742
        %v1871 = vunpack.c.l.b16 %v1743
        %v1872 = vunpack.c.l.b16 %v1744
        %v1873 = vunpack.c.l.b16 %v1745
        %v1874 = vunpack.c.l.b16 %v1746
        %v1875 = vunpack.c.l.b16 %v1747
        %v1876 = vunpack.c.l.b16 %v1748
        %v1877 = vunpack.c.l.b16 %v1749
        %v1878 = vunpack.c.l.b16 %v1750
        %v1879 = vunpack.c.l.b16 %v1751
        %v1880 = vunpack.c.l.b16 %v1752
        %v1881 = vunpack.c.l.b16 %v1753
        %v1882 = vunpack.c.l.b16 %v1754
        %v1883 = vunpack.c.l.b16 %v1755
        %v1884 = vunpack.c.l.b16 %v1756
        %v1885 = vunpack.c.l.b16 %v1757
        %v1886 = vunpack.c.l.b16 %v1758
        %v1887 = vunpack.c.l.b16 %v1759
        %v1888 = vunpack.c.l.b16 %v1760
        %v1889 = vunpack.c.l.b16 %v1761
        %v1890 = vunpack.c.l.b16 %v1762
        %v1891 = vunpack.c.l.b16 %v1763
        %v1892 = vunpack.c.l.b16 %v1764
        %v1893 = vunpack.c.l.b16 %v1765
        %v1894 = vunpack.c.l.b16 %v1766
        %v1895 = vunpack.c.l.b16 %v1767
        %v1896 = vunpack.c.l.b16 %v1768
        %v1897 = vunpack.c.l.b16 %v1769
        %v1898 = vpack.c.b16 %v1867, %v1866
        %v1899 = vpack.c.b16 %v1869, %v1868
        %v1900 = vpack.c.b16 %v1871, %v1870
        %v1901 = vpack.c.b16 %v1873, %v1872
        %v1902 = vpack.c.b16 %v1875, %v1874
        %v1903 = vpack.c.b16 %v1877, %v1876
        %v1904 = vpack.c.b16 %v1879, %v1878
        %v1905 = vpack.c.b16 %v1881, %v1880
        %v1906 = vpack.c.b16 %v1883, %v1882
        %v1907 = vpack.c.b16 %v1885, %v1884
        %v1908 = vpack.c.b16 %v1887, %v1886
        %v1909 = vpack.c.b16 %v1889, %v1888
        %v1910 = vpack.c.b16 %v1891, %v1890
        %v1911 = vpack.c.b16 %v1893, %v1892
        %v1912 = vpack.c.b16 %v1895, %v1894
        %v1913 = vpack.c.b16 %v1897, %v1896
        %v1962 = vunpack.c.l.b16 %v1770
        %v1963 = vunpack.c.l.b16 %v1771
        %v1964 = vunpack.c.l.b16 %v1772
        %v1965 = vunpack.c.l.b16 %v1773
        %v1966 = vunpack.c.l.b16 %v1774
        %v1967 = vunpack.c.l.b16 %v1775
        %v1968 = vunpack.c.l.b16 %v1776
        %v1969 = vunpack.c.l.b16 %v1777
        %v1970 = vunpack.c.l.b16 %v1778
        %v1971 = vunpack.c.l.b16 %v1779
        %v1972 = vunpack.c.l.b16 %v1780
        %v1973 = vunpack.c.l.b16 %v1781
        %v1974 = vunpack.c.l.b16 %v1782
        %v1975 = vunpack.c.l.b16 %v1783
        %v1976 = vunpack.c.l.b16 %v1784
        %v1977 = vunpack.c.l.b16 %v1785
        %v1978 = vunpack.c.l.b16 %v1786
        %v1979 = vunpack.c.l.b16 %v1787
        %v1980 = vunpack.c.l.b16 %v1788
        %v1981 = vunpack.c.l.b16 %v1789
        %v1982 = vunpack.c.l.b16 %v1790
        %v1983 = vunpack.c.l.b16 %v1791
        %v1984 = vunpack.c.l.b16 %v1792
        %v1985 = vunpack.c.l.b16 %v1793
        %v1986 = vunpack.c.l.b16 %v1794
        %v1987 = vunpack.c.l.b16 %v1795
        %v1988 = vunpack.c.l.b16 %v1796
        %v1989 = vunpack.c.l.b16 %v1797
        %v1990 = vunpack.c.l.b16 %v1798
        %v1991 = vunpack.c.l.b16 %v1799
        %v1992 = vunpack.c.l.b16 %v1800
        %v1993 = vunpack.c.l.b16 %v1801
        %v1994 = vpack.c.b16 %v1963, %v1962
        %v1995 = vpack.c.b16 %v1965, %v1964
        %v1996 = vpack.c.b16 %v1967, %v1966
        %v1997 = vpack.c.b16 %v1969, %v1968
        %v1998 = vpack.c.b16 %v1971, %v1970
        %v1999 = vpack.c.b16 %v1973, %v1972
        %v2000 = vpack.c.b16 %v1975, %v1974
        %v2001 = vpack.c.b16 %v1977, %v1976
        %v2002 = vpack.c.b16 %v1979, %v1978
        %v2003 = vpack.c.b16 %v1981, %v1980
        %v2004 = vpack.c.b16 %v1983, %v1982
        %v2005 = vpack.c.b16 %v1985, %v1984
        %v2006 = vpack.c.b16 %v1987, %v1986
        %v2007 = vpack.c.b16 %v1989, %v1988
        %v2008 = vpack.c.b16 %v1991, %v1990
        %v2009 = vpack.c.b16 %v1993, %v1992
        %2026 = vmatprep.subr.bf16.mxu0 0
        %2027 = vmatpush1.bf16.xpose.msra.mxu0 %v2001
        %2028 = vmatprep.subr.bf16.mxu0 0
        %2029 = vmatpush1.bf16.xpose.msra.mxu0 %v2000
        %2030 = vmatprep.subr.bf16.mxu0 0
        %2031 = vmatpush1.bf16.xpose.msra.mxu0 %v1999
        %2032 = vmatprep.subr.bf16.mxu0 0
        %2033 = vmatpush1.bf16.xpose.msra.mxu0 %v1998
        %2034 = vmatprep.subr.bf16.mxu0 0
        %2035 = vmatpush1.bf16.xpose.msra.mxu0 %v1997
        %2036 = vmatprep.subr.bf16.mxu0 0
        %2037 = vmatpush1.bf16.xpose.msra.mxu0 %v1996
        %2038 = vmatprep.subr.bf16.mxu0 0
        %2039 = vmatpush1.bf16.xpose.msra.mxu0 %v1995
        %2040 = vmatprep.subr.bf16.mxu0 0
        %2041 = vmatpush1.bf16.xpose.msra.mxu0 %v1994
        %2042 = vmatprep.subr.bf16.mxu0 0
        %2043 = vmatpush2.bf16.xpose.msra.mxu0 %v2009
        %2044 = vmatprep.subr.bf16.mxu0 0
        %2045 = vmatpush2.bf16.xpose.msra.mxu0 %v2008
        %2046 = vmatprep.subr.bf16.mxu0 0
        %2047 = vmatpush2.bf16.xpose.msra.mxu0 %v2007
        %2048 = vmatprep.subr.bf16.mxu0 0
        %2049 = vmatpush2.bf16.xpose.msra.mxu0 %v2006
        %2050 = vmatprep.subr.bf16.mxu0 0
        %2051 = vmatpush2.bf16.xpose.msra.mxu0 %v2005
        %2052 = vmatprep.subr.bf16.mxu0 0
        %2053 = vmatpush2.bf16.xpose.msra.mxu0 %v2004
        %2054 = vmatprep.subr.bf16.mxu0 0
        %2055 = vmatpush2.bf16.xpose.msra.mxu0 %v2003
        %2056 = vmatprep.subr.bf16.mxu0 0
        %2057 = vmatpush2.bf16.xpose.msra.mxu0 %v2002
        %2058 = vmatprep.mubr.bf16.mxu0 0
        %2059 = vmatmul.mubr.bf16.gmra.mxu0 %v1898
        %v2060 = vpop.f32.mrf.mxu0
        %v2061 = vadd.f32 0.0, %v2060
        %v2062 = vpop.f32.mrf.mxu0
        %v2063 = vadd.f32 0.0, %v2062
        %v2064 = vpop.f32.mrf.mxu0
        %v2065 = vadd.f32 0.0, %v2064
        %v2066 = vpop.f32.mrf.mxu0
        %v2067 = vadd.f32 0.0, %v2066
        %2068 = vmatprep.mubr.bf16.mxu0 0
        %2069 = vmatmul.mubr.bf16.gmra.mxu0 %v1899
        %v2070 = vpop.f32.mrf.mxu0
        %v2071 = vadd.f32 0.0, %v2070
        %v2072 = vpop.f32.mrf.mxu0
        %v2073 = vadd.f32 0.0, %v2072
        %v2074 = vpop.f32.mrf.mxu0
        %v2075 = vadd.f32 0.0, %v2074
        %v2076 = vpop.f32.mrf.mxu0
        %v2077 = vadd.f32 0.0, %v2076
        %2078 = vmatprep.mubr.bf16.mxu0 0
        %2079 = vmatmul.mubr.bf16.gmra.mxu0 %v1900
        %v2080 = vpop.f32.mrf.mxu0
        %v2081 = vadd.f32 0.0, %v2080
        %v2082 = vpop.f32.mrf.mxu0
        %v2083 = vadd.f32 0.0, %v2082
        %v2084 = vpop.f32.mrf.mxu0
        %v2085 = vadd.f32 0.0, %v2084
        %v2086 = vpop.f32.mrf.mxu0
        %v2087 = vadd.f32 0.0, %v2086
        %2088 = vmatprep.mubr.bf16.mxu0 0
        %2089 = vmatmul.mubr.bf16.gmra.mxu0 %v1901
        %v2090 = vpop.f32.mrf.mxu0
        %v2091 = vadd.f32 0.0, %v2090
        %v2092 = vpop.f32.mrf.mxu0
        %v2093 = vadd.f32 0.0, %v2092
        %v2094 = vpop.f32.mrf.mxu0
        %v2095 = vadd.f32 0.0, %v2094
        %v2096 = vpop.f32.mrf.mxu0
        %v2097 = vadd.f32 0.0, %v2096
        %2098 = vmatprep.mubr.bf16.mxu0 0
        %2099 = vmatmul.mubr.bf16.gmra.mxu0 %v1902
        %v2100 = vpop.f32.mrf.mxu0
        %v2101 = vadd.f32 0.0, %v2100
        %v2102 = vpop.f32.mrf.mxu0
        %v2103 = vadd.f32 0.0, %v2102
        %v2104 = vpop.f32.mrf.mxu0
        %v2105 = vadd.f32 0.0, %v2104
        %v2106 = vpop.f32.mrf.mxu0
        %v2107 = vadd.f32 0.0, %v2106
        %2108 = vmatprep.mubr.bf16.mxu0 0
        %2109 = vmatmul.mubr.bf16.gmra.mxu0 %v1903
        %v2110 = vpop.f32.mrf.mxu0
        %v2111 = vadd.f32 0.0, %v2110
        %v2112 = vpop.f32.mrf.mxu0
        %v2113 = vadd.f32 0.0, %v2112
        %v2114 = vpop.f32.mrf.mxu0
        %v2115 = vadd.f32 0.0, %v2114
        %v2116 = vpop.f32.mrf.mxu0
        %v2117 = vadd.f32 0.0, %v2116
        %2118 = vmatprep.mubr.bf16.mxu0 0
        %2119 = vmatmul.mubr.bf16.gmra.mxu0 %v1904
        %v2120 = vpop.f32.mrf.mxu0
        %v2121 = vadd.f32 0.0, %v2120
        %v2122 = vpop.f32.mrf.mxu0
        %v2123 = vadd.f32 0.0, %v2122
        %v2124 = vpop.f32.mrf.mxu0
        %v2125 = vadd.f32 0.0, %v2124
        %v2126 = vpop.f32.mrf.mxu0
        %v2127 = vadd.f32 0.0, %v2126
        %2128 = vmatprep.mubr.bf16.mxu0 0
        %2129 = vmatmul.mubr.bf16.gmra.mxu0 %v1905
        %v2130 = vpop.f32.mrf.mxu0
        %v2131 = vadd.f32 0.0, %v2130
        %v2132 = vpop.f32.mrf.mxu0
        %v2133 = vadd.f32 0.0, %v2132
        %v2134 = vpop.f32.mrf.mxu0
        %v2135 = vadd.f32 0.0, %v2134
        %v2136 = vpop.f32.mrf.mxu0
        %v2137 = vadd.f32 0.0, %v2136
        %2138 = vmatprep.mubr.bf16.mxu0 0
        %2139 = vmatmul.mubr.bf16.gmra.mxu0 %v1906
        %v2140 = vpop.f32.mrf.mxu0
        %v2141 = vadd.f32 0.0, %v2140
        %v2142 = vpop.f32.mrf.mxu0
        %v2143 = vadd.f32 0.0, %v2142
        %v2144 = vpop.f32.mrf.mxu0
        %v2145 = vadd.f32 0.0, %v2144
        %v2146 = vpop.f32.mrf.mxu0
        %v2147 = vadd.f32 0.0, %v2146
        %2148 = vmatprep.mubr.bf16.mxu0 0
        %2149 = vmatmul.mubr.bf16.gmra.mxu0 %v1907
        %v2150 = vpop.f32.mrf.mxu0
        %v2151 = vadd.f32 0.0, %v2150
        %v2152 = vpop.f32.mrf.mxu0
        %v2153 = vadd.f32 0.0, %v2152
        %v2154 = vpop.f32.mrf.mxu0
        %v2155 = vadd.f32 0.0, %v2154
        %v2156 = vpop.f32.mrf.mxu0
        %v2157 = vadd.f32 0.0, %v2156
        %2158 = vmatprep.mubr.bf16.mxu0 0
        %2159 = vmatmul.mubr.bf16.gmra.mxu0 %v1908
        %v2160 = vpop.f32.mrf.mxu0
        %v2161 = vadd.f32 0.0, %v2160
        %v2162 = vpop.f32.mrf.mxu0
        %v2163 = vadd.f32 0.0, %v2162
        %v2164 = vpop.f32.mrf.mxu0
        %v2165 = vadd.f32 0.0, %v2164
        %v2166 = vpop.f32.mrf.mxu0
        %v2167 = vadd.f32 0.0, %v2166
        %2168 = vmatprep.mubr.bf16.mxu0 0
        %2169 = vmatmul.mubr.bf16.gmra.mxu0 %v1909
        %v2170 = vpop.f32.mrf.mxu0
        %v2171 = vadd.f32 0.0, %v2170
        %v2172 = vpop.f32.mrf.mxu0
        %v2173 = vadd.f32 0.0, %v2172
        %v2174 = vpop.f32.mrf.mxu0
        %v2175 = vadd.f32 0.0, %v2174
        %v2176 = vpop.f32.mrf.mxu0
        %v2177 = vadd.f32 0.0, %v2176
        %2178 = vmatprep.mubr.bf16.mxu0 0
        %2179 = vmatmul.mubr.bf16.gmra.mxu0 %v1910
        %v2180 = vpop.f32.mrf.mxu0
        %v2181 = vadd.f32 0.0, %v2180
        %v2182 = vpop.f32.mrf.mxu0
        %v2183 = vadd.f32 0.0, %v2182
        %v2184 = vpop.f32.mrf.mxu0
        %v2185 = vadd.f32 0.0, %v2184
        %v2186 = vpop.f32.mrf.mxu0
        %v2187 = vadd.f32 0.0, %v2186
        %2188 = vmatprep.mubr.bf16.mxu0 0
        %2189 = vmatmul.mubr.bf16.gmra.mxu0 %v1911
        %v2190 = vpop.f32.mrf.mxu0
        %v2191 = vadd.f32 0.0, %v2190
        %v2192 = vpop.f32.mrf.mxu0
        %v2193 = vadd.f32 0.0, %v2192
        %v2194 = vpop.f32.mrf.mxu0
        %v2195 = vadd.f32 0.0, %v2194
        %v2196 = vpop.f32.mrf.mxu0
        %v2197 = vadd.f32 0.0, %v2196
        %2198 = vmatprep.mubr.bf16.mxu0 0
        %2199 = vmatmul.mubr.bf16.gmra.mxu0 %v1912
        %v2200 = vpop.f32.mrf.mxu0
        %v2201 = vadd.f32 0.0, %v2200
        %v2202 = vpop.f32.mrf.mxu0
        %v2203 = vadd.f32 0.0, %v2202
        %v2204 = vpop.f32.mrf.mxu0
        %v2205 = vadd.f32 0.0, %v2204
        %v2206 = vpop.f32.mrf.mxu0
        %v2207 = vadd.f32 0.0, %v2206
        %2208 = vmatprep.mubr.bf16.mxu0 0
        %2209 = vmatmul.mubr.bf16.gmra.mxu0 %v1913
        %v2210 = vpop.f32.mrf.mxu0
        %v2211 = vadd.f32 0.0, %v2210
        %v2212 = vpop.f32.mrf.mxu0
        %v2213 = vadd.f32 0.0, %v2212
        %v2214 = vpop.f32.mrf.mxu0
        %v2215 = vadd.f32 0.0, %v2214
        %v2216 = vpop.f32.mrf.mxu0
        %v2217 = vadd.f32 0.0, %v2216
        %2218 = vdwg.mxu0
        %v2219 = vmax.f32 %v2061, %v2063
        %2220 = vmax.xlane.f32.xlu0 %v2219
        %v2221 = vpop.xlane.xlu0 %2220
        %v2222 = vmax.f32 %v2065, %v2067
        %2223 = vmax.xlane.f32.xlu0 %v2222
        %v2224 = vpop.xlane.xlu0 %2223
        %v2225 = vmax.f32 %v2071, %v2073
        %2226 = vmax.xlane.f32.xlu0 %v2225
        %v2227 = vpop.xlane.xlu0 %2226
        %v2228 = vmax.f32 %v2075, %v2077
        %2229 = vmax.xlane.f32.xlu0 %v2228
        %v2230 = vpop.xlane.xlu0 %2229
        %v2231 = vmax.f32 %v2081, %v2083
        %2232 = vmax.xlane.f32.xlu0 %v2231
        %v2233 = vpop.xlane.xlu0 %2232
        %v2234 = vmax.f32 %v2085, %v2087
        %2235 = vmax.xlane.f32.xlu0 %v2234
        %v2236 = vpop.xlane.xlu0 %2235
        %v2237 = vmax.f32 %v2091, %v2093
        %2238 = vmax.xlane.f32.xlu0 %v2237
        %v2239 = vpop.xlane.xlu0 %2238
        %v2240 = vmax.f32 %v2095, %v2097
        %2241 = vmax.xlane.f32.xlu0 %v2240
        %v2242 = vpop.xlane.xlu0 %2241
        %v2243 = vmax.f32 %v2101, %v2103
        %2244 = vmax.xlane.f32.xlu0 %v2243
        %v2245 = vpop.xlane.xlu0 %2244
        %v2246 = vmax.f32 %v2105, %v2107
        %2247 = vmax.xlane.f32.xlu0 %v2246
        %v2248 = vpop.xlane.xlu0 %2247
        %v2249 = vmax.f32 %v2111, %v2113
        %2250 = vmax.xlane.f32.xlu0 %v2249
        %v2251 = vpop.xlane.xlu0 %2250
        %v2252 = vmax.f32 %v2115, %v2117
        %2253 = vmax.xlane.f32.xlu0 %v2252
        %v2254 = vpop.xlane.xlu0 %2253
        %v2255 = vmax.f32 %v2121, %v2123
        %2256 = vmax.xlane.f32.xlu0 %v2255
        %v2257 = vpop.xlane.xlu0 %2256
        %v2258 = vmax.f32 %v2125, %v2127
        %2259 = vmax.xlane.f32.xlu0 %v2258
        %v2260 = vpop.xlane.xlu0 %2259
        %v2261 = vmax.f32 %v2131, %v2133
        %2262 = vmax.xlane.f32.xlu0 %v2261
        %v2263 = vpop.xlane.xlu0 %2262
        %v2264 = vmax.f32 %v2135, %v2137
        %2265 = vmax.xlane.f32.xlu0 %v2264
        %v2266 = vpop.xlane.xlu0 %2265
        %v2267 = vmax.f32 %v2141, %v2143
        %2268 = vmax.xlane.f32.xlu0 %v2267
        %v2269 = vpop.xlane.xlu0 %2268
        %v2270 = vmax.f32 %v2145, %v2147
        %2271 = vmax.xlane.f32.xlu0 %v2270
        %v2272 = vpop.xlane.xlu0 %2271
        %v2273 = vmax.f32 %v2151, %v2153
        %2274 = vmax.xlane.f32.xlu0 %v2273
        %v2275 = vpop.xlane.xlu0 %2274
        %v2276 = vmax.f32 %v2155, %v2157
        %2277 = vmax.xlane.f32.xlu0 %v2276
        %v2278 = vpop.xlane.xlu0 %2277
        %v2279 = vmax.f32 %v2161, %v2163
        %2280 = vmax.xlane.f32.xlu0 %v2279
        %v2281 = vpop.xlane.xlu0 %2280
        %v2282 = vmax.f32 %v2165, %v2167
        %2283 = vmax.xlane.f32.xlu0 %v2282
        %v2284 = vpop.xlane.xlu0 %2283
        %v2285 = vmax.f32 %v2171, %v2173
        %2286 = vmax.xlane.f32.xlu0 %v2285
        %v2287 = vpop.xlane.xlu0 %2286
        %v2288 = vmax.f32 %v2175, %v2177
        %2289 = vmax.xlane.f32.xlu0 %v2288
        %v2290 = vpop.xlane.xlu0 %2289
        %v2291 = vmax.f32 %v2181, %v2183
        %2292 = vmax.xlane.f32.xlu0 %v2291
        %v2293 = vpop.xlane.xlu0 %2292
        %v2294 = vmax.f32 %v2185, %v2187
        %2295 = vmax.xlane.f32.xlu0 %v2294
        %v2296 = vpop.xlane.xlu0 %2295
        %v2297 = vmax.f32 %v2191, %v2193
        %2298 = vmax.xlane.f32.xlu0 %v2297
        %v2299 = vpop.xlane.xlu0 %2298
        %v2300 = vmax.f32 %v2195, %v2197
        %2301 = vmax.xlane.f32.xlu0 %v2300
        %v2302 = vpop.xlane.xlu0 %2301
        %v2303 = vmax.f32 %v2201, %v2203
        %2304 = vmax.xlane.f32.xlu0 %v2303
        %v2305 = vpop.xlane.xlu0 %2304
        %v2306 = vmax.f32 %v2205, %v2207
        %2307 = vmax.xlane.f32.xlu0 %v2306
        %v2308 = vpop.xlane.xlu0 %2307
        %v2309 = vmax.f32 %v2211, %v2213
        %2310 = vmax.xlane.f32.xlu0 %v2309
        %v2311 = vpop.xlane.xlu0 %2310
        %v2312 = vmax.f32 %v2215, %v2217
        %2313 = vmax.xlane.f32.xlu0 %v2312
        %v2314 = vpop.xlane.xlu0 %2313
        %v2315 = vsub.f32 %v2061, %v2221
        %v2316 = vsub.f32 %v2063, %v2221
        %v2317 = vsub.f32 %v2065, %v2224
        %v2318 = vsub.f32 %v2067, %v2224
        %v2319 = vsub.f32 %v2071, %v2227
        %v2320 = vsub.f32 %v2073, %v2227
        %v2321 = vsub.f32 %v2075, %v2230
        %v2322 = vsub.f32 %v2077, %v2230
        %v2323 = vsub.f32 %v2081, %v2233
        %v2324 = vsub.f32 %v2083, %v2233
        %v2325 = vsub.f32 %v2085, %v2236
        %v2326 = vsub.f32 %v2087, %v2236
        %v2327 = vsub.f32 %v2091, %v2239
        %v2328 = vsub.f32 %v2093, %v2239
        %v2329 = vsub.f32 %v2095, %v2242
        %v2330 = vsub.f32 %v2097, %v2242
        %v2331 = vsub.f32 %v2101, %v2245
        %v2332 = vsub.f32 %v2103, %v2245
        %v2333 = vsub.f32 %v2105, %v2248
        %v2334 = vsub.f32 %v2107, %v2248
        %v2335 = vsub.f32 %v2111, %v2251
        %v2336 = vsub.f32 %v2113, %v2251
        %v2337 = vsub.f32 %v2115, %v2254
        %v2338 = vsub.f32 %v2117, %v2254
        %v2339 = vsub.f32 %v2121, %v2257
        %v2340 = vsub.f32 %v2123, %v2257
        %v2341 = vsub.f32 %v2125, %v2260
        %v2342 = vsub.f32 %v2127, %v2260
        %v2343 = vsub.f32 %v2131, %v2263
        %v2344 = vsub.f32 %v2133, %v2263
        %v2345 = vsub.f32 %v2135, %v2266
        %v2346 = vsub.f32 %v2137, %v2266
        %v2347 = vsub.f32 %v2141, %v2269
        %v2348 = vsub.f32 %v2143, %v2269
        %v2349 = vsub.f32 %v2145, %v2272
        %v2350 = vsub.f32 %v2147, %v2272
        %v2351 = vsub.f32 %v2151, %v2275
        %v2352 = vsub.f32 %v2153, %v2275
        %v2353 = vsub.f32 %v2155, %v2278
        %v2354 = vsub.f32 %v2157, %v2278
        %v2355 = vsub.f32 %v2161, %v2281
        %v2356 = vsub.f32 %v2163, %v2281
        %v2357 = vsub.f32 %v2165, %v2284
        %v2358 = vsub.f32 %v2167, %v2284
        %v2359 = vsub.f32 %v2171, %v2287
        %v2360 = vsub.f32 %v2173, %v2287
        %v2361 = vsub.f32 %v2175, %v2290
        %v2362 = vsub.f32 %v2177, %v2290
        %v2363 = vsub.f32 %v2181, %v2293
        %v2364 = vsub.f32 %v2183, %v2293
        %v2365 = vsub.f32 %v2185, %v2296
        %v2366 = vsub.f32 %v2187, %v2296
        %v2367 = vsub.f32 %v2191, %v2299
        %v2368 = vsub.f32 %v2193, %v2299
        %v2369 = vsub.f32 %v2195, %v2302
        %v2370 = vsub.f32 %v2197, %v2302
        %v2371 = vsub.f32 %v2201, %v2305
        %v2372 = vsub.f32 %v2203, %v2305
        %v2373 = vsub.f32 %v2205, %v2308
        %v2374 = vsub.f32 %v2207, %v2308
        %v2375 = vsub.f32 %v2211, %v2311
        %v2376 = vsub.f32 %v2213, %v2311
        %v2377 = vsub.f32 %v2215, %v2314
        %v2378 = vsub.f32 %v2217, %v2314
        %v2379 = vmul.f32 %v2315, 1.442695
        %v2380 = vpow.pop %v2379
        %v2381 = vmul.f32 %v2316, 1.442695
        %v2382 = vpow.pop %v2381
        %v2383 = vmul.f32 %v2317, 1.442695
        %v2384 = vpow.pop %v2383
        %v2385 = vmul.f32 %v2318, 1.442695
        %v2386 = vpow.pop %v2385
        %v2387 = vmul.f32 %v2319, 1.442695
        %v2388 = vpow.pop %v2387
        %v2389 = vmul.f32 %v2320, 1.442695
        %v2390 = vpow.pop %v2389
        %v2391 = vmul.f32 %v2321, 1.442695
        %v2392 = vpow.pop %v2391
        %v2393 = vmul.f32 %v2322, 1.442695
        %v2394 = vpow.pop %v2393
        %v2395 = vmul.f32 %v2323, 1.442695
        %v2396 = vpow.pop %v2395
        %v2397 = vmul.f32 %v2324, 1.442695
        %v2398 = vpow.pop %v2397
        %v2399 = vmul.f32 %v2325, 1.442695
        %v2400 = vpow.pop %v2399
        %v2401 = vmul.f32 %v2326, 1.442695
        %v2402 = vpow.pop %v2401
        %v2403 = vmul.f32 %v2327, 1.442695
        %v2404 = vpow.pop %v2403
        %v2405 = vmul.f32 %v2328, 1.442695
        %v2406 = vpow.pop %v2405
        %v2407 = vmul.f32 %v2329, 1.442695
        %v2408 = vpow.pop %v2407
        %v2409 = vmul.f32 %v2330, 1.442695
        %v2410 = vpow.pop %v2409
        %v2411 = vmul.f32 %v2331, 1.442695
        %v2412 = vpow.pop %v2411
        %v2413 = vmul.f32 %v2332, 1.442695
        %v2414 = vpow.pop %v2413
        %v2415 = vmul.f32 %v2333, 1.442695
        %v2416 = vpow.pop %v2415
        %v2417 = vmul.f32 %v2334, 1.442695
        %v2418 = vpow.pop %v2417
        %v2419 = vmul.f32 %v2335, 1.442695
        %v2420 = vpow.pop %v2419
        %v2421 = vmul.f32 %v2336, 1.442695
        %v2422 = vpow.pop %v2421
        %v2423 = vmul.f32 %v2337, 1.442695
        %v2424 = vpow.pop %v2423
        %v2425 = vmul.f32 %v2338, 1.442695
        %v2426 = vpow.pop %v2425
        %v2427 = vmul.f32 %v2339, 1.442695
        %v2428 = vpow.pop %v2427
        %v2429 = vmul.f32 %v2340, 1.442695
        %v2430 = vpow.pop %v2429
        %v2431 = vmul.f32 %v2341, 1.442695
        %v2432 = vpow.pop %v2431
        %v2433 = vmul.f32 %v2342, 1.442695
        %v2434 = vpow.pop %v2433
        %v2435 = vmul.f32 %v2343, 1.442695
        %v2436 = vpow.pop %v2435
        %v2437 = vmul.f32 %v2344, 1.442695
        %v2438 = vpow.pop %v2437
        %v2439 = vmul.f32 %v2345, 1.442695
        %v2440 = vpow.pop %v2439
        %v2441 = vmul.f32 %v2346, 1.442695
        %v2442 = vpow.pop %v2441
        %v2443 = vmul.f32 %v2347, 1.442695
        %v2444 = vpow.pop %v2443
        %v2445 = vmul.f32 %v2348, 1.442695
        %v2446 = vpow.pop %v2445
        %v2447 = vmul.f32 %v2349, 1.442695
        %v2448 = vpow.pop %v2447
        %v2449 = vmul.f32 %v2350, 1.442695
        %v2450 = vpow.pop %v2449
        %v2451 = vmul.f32 %v2351, 1.442695
        %v2452 = vpow.pop %v2451
        %v2453 = vmul.f32 %v2352, 1.442695
        %v2454 = vpow.pop %v2453
        %v2455 = vmul.f32 %v2353, 1.442695
        %v2456 = vpow.pop %v2455
        %v2457 = vmul.f32 %v2354, 1.442695
        %v2458 = vpow.pop %v2457
        %v2459 = vmul.f32 %v2355, 1.442695
        %v2460 = vpow.pop %v2459
        %v2461 = vmul.f32 %v2356, 1.442695
        %v2462 = vpow.pop %v2461
        %v2463 = vmul.f32 %v2357, 1.442695
        %v2464 = vpow.pop %v2463
        %v2465 = vmul.f32 %v2358, 1.442695
        %v2466 = vpow.pop %v2465
        %v2467 = vmul.f32 %v2359, 1.442695
        %v2468 = vpow.pop %v2467
        %v2469 = vmul.f32 %v2360, 1.442695
        %v2470 = vpow.pop %v2469
        %v2471 = vmul.f32 %v2361, 1.442695
        %v2472 = vpow.pop %v2471
        %v2473 = vmul.f32 %v2362, 1.442695
        %v2474 = vpow.pop %v2473
        %v2475 = vmul.f32 %v2363, 1.442695
        %v2476 = vpow.pop %v2475
        %v2477 = vmul.f32 %v2364, 1.442695
        %v2478 = vpow.pop %v2477
        %v2479 = vmul.f32 %v2365, 1.442695
        %v2480 = vpow.pop %v2479
        %v2481 = vmul.f32 %v2366, 1.442695
        %v2482 = vpow.pop %v2481
        %v2483 = vmul.f32 %v2367, 1.442695
        %v2484 = vpow.pop %v2483
        %v2485 = vmul.f32 %v2368, 1.442695
        %v2486 = vpow.pop %v2485
        %v2487 = vmul.f32 %v2369, 1.442695
        %v2488 = vpow.pop %v2487
        %v2489 = vmul.f32 %v2370, 1.442695
        %v2490 = vpow.pop %v2489
        %v2491 = vmul.f32 %v2371, 1.442695
        %v2492 = vpow.pop %v2491
        %v2493 = vmul.f32 %v2372, 1.442695
        %v2494 = vpow.pop %v2493
        %v2495 = vmul.f32 %v2373, 1.442695
        %v2496 = vpow.pop %v2495
        %v2497 = vmul.f32 %v2374, 1.442695
        %v2498 = vpow.pop %v2497
        %v2499 = vmul.f32 %v2375, 1.442695
        %v2500 = vpow.pop %v2499
        %v2501 = vmul.f32 %v2376, 1.442695
        %v2502 = vpow.pop %v2501
        %v2503 = vmul.f32 %v2377, 1.442695
        %v2504 = vpow.pop %v2503
        %v2505 = vmul.f32 %v2378, 1.442695
        %v2506 = vpow.pop %v2505
        %v2507 = vadd.f32 %v2380, %v2382
        %2508 = vadd.xlane.f32.xlu0 %v2507
        %v2509 = vpop.xlane.xlu0 %2508
        %v2510 = vadd.f32 %v2384, %v2386
        %2511 = vadd.xlane.f32.xlu0 %v2510
        %v2512 = vpop.xlane.xlu0 %2511
        %v2513 = vadd.f32 %v2388, %v2390
        %2514 = vadd.xlane.f32.xlu0 %v2513
        %v2515 = vpop.xlane.xlu0 %2514
        %v2516 = vadd.f32 %v2392, %v2394
        %2517 = vadd.xlane.f32.xlu0 %v2516
        %v2518 = vpop.xlane.xlu0 %2517
        %v2519 = vadd.f32 %v2396, %v2398
        %2520 = vadd.xlane.f32.xlu0 %v2519
        %v2521 = vpop.xlane.xlu0 %2520
        %v2522 = vadd.f32 %v2400, %v2402
        %2523 = vadd.xlane.f32.xlu0 %v2522
        %v2524 = vpop.xlane.xlu0 %2523
        %v2525 = vadd.f32 %v2404, %v2406
        %2526 = vadd.xlane.f32.xlu0 %v2525
        %v2527 = vpop.xlane.xlu0 %2526
        %v2528 = vadd.f32 %v2408, %v2410
        %2529 = vadd.xlane.f32.xlu0 %v2528
        %v2530 = vpop.xlane.xlu0 %2529
        %v2531 = vadd.f32 %v2412, %v2414
        %2532 = vadd.xlane.f32.xlu0 %v2531
        %v2533 = vpop.xlane.xlu0 %2532
        %v2534 = vadd.f32 %v2416, %v2418
        %2535 = vadd.xlane.f32.xlu0 %v2534
        %v2536 = vpop.xlane.xlu0 %2535
        %v2537 = vadd.f32 %v2420, %v2422
        %2538 = vadd.xlane.f32.xlu0 %v2537
        %v2539 = vpop.xlane.xlu0 %2538
        %v2540 = vadd.f32 %v2424, %v2426
        %2541 = vadd.xlane.f32.xlu0 %v2540
        %v2542 = vpop.xlane.xlu0 %2541
        %v2543 = vadd.f32 %v2428, %v2430
        %2544 = vadd.xlane.f32.xlu0 %v2543
        %v2545 = vpop.xlane.xlu0 %2544
        %v2546 = vadd.f32 %v2432, %v2434
        %2547 = vadd.xlane.f32.xlu0 %v2546
        %v2548 = vpop.xlane.xlu0 %2547
        %v2549 = vadd.f32 %v2436, %v2438
        %2550 = vadd.xlane.f32.xlu0 %v2549
        %v2551 = vpop.xlane.xlu0 %2550
        %v2552 = vadd.f32 %v2440, %v2442
        %2553 = vadd.xlane.f32.xlu0 %v2552
        %v2554 = vpop.xlane.xlu0 %2553
        %v2555 = vadd.f32 %v2444, %v2446
        %2556 = vadd.xlane.f32.xlu0 %v2555
        %v2557 = vpop.xlane.xlu0 %2556
        %v2558 = vadd.f32 %v2448, %v2450
        %2559 = vadd.xlane.f32.xlu0 %v2558
        %v2560 = vpop.xlane.xlu0 %2559
        %v2561 = vadd.f32 %v2452, %v2454
        %2562 = vadd.xlane.f32.xlu0 %v2561
        %v2563 = vpop.xlane.xlu0 %2562
        %v2564 = vadd.f32 %v2456, %v2458
        %2565 = vadd.xlane.f32.xlu0 %v2564
        %v2566 = vpop.xlane.xlu0 %2565
        %v2567 = vadd.f32 %v2460, %v2462
        %2568 = vadd.xlane.f32.xlu0 %v2567
        %v2569 = vpop.xlane.xlu0 %2568
        %v2570 = vadd.f32 %v2464, %v2466
        %2571 = vadd.xlane.f32.xlu0 %v2570
        %v2572 = vpop.xlane.xlu0 %2571
        %v2573 = vadd.f32 %v2468, %v2470
        %2574 = vadd.xlane.f32.xlu0 %v2573
        %v2575 = vpop.xlane.xlu0 %2574
        %v2576 = vadd.f32 %v2472, %v2474
        %2577 = vadd.xlane.f32.xlu0 %v2576
        %v2578 = vpop.xlane.xlu0 %2577
        %v2579 = vadd.f32 %v2476, %v2478
        %2580 = vadd.xlane.f32.xlu0 %v2579
        %v2581 = vpop.xlane.xlu0 %2580
        %v2582 = vadd.f32 %v2480, %v2482
        %2583 = vadd.xlane.f32.xlu0 %v2582
        %v2584 = vpop.xlane.xlu0 %2583
        %v2585 = vadd.f32 %v2484, %v2486
        %2586 = vadd.xlane.f32.xlu0 %v2585
        %v2587 = vpop.xlane.xlu0 %2586
        %v2588 = vadd.f32 %v2488, %v2490
        %2589 = vadd.xlane.f32.xlu0 %v2588
        %v2590 = vpop.xlane.xlu0 %2589
        %v2591 = vadd.f32 %v2492, %v2494
        %2592 = vadd.xlane.f32.xlu0 %v2591
        %v2593 = vpop.xlane.xlu0 %2592
        %v2594 = vadd.f32 %v2496, %v2498
        %2595 = vadd.xlane.f32.xlu0 %v2594
        %v2596 = vpop.xlane.xlu0 %2595
        %v2597 = vadd.f32 %v2500, %v2502
        %2598 = vadd.xlane.f32.xlu0 %v2597
        %v2599 = vpop.xlane.xlu0 %2598
        %v2600 = vadd.f32 %v2504, %v2506
        %2601 = vadd.xlane.f32.xlu0 %v2600
        %v2602 = vpop.xlane.xlu0 %2601
        %v2603 = vpack.c.bf16 %v2384, %v2380
        %v2604 = vpack.c.bf16 %v2386, %v2382
        %v2605 = vpack.c.bf16 %v2392, %v2388
        %v2606 = vpack.c.bf16 %v2394, %v2390
        %v2607 = vpack.c.bf16 %v2400, %v2396
        %v2608 = vpack.c.bf16 %v2402, %v2398
        %v2609 = vpack.c.bf16 %v2408, %v2404
        %v2610 = vpack.c.bf16 %v2410, %v2406
        %v2611 = vpack.c.bf16 %v2416, %v2412
        %v2612 = vpack.c.bf16 %v2418, %v2414
        %v2613 = vpack.c.bf16 %v2424, %v2420
        %v2614 = vpack.c.bf16 %v2426, %v2422
        %v2615 = vpack.c.bf16 %v2432, %v2428
        %v2616 = vpack.c.bf16 %v2434, %v2430
        %v2617 = vpack.c.bf16 %v2440, %v2436
        %v2618 = vpack.c.bf16 %v2442, %v2438
        %v2619 = vpack.c.bf16 %v2448, %v2444
        %v2620 = vpack.c.bf16 %v2450, %v2446
        %v2621 = vpack.c.bf16 %v2456, %v2452
        %v2622 = vpack.c.bf16 %v2458, %v2454
        %v2623 = vpack.c.bf16 %v2464, %v2460
        %v2624 = vpack.c.bf16 %v2466, %v2462
        %v2625 = vpack.c.bf16 %v2472, %v2468
        %v2626 = vpack.c.bf16 %v2474, %v2470
        %v2627 = vpack.c.bf16 %v2480, %v2476
        %v2628 = vpack.c.bf16 %v2482, %v2478
        %v2629 = vpack.c.bf16 %v2488, %v2484
        %v2630 = vpack.c.bf16 %v2490, %v2486
        %v2631 = vpack.c.bf16 %v2496, %v2492
        %v2632 = vpack.c.bf16 %v2498, %v2494
        %v2633 = vpack.c.bf16 %v2504, %v2500
        %v2634 = vpack.c.bf16 %v2506, %v2502
        %v2667 = vunpack.c.l.b16 %v1802
        %v2668 = vunpack.c.l.b16 %v1803
        %v2669 = vunpack.c.l.b16 %v1804
        %v2670 = vunpack.c.l.b16 %v1805
        %v2671 = vunpack.c.l.b16 %v1806
        %v2672 = vunpack.c.l.b16 %v1807
        %v2673 = vunpack.c.l.b16 %v1808
        %v2674 = vunpack.c.l.b16 %v1809
        %v2675 = vunpack.c.l.b16 %v1810
        %v2676 = vunpack.c.l.b16 %v1811
        %v2677 = vunpack.c.l.b16 %v1812
        %v2678 = vunpack.c.l.b16 %v1813
        %v2679 = vunpack.c.l.b16 %v1814
        %v2680 = vunpack.c.l.b16 %v1815
        %v2681 = vunpack.c.l.b16 %v1816
        %v2682 = vunpack.c.l.b16 %v1817
        %v2683 = vunpack.c.l.b16 %v1818
        %v2684 = vunpack.c.l.b16 %v1819
        %v2685 = vunpack.c.l.b16 %v1820
        %v2686 = vunpack.c.l.b16 %v1821
        %v2687 = vunpack.c.l.b16 %v1822
        %v2688 = vunpack.c.l.b16 %v1823
        %v2689 = vunpack.c.l.b16 %v1824
        %v2690 = vunpack.c.l.b16 %v1825
        %v2691 = vunpack.c.l.b16 %v1826
        %v2692 = vunpack.c.l.b16 %v1827
        %v2693 = vunpack.c.l.b16 %v1828
        %v2694 = vunpack.c.l.b16 %v1829
        %v2695 = vunpack.c.l.b16 %v1830
        %v2696 = vunpack.c.l.b16 %v1831
        %v2697 = vunpack.c.l.b16 %v1832
        %v2698 = vunpack.c.l.b16 %v1833
        %v2699 = vpack.c.b16 %v2668, %v2667
        %v2700 = vpack.c.b16 %v2670, %v2669
        %v2701 = vpack.c.b16 %v2672, %v2671
        %v2702 = vpack.c.b16 %v2674, %v2673
        %v2703 = vpack.c.b16 %v2676, %v2675
        %v2704 = vpack.c.b16 %v2678, %v2677
        %v2705 = vpack.c.b16 %v2680, %v2679
        %v2706 = vpack.c.b16 %v2682, %v2681
        %v2707 = vpack.c.b16 %v2684, %v2683
        %v2708 = vpack.c.b16 %v2686, %v2685
        %v2709 = vpack.c.b16 %v2688, %v2687
        %v2710 = vpack.c.b16 %v2690, %v2689
        %v2711 = vpack.c.b16 %v2692, %v2691
        %v2712 = vpack.c.b16 %v2694, %v2693
        %v2713 = vpack.c.b16 %v2696, %v2695
        %v2714 = vpack.c.b16 %v2698, %v2697
        %2731 = vmatprep.subr.bf16.mxu0 0
        %2732 = vmatpush1.bf16.msra.mxu0 %v2706
        %2733 = vmatprep.subr.bf16.mxu0 0
        %2734 = vmatpush1.bf16.msra.mxu0 %v2705
        %2735 = vmatprep.subr.bf16.mxu0 0
        %2736 = vmatpush1.bf16.msra.mxu0 %v2704
        %2737 = vmatprep.subr.bf16.mxu0 0
        %2738 = vmatpush1.bf16.msra.mxu0 %v2703
        %2739 = vmatprep.subr.bf16.mxu0 0
        %2740 = vmatpush1.bf16.msra.mxu0 %v2702
        %2741 = vmatprep.subr.bf16.mxu0 0
        %2742 = vmatpush1.bf16.msra.mxu0 %v2701
        %2743 = vmatprep.subr.bf16.mxu0 0
        %2744 = vmatpush1.bf16.msra.mxu0 %v2700
        %2745 = vmatprep.subr.bf16.mxu0 0
        %2746 = vmatpush1.bf16.msra.mxu0 %v2699
        %2747 = vmatprep.subr.bf16.mxu0 0
        %2748 = vmatpush2.bf16.msra.mxu0 %v2714
        %2749 = vmatprep.subr.bf16.mxu0 0
        %2750 = vmatpush2.bf16.msra.mxu0 %v2713
        %2751 = vmatprep.subr.bf16.mxu0 0
        %2752 = vmatpush2.bf16.msra.mxu0 %v2712
        %2753 = vmatprep.subr.bf16.mxu0 0
        %2754 = vmatpush2.bf16.msra.mxu0 %v2711
        %2755 = vmatprep.subr.bf16.mxu0 0
        %2756 = vmatpush2.bf16.msra.mxu0 %v2710
        %2757 = vmatprep.subr.bf16.mxu0 0
        %2758 = vmatpush2.bf16.msra.mxu0 %v2709
        %2759 = vmatprep.subr.bf16.mxu0 0
        %2760 = vmatpush2.bf16.msra.mxu0 %v2708
        %2761 = vmatprep.subr.bf16.mxu0 0
        %2762 = vmatpush2.bf16.msra.mxu0 %v2707
        %2763 = vmatprep.mubr.bf16.mxu0 %v2604
        %2764 = vmatmul.mubr.bf16.gmra.mxu0 %v2603
        %v2765 = vpop.f32.mrf.mxu0
        %v2766 = vadd.f32 0.0, %v2765
        %v2767 = vpop.f32.mrf.mxu0
        %v2768 = vpop.f32.mrf.mxu0
        %v2769 = vadd.f32 0.0, %v2768
        %v2770 = vpop.f32.mrf.mxu0
        %2771 = vmatprep.mubr.bf16.mxu0 %v2606
        %2772 = vmatmul.mubr.bf16.gmra.mxu0 %v2605
        %v2773 = vpop.f32.mrf.mxu0
        %v2774 = vadd.f32 0.0, %v2773
        %v2775 = vpop.f32.mrf.mxu0
        %v2776 = vpop.f32.mrf.mxu0
        %v2777 = vadd.f32 0.0, %v2776
        %v2778 = vpop.f32.mrf.mxu0
        %2779 = vmatprep.mubr.bf16.mxu0 %v2608
        %2780 = vmatmul.mubr.bf16.gmra.mxu0 %v2607
        %v2781 = vpop.f32.mrf.mxu0
        %v2782 = vadd.f32 0.0, %v2781
        %v2783 = vpop.f32.mrf.mxu0
        %v2784 = vpop.f32.mrf.mxu0
        %v2785 = vadd.f32 0.0, %v2784
        %v2786 = vpop.f32.mrf.mxu0
        %2787 = vmatprep.mubr.bf16.mxu0 %v2610
        %2788 = vmatmul.mubr.bf16.gmra.mxu0 %v2609
        %v2789 = vpop.f32.mrf.mxu0
        %v2790 = vadd.f32 0.0, %v2789
        %v2791 = vpop.f32.mrf.mxu0
        %v2792 = vpop.f32.mrf.mxu0
        %v2793 = vadd.f32 0.0, %v2792
        %v2794 = vpop.f32.mrf.mxu0
        %2795 = vmatprep.mubr.bf16.mxu0 %v2612
        %2796 = vmatmul.mubr.bf16.gmra.mxu0 %v2611
        %v2797 = vpop.f32.mrf.mxu0
        %v2798 = vadd.f32 0.0, %v2797
        %v2799 = vpop.f32.mrf.mxu0
        %v2800 = vpop.f32.mrf.mxu0
        %v2801 = vadd.f32 0.0, %v2800
        %v2802 = vpop.f32.mrf.mxu0
        %2803 = vmatprep.mubr.bf16.mxu0 %v2614
        %2804 = vmatmul.mubr.bf16.gmra.mxu0 %v2613
        %v2805 = vpop.f32.mrf.mxu0
        %v2806 = vadd.f32 0.0, %v2805
        %v2807 = vpop.f32.mrf.mxu0
        %v2808 = vpop.f32.mrf.mxu0
        %v2809 = vadd.f32 0.0, %v2808
        %v2810 = vpop.f32.mrf.mxu0
        %2811 = vmatprep.mubr.bf16.mxu0 %v2616
        %2812 = vmatmul.mubr.bf16.gmra.mxu0 %v2615
        %v2813 = vpop.f32.mrf.mxu0
        %v2814 = vadd.f32 0.0, %v2813
        %v2815 = vpop.f32.mrf.mxu0
        %v2816 = vpop.f32.mrf.mxu0
        %v2817 = vadd.f32 0.0, %v2816
        %v2818 = vpop.f32.mrf.mxu0
        %2819 = vmatprep.mubr.bf16.mxu0 %v2618
        %2820 = vmatmul.mubr.bf16.gmra.mxu0 %v2617
        %v2821 = vpop.f32.mrf.mxu0
        %v2822 = vadd.f32 0.0, %v2821
        %v2823 = vpop.f32.mrf.mxu0
        %v2824 = vpop.f32.mrf.mxu0
        %v2825 = vadd.f32 0.0, %v2824
        %v2826 = vpop.f32.mrf.mxu0
        %2827 = vmatprep.mubr.bf16.mxu0 %v2620
        %2828 = vmatmul.mubr.bf16.gmra.mxu0 %v2619
        %v2829 = vpop.f32.mrf.mxu0
        %v2830 = vadd.f32 0.0, %v2829
        %v2831 = vpop.f32.mrf.mxu0
        %v2832 = vpop.f32.mrf.mxu0
        %v2833 = vadd.f32 0.0, %v2832
        %v2834 = vpop.f32.mrf.mxu0
        %2835 = vmatprep.mubr.bf16.mxu0 %v2622
        %2836 = vmatmul.mubr.bf16.gmra.mxu0 %v2621
        %v2837 = vpop.f32.mrf.mxu0
        %v2838 = vadd.f32 0.0, %v2837
        %v2839 = vpop.f32.mrf.mxu0
        %v2840 = vpop.f32.mrf.mxu0
        %v2841 = vadd.f32 0.0, %v2840
        %v2842 = vpop.f32.mrf.mxu0
        %2843 = vmatprep.mubr.bf16.mxu0 %v2624
        %2844 = vmatmul.mubr.bf16.gmra.mxu0 %v2623
        %v2845 = vpop.f32.mrf.mxu0
        %v2846 = vadd.f32 0.0, %v2845
        %v2847 = vpop.f32.mrf.mxu0
        %v2848 = vpop.f32.mrf.mxu0
        %v2849 = vadd.f32 0.0, %v2848
        %v2850 = vpop.f32.mrf.mxu0
        %2851 = vmatprep.mubr.bf16.mxu0 %v2626
        %2852 = vmatmul.mubr.bf16.gmra.mxu0 %v2625
        %v2853 = vpop.f32.mrf.mxu0
        %v2854 = vadd.f32 0.0, %v2853
        %v2855 = vpop.f32.mrf.mxu0
        %v2856 = vpop.f32.mrf.mxu0
        %v2857 = vadd.f32 0.0, %v2856
        %v2858 = vpop.f32.mrf.mxu0
        %2859 = vmatprep.mubr.bf16.mxu0 %v2628
        %2860 = vmatmul.mubr.bf16.gmra.mxu0 %v2627
        %v2861 = vpop.f32.mrf.mxu0
        %v2862 = vadd.f32 0.0, %v2861
        %v2863 = vpop.f32.mrf.mxu0
        %v2864 = vpop.f32.mrf.mxu0
        %v2865 = vadd.f32 0.0, %v2864
        %v2866 = vpop.f32.mrf.mxu0
        %2867 = vmatprep.mubr.bf16.mxu0 %v2630
        %2868 = vmatmul.mubr.bf16.gmra.mxu0 %v2629
        %v2869 = vpop.f32.mrf.mxu0
        %v2870 = vadd.f32 0.0, %v2869
        %v2871 = vpop.f32.mrf.mxu0
        %v2872 = vpop.f32.mrf.mxu0
        %v2873 = vadd.f32 0.0, %v2872
        %v2874 = vpop.f32.mrf.mxu0
        %2875 = vmatprep.mubr.bf16.mxu0 %v2632
        %2876 = vmatmul.mubr.bf16.gmra.mxu0 %v2631
        %v2877 = vpop.f32.mrf.mxu0
        %v2878 = vadd.f32 0.0, %v2877
        %v2879 = vpop.f32.mrf.mxu0
        %v2880 = vpop.f32.mrf.mxu0
        %v2881 = vadd.f32 0.0, %v2880
        %v2882 = vpop.f32.mrf.mxu0
        %2883 = vmatprep.mubr.bf16.mxu0 %v2634
        %2884 = vmatmul.mubr.bf16.gmra.mxu0 %v2633
        %v2885 = vpop.f32.mrf.mxu0
        %v2886 = vadd.f32 0.0, %v2885
        %v2887 = vpop.f32.mrf.mxu0
        %v2888 = vpop.f32.mrf.mxu0
        %v2889 = vadd.f32 0.0, %v2888
        %v2890 = vpop.f32.mrf.mxu0
        %2891 = vdwg.mxu0
        %v2892 = vrcp.pop %v2509
        %v2893 = vrcp.pop %v2512
        %v2894 = vrcp.pop %v2515
        %v2895 = vrcp.pop %v2518
        %v2896 = vrcp.pop %v2521
        %v2897 = vrcp.pop %v2524
        %v2898 = vrcp.pop %v2527
        %v2899 = vrcp.pop %v2530
        %v2900 = vrcp.pop %v2533
        %v2901 = vrcp.pop %v2536
        %v2902 = vrcp.pop %v2539
        %v2903 = vrcp.pop %v2542
        %v2904 = vrcp.pop %v2545
        %v2905 = vrcp.pop %v2548
        %v2906 = vrcp.pop %v2551
        %v2907 = vrcp.pop %v2554
        %v2908 = vrcp.pop %v2557
        %v2909 = vrcp.pop %v2560
        %v2910 = vrcp.pop %v2563
        %v2911 = vrcp.pop %v2566
        %v2912 = vrcp.pop %v2569
        %v2913 = vrcp.pop %v2572
        %v2914 = vrcp.pop %v2575
        %v2915 = vrcp.pop %v2578
        %v2916 = vrcp.pop %v2581
        %v2917 = vrcp.pop %v2584
        %v2918 = vrcp.pop %v2587
        %v2919 = vrcp.pop %v2590
        %v2920 = vrcp.pop %v2593
        %v2921 = vrcp.pop %v2596
        %v2922 = vrcp.pop %v2599
        %v2923 = vrcp.pop %v2602
        %v2924 = vmul.f32 %v2766, %v2892
        %v2925 = vmul.f32 %v2769, %v2893
        %v2926 = vmul.f32 %v2774, %v2894
        %v2927 = vmul.f32 %v2777, %v2895
        %v2928 = vmul.f32 %v2782, %v2896
        %v2929 = vmul.f32 %v2785, %v2897
        %v2930 = vmul.f32 %v2790, %v2898
        %v2931 = vmul.f32 %v2793, %v2899
        %v2932 = vmul.f32 %v2798, %v2900
        %v2933 = vmul.f32 %v2801, %v2901
        %v2934 = vmul.f32 %v2806, %v2902
        %v2935 = vmul.f32 %v2809, %v2903
        %v2936 = vmul.f32 %v2814, %v2904
        %v2937 = vmul.f32 %v2817, %v2905
        %v2938 = vmul.f32 %v2822, %v2906
        %v2939 = vmul.f32 %v2825, %v2907
        %v2940 = vmul.f32 %v2830, %v2908
        %v2941 = vmul.f32 %v2833, %v2909
        %v2942 = vmul.f32 %v2838, %v2910
        %v2943 = vmul.f32 %v2841, %v2911
        %v2944 = vmul.f32 %v2846, %v2912
        %v2945 = vmul.f32 %v2849, %v2913
        %v2946 = vmul.f32 %v2854, %v2914
        %v2947 = vmul.f32 %v2857, %v2915
        %v2948 = vmul.f32 %v2862, %v2916
        %v2949 = vmul.f32 %v2865, %v2917
        %v2950 = vmul.f32 %v2870, %v2918
        %v2951 = vmul.f32 %v2873, %v2919
        %v2952 = vmul.f32 %v2878, %v2920
        %v2953 = vmul.f32 %v2881, %v2921
        %v2954 = vmul.f32 %v2886, %v2922
        %v2955 = vmul.f32 %v2889, %v2923
        %s2956 = scalar_lea.vmem %s337, %s1732 [#allocation3]
        %v2957 = vld [vmem:[%s2956] sm:$0xff]
        %v2958 = vld [vmem:[%s2956 + $0x8] sm:$0xff]
        %v2959 = vld [vmem:[%s2956 + $0x10] sm:$0xff]
        %v2960 = vld [vmem:[%s2956 + $0x18] sm:$0xff]
        %v2961 = vld [vmem:[%s2956 + $0x20] sm:$0xff]
        %v2962 = vld [vmem:[%s2956 + $0x28] sm:$0xff]
        %v2963 = vld [vmem:[%s2956 + $0x30] sm:$0xff]
        %v2964 = vld [vmem:[%s2956 + $0x38] sm:$0xff]
        %v2965 = vld [vmem:[%s2956 + $0x40] sm:$0xff]
        %v2966 = vld [vmem:[%s2956 + $0x48] sm:$0xff]
        %v2967 = vld [vmem:[%s2956 + $0x50] sm:$0xff]
        %v2968 = vld [vmem:[%s2956 + $0x58] sm:$0xff]
        %v2969 = vld [vmem:[%s2956 + $0x60] sm:$0xff]
        %v2970 = vld [vmem:[%s2956 + $0x68] sm:$0xff]
        %v2971 = vld [vmem:[%s2956 + $0x70] sm:$0xff]
        %v2972 = vld [vmem:[%s2956 + $0x78] sm:$0xff]
        %v2973 = vld [vmem:[%s2956 + $0x80] sm:$0xff]
        %v2974 = vld [vmem:[%s2956 + $0x88] sm:$0xff]
        %v2975 = vld [vmem:[%s2956 + $0x90] sm:$0xff]
        %v2976 = vld [vmem:[%s2956 + $0x98] sm:$0xff]
        %v2977 = vld [vmem:[%s2956 + $0xa0] sm:$0xff]
        %v2978 = vld [vmem:[%s2956 + $0xa8] sm:$0xff]
        %v2979 = vld [vmem:[%s2956 + $0xb0] sm:$0xff]
        %v2980 = vld [vmem:[%s2956 + $0xb8] sm:$0xff]
        %v2981 = vld [vmem:[%s2956 + $0xc0] sm:$0xff]
        %v2982 = vld [vmem:[%s2956 + $0xc8] sm:$0xff]
        %v2983 = vld [vmem:[%s2956 + $0xd0] sm:$0xff]
        %v2984 = vld [vmem:[%s2956 + $0xd8] sm:$0xff]
        %v2985 = vld [vmem:[%s2956 + $0xe0] sm:$0xff]
        %v2986 = vld [vmem:[%s2956 + $0xe8] sm:$0xff]
        %v2987 = vld [vmem:[%s2956 + $0xf0] sm:$0xff]
        %v2988 = vld [vmem:[%s2956 + $0xf8] sm:$0xff]
        %v2989 = vpack.c.bf16 %v2925, %v2924
        %v2990 = vpack.c.bf16 %v2927, %v2926
        %v2991 = vpack.c.bf16 %v2929, %v2928
        %v2992 = vpack.c.bf16 %v2931, %v2930
        %v2993 = vpack.c.bf16 %v2933, %v2932
        %v2994 = vpack.c.bf16 %v2935, %v2934
        %v2995 = vpack.c.bf16 %v2937, %v2936
        %v2996 = vpack.c.bf16 %v2939, %v2938
        %v2997 = vpack.c.bf16 %v2941, %v2940
        %v2998 = vpack.c.bf16 %v2943, %v2942
        %v2999 = vpack.c.bf16 %v2945, %v2944
        %v3000 = vpack.c.bf16 %v2947, %v2946
        %v3001 = vpack.c.bf16 %v2949, %v2948
        %v3002 = vpack.c.bf16 %v2951, %v2950
        %v3003 = vpack.c.bf16 %v2953, %v2952
        %v3004 = vpack.c.bf16 %v2955, %v2954
        %v3005 = vld [vmem:[#allocation9] sm:$0xf]
        %v3006 = vld [vmem:[#allocation9 + $0x4] sm:$0xf]
        %v3007 = vld [vmem:[#allocation9 + $0x8] sm:$0xf]
        %v3008 = vld [vmem:[#allocation9 + $0xc] sm:$0xf]
        %v3009 = vld [vmem:[#allocation9 + $0x10] sm:$0xf]
        %v3010 = vld [vmem:[#allocation9 + $0x14] sm:$0xf]
        %v3011 = vld [vmem:[#allocation9 + $0x18] sm:$0xf]
        %v3012 = vld [vmem:[#allocation9 + $0x1c] sm:$0xf]
        %v3013 = vld [vmem:[#allocation9 + $0x20] sm:$0xf]
        %v3014 = vld [vmem:[#allocation9 + $0x24] sm:$0xf]
        %v3015 = vld [vmem:[#allocation9 + $0x28] sm:$0xf]
        %v3016 = vld [vmem:[#allocation9 + $0x2c] sm:$0xf]
        %v3017 = vld [vmem:[#allocation9 + $0x30] sm:$0xf]
        %v3018 = vld [vmem:[#allocation9 + $0x34] sm:$0xf]
        %v3019 = vld [vmem:[#allocation9 + $0x38] sm:$0xf]
        %v3020 = vld [vmem:[#allocation9 + $0x3c] sm:$0xf]
        %v3021 = vld [vmem:[%s7] sm:$0x1]
        %v3023 = vlaneseq
        %v3024 = vshrl.u32 %v3023, 7
        %v3025 = vsub.s32 0, %v3024
        %v3026 = vrot.slane %v3021, %v3025
        %v3044 = vunpack.c.l.b16 %v3005
        %v3045 = vunpack.c.l.b16 %v3006
        %v3046 = vunpack.c.l.b16 %v3007
        %v3047 = vunpack.c.l.b16 %v3008
        %v3048 = vunpack.c.l.b16 %v3009
        %v3049 = vunpack.c.l.b16 %v3010
        %v3050 = vunpack.c.l.b16 %v3011
        %v3051 = vunpack.c.l.b16 %v3012
        %v3052 = vunpack.c.l.b16 %v3013
        %v3053 = vunpack.c.l.b16 %v3014
        %v3054 = vunpack.c.l.b16 %v3015
        %v3055 = vunpack.c.l.b16 %v3016
        %v3056 = vunpack.c.l.b16 %v3017
        %v3057 = vunpack.c.l.b16 %v3018
        %v3058 = vunpack.c.l.b16 %v3019
        %v3059 = vunpack.c.l.b16 %v3020
        %v3060 = vpack.c.b16 %v3045, %v3044
        %v3061 = vpack.c.b16 %v3047, %v3046
        %v3062 = vpack.c.b16 %v3049, %v3048
        %v3063 = vpack.c.b16 %v3051, %v3050
        %v3064 = vpack.c.b16 %v3053, %v3052
        %v3065 = vpack.c.b16 %v3055, %v3054
        %v3066 = vpack.c.b16 %v3057, %v3056
        %v3067 = vpack.c.b16 %v3059, %v3058
        %3076 = vmatprep.subr.bf16.mxu0 0
        %3077 = vmatpush1.bf16.msra.mxu0 %v3067
        %3078 = vmatprep.subr.bf16.mxu0 0
        %3079 = vmatpush1.bf16.msra.mxu0 %v3066
        %3080 = vmatprep.subr.bf16.mxu0 0
        %3081 = vmatpush1.bf16.msra.mxu0 %v3065
        %3082 = vmatprep.subr.bf16.mxu0 0
        %3083 = vmatpush1.bf16.msra.mxu0 %v3064
        %3084 = vmatprep.subr.bf16.mxu0 0
        %3085 = vmatpush1.bf16.msra.mxu0 %v3063
        %3086 = vmatprep.subr.bf16.mxu0 0
        %3087 = vmatpush1.bf16.msra.mxu0 %v3062
        %3088 = vmatprep.subr.bf16.mxu0 0
        %3089 = vmatpush1.bf16.msra.mxu0 %v3061
        %3090 = vmatprep.subr.bf16.mxu0 0
        %3091 = vmatpush1.bf16.msra.mxu0 %v3060
        %3092 = vmatprep.subr.bf16.mxu0 0
        %3093 = vmatpush2.bf16.msra.mxu0 0
        %3094 = vmatprep.subr.bf16.mxu0 0
        %3095 = vmatpush2.bf16.msra.mxu0 0
        %3096 = vmatprep.subr.bf16.mxu0 0
        %3097 = vmatpush2.bf16.msra.mxu0 0
        %3098 = vmatprep.subr.bf16.mxu0 0
        %3099 = vmatpush2.bf16.msra.mxu0 0
        %3100 = vmatprep.subr.bf16.mxu0 0
        %3101 = vmatpush2.bf16.msra.mxu0 0
        %3102 = vmatprep.subr.bf16.mxu0 0
        %3103 = vmatpush2.bf16.msra.mxu0 0
        %3104 = vmatprep.subr.bf16.mxu0 0
        %3105 = vmatpush2.bf16.msra.mxu0 0
        %3106 = vmatprep.subr.bf16.mxu0 0
        %3107 = vmatpush2.bf16.msra.mxu0 0
        %3108 = vmatprep.mubr.bf16.mxu0 0
        %3109 = vmatmul.mubr.bf16.gmra.mxu0 %v2989
        %v3110 = vpop.f32.mrf.mxu0
        %v3111 = vadd.f32 %v3026, %v3110
        %v3112 = vpop.f32.mrf.mxu0
        %v3113 = vpop.f32.mrf.mxu0
        %v3114 = vadd.f32 %v3026, %v3113
        %v3115 = vpop.f32.mrf.mxu0
        %3116 = vmatprep.mubr.bf16.mxu0 0
        %3117 = vmatmul.mubr.bf16.gmra.mxu0 %v2990
        %v3118 = vpop.f32.mrf.mxu0
        %v3119 = vadd.f32 %v3026, %v3118
        %v3120 = vpop.f32.mrf.mxu0
        %v3121 = vpop.f32.mrf.mxu0
        %v3122 = vadd.f32 %v3026, %v3121
        %v3123 = vpop.f32.mrf.mxu0
        %3124 = vmatprep.mubr.bf16.mxu0 0
        %3125 = vmatmul.mubr.bf16.gmra.mxu0 %v2991
        %v3126 = vpop.f32.mrf.mxu0
        %v3127 = vadd.f32 %v3026, %v3126
        %v3128 = vpop.f32.mrf.mxu0
        %v3129 = vpop.f32.mrf.mxu0
        %v3130 = vadd.f32 %v3026, %v3129
        %v3131 = vpop.f32.mrf.mxu0
        %3132 = vmatprep.mubr.bf16.mxu0 0
        %3133 = vmatmul.mubr.bf16.gmra.mxu0 %v2992
        %v3134 = vpop.f32.mrf.mxu0
        %v3135 = vadd.f32 %v3026, %v3134
        %v3136 = vpop.f32.mrf.mxu0
        %v3137 = vpop.f32.mrf.mxu0
        %v3138 = vadd.f32 %v3026, %v3137
        %v3139 = vpop.f32.mrf.mxu0
        %3140 = vmatprep.mubr.bf16.mxu0 0
        %3141 = vmatmul.mubr.bf16.gmra.mxu0 %v2993
        %v3142 = vpop.f32.mrf.mxu0
        %v3143 = vadd.f32 %v3026, %v3142
        %v3144 = vpop.f32.mrf.mxu0
        %v3145 = vpop.f32.mrf.mxu0
        %v3146 = vadd.f32 %v3026, %v3145
        %v3147 = vpop.f32.mrf.mxu0
        %3148 = vmatprep.mubr.bf16.mxu0 0
        %3149 = vmatmul.mubr.bf16.gmra.mxu0 %v2994
        %v3150 = vpop.f32.mrf.mxu0
        %v3151 = vadd.f32 %v3026, %v3150
        %v3152 = vpop.f32.mrf.mxu0
        %v3153 = vpop.f32.mrf.mxu0
        %v3154 = vadd.f32 %v3026, %v3153
        %v3155 = vpop.f32.mrf.mxu0
        %3156 = vmatprep.mubr.bf16.mxu0 0
        %3157 = vmatmul.mubr.bf16.gmra.mxu0 %v2995
        %v3158 = vpop.f32.mrf.mxu0
        %v3159 = vadd.f32 %v3026, %v3158
        %v3160 = vpop.f32.mrf.mxu0
        %v3161 = vpop.f32.mrf.mxu0
        %v3162 = vadd.f32 %v3026, %v3161
        %v3163 = vpop.f32.mrf.mxu0
        %3164 = vmatprep.mubr.bf16.mxu0 0
        %3165 = vmatmul.mubr.bf16.gmra.mxu0 %v2996
        %v3166 = vpop.f32.mrf.mxu0
        %v3167 = vadd.f32 %v3026, %v3166
        %v3168 = vpop.f32.mrf.mxu0
        %v3169 = vpop.f32.mrf.mxu0
        %v3170 = vadd.f32 %v3026, %v3169
        %v3171 = vpop.f32.mrf.mxu0
        %3172 = vmatprep.mubr.bf16.mxu0 0
        %3173 = vmatmul.mubr.bf16.gmra.mxu0 %v2997
        %v3174 = vpop.f32.mrf.mxu0
        %v3175 = vadd.f32 %v3026, %v3174
        %v3176 = vpop.f32.mrf.mxu0
        %v3177 = vpop.f32.mrf.mxu0
        %v3178 = vadd.f32 %v3026, %v3177
        %v3179 = vpop.f32.mrf.mxu0
        %3180 = vmatprep.mubr.bf16.mxu0 0
        %3181 = vmatmul.mubr.bf16.gmra.mxu0 %v2998
        %v3182 = vpop.f32.mrf.mxu0
        %v3183 = vadd.f32 %v3026, %v3182
        %v3184 = vpop.f32.mrf.mxu0
        %v3185 = vpop.f32.mrf.mxu0
        %v3186 = vadd.f32 %v3026, %v3185
        %v3187 = vpop.f32.mrf.mxu0
        %3188 = vmatprep.mubr.bf16.mxu0 0
        %3189 = vmatmul.mubr.bf16.gmra.mxu0 %v2999
        %v3190 = vpop.f32.mrf.mxu0
        %v3191 = vadd.f32 %v3026, %v3190
        %v3192 = vpop.f32.mrf.mxu0
        %v3193 = vpop.f32.mrf.mxu0
        %v3194 = vadd.f32 %v3026, %v3193
        %v3195 = vpop.f32.mrf.mxu0
        %3196 = vmatprep.mubr.bf16.mxu0 0
        %3197 = vmatmul.mubr.bf16.gmra.mxu0 %v3000
        %v3198 = vpop.f32.mrf.mxu0
        %v3199 = vadd.f32 %v3026, %v3198
        %v3200 = vpop.f32.mrf.mxu0
        %v3201 = vpop.f32.mrf.mxu0
        %v3202 = vadd.f32 %v3026, %v3201
        %v3203 = vpop.f32.mrf.mxu0
        %3204 = vmatprep.mubr.bf16.mxu0 0
        %3205 = vmatmul.mubr.bf16.gmra.mxu0 %v3001
        %v3206 = vpop.f32.mrf.mxu0
        %v3207 = vadd.f32 %v3026, %v3206
        %v3208 = vpop.f32.mrf.mxu0
        %v3209 = vpop.f32.mrf.mxu0
        %v3210 = vadd.f32 %v3026, %v3209
        %v3211 = vpop.f32.mrf.mxu0
        %3212 = vmatprep.mubr.bf16.mxu0 0
        %3213 = vmatmul.mubr.bf16.gmra.mxu0 %v3002
        %v3214 = vpop.f32.mrf.mxu0
        %v3215 = vadd.f32 %v3026, %v3214
        %v3216 = vpop.f32.mrf.mxu0
        %v3217 = vpop.f32.mrf.mxu0
        %v3218 = vadd.f32 %v3026, %v3217
        %v3219 = vpop.f32.mrf.mxu0
        %3220 = vmatprep.mubr.bf16.mxu0 0
        %3221 = vmatmul.mubr.bf16.gmra.mxu0 %v3003
        %v3222 = vpop.f32.mrf.mxu0
        %v3223 = vadd.f32 %v3026, %v3222
        %v3224 = vpop.f32.mrf.mxu0
        %v3225 = vpop.f32.mrf.mxu0
        %v3226 = vadd.f32 %v3026, %v3225
        %v3227 = vpop.f32.mrf.mxu0
        %3228 = vmatprep.mubr.bf16.mxu0 0
        %3229 = vmatmul.mubr.bf16.gmra.mxu0 %v3004
        %v3230 = vpop.f32.mrf.mxu0
        %v3231 = vadd.f32 %v3026, %v3230
        %v3232 = vpop.f32.mrf.mxu0
        %v3233 = vpop.f32.mrf.mxu0
        %v3234 = vadd.f32 %v3026, %v3233
        %v3235 = vpop.f32.mrf.mxu0
        %3236 = vdwg.mxu0
        %v3237 = vadd.f32 %v3111, %v2957
        %v3238 = vadd.f32 %v3114, %v2958
        %v3239 = vadd.f32 %v3119, %v2959
        %v3240 = vadd.f32 %v3122, %v2960
        %v3241 = vadd.f32 %v3127, %v2961
        %v3242 = vadd.f32 %v3130, %v2962
        %v3243 = vadd.f32 %v3135, %v2963
        %v3244 = vadd.f32 %v3138, %v2964
        %v3245 = vadd.f32 %v3143, %v2965
        %v3246 = vadd.f32 %v3146, %v2966
        %v3247 = vadd.f32 %v3151, %v2967
        %v3248 = vadd.f32 %v3154, %v2968
        %v3249 = vadd.f32 %v3159, %v2969
        %v3250 = vadd.f32 %v3162, %v2970
        %v3251 = vadd.f32 %v3167, %v2971
        %v3252 = vadd.f32 %v3170, %v2972
        %v3253 = vadd.f32 %v3175, %v2973
        %v3254 = vadd.f32 %v3178, %v2974
        %v3255 = vadd.f32 %v3183, %v2975
        %v3256 = vadd.f32 %v3186, %v2976
        %v3257 = vadd.f32 %v3191, %v2977
        %v3258 = vadd.f32 %v3194, %v2978
        %v3259 = vadd.f32 %v3199, %v2979
        %v3260 = vadd.f32 %v3202, %v2980
        %v3261 = vadd.f32 %v3207, %v2981
        %v3262 = vadd.f32 %v3210, %v2982
        %v3263 = vadd.f32 %v3215, %v2983
        %v3264 = vadd.f32 %v3218, %v2984
        %v3265 = vadd.f32 %v3223, %v2985
        %v3266 = vadd.f32 %v3226, %v2986
        %v3267 = vadd.f32 %v3231, %v2987
        %v3268 = vadd.f32 %v3234, %v2988
        %3269 = vst [vmem:[%s381] sm:$0xff] %v3237
        %3270 = vst [vmem:[%s381 + $0x8] sm:$0xff] %v3238
        %3271 = vst [vmem:[%s381 + $0x10] sm:$0xff] %v3239
        %3272 = vst [vmem:[%s381 + $0x18] sm:$0xff] %v3240
        %3273 = vst [vmem:[%s381 + $0x20] sm:$0xff] %v3241
        %3274 = vst [vmem:[%s381 + $0x28] sm:$0xff] %v3242
        %3275 = vst [vmem:[%s381 + $0x30] sm:$0xff] %v3243
        %3276 = vst [vmem:[%s381 + $0x38] sm:$0xff] %v3244
        %3277 = vst [vmem:[%s381 + $0x40] sm:$0xff] %v3245
        %3278 = vst [vmem:[%s381 + $0x48] sm:$0xff] %v3246
        %3279 = vst [vmem:[%s381 + $0x50] sm:$0xff] %v3247
        %3280 = vst [vmem:[%s381 + $0x58] sm:$0xff] %v3248
        %3281 = vst [vmem:[%s381 + $0x60] sm:$0xff] %v3249
        %3282 = vst [vmem:[%s381 + $0x68] sm:$0xff] %v3250
        %3283 = vst [vmem:[%s381 + $0x70] sm:$0xff] %v3251
        %3284 = vst [vmem:[%s381 + $0x78] sm:$0xff] %v3252
        %3285 = vst [vmem:[%s381 + $0x80] sm:$0xff] %v3253
        %3286 = vst [vmem:[%s381 + $0x88] sm:$0xff] %v3254
        %3287 = vst [vmem:[%s381 + $0x90] sm:$0xff] %v3255
        %3288 = vst [vmem:[%s381 + $0x98] sm:$0xff] %v3256
        %3289 = vst [vmem:[%s381 + $0xa0] sm:$0xff] %v3257
        %3290 = vst [vmem:[%s381 + $0xa8] sm:$0xff] %v3258
        %3291 = vst [vmem:[%s381 + $0xb0] sm:$0xff] %v3259
        %3292 = vst [vmem:[%s381 + $0xb8] sm:$0xff] %v3260
        %3293 = vst [vmem:[%s381 + $0xc0] sm:$0xff] %v3261
        %3294 = vst [vmem:[%s381 + $0xc8] sm:$0xff] %v3262
        %3295 = vst [vmem:[%s381 + $0xd0] sm:$0xff] %v3263
        %3296 = vst [vmem:[%s381 + $0xd8] sm:$0xff] %v3264
        %3297 = vst [vmem:[%s381 + $0xe0] sm:$0xff] %v3265
        %3298 = vst [vmem:[%s381 + $0xe8] sm:$0xff] %v3266
        %3299 = vst [vmem:[%s381 + $0xf0] sm:$0xff] %v3267
        %3300 = vst [vmem:[%s381 + $0xf8] sm:$0xff] %v3268
        %s3301 = sand.u32 %s222, 1
        %s3302 = scalar_lea.sflag [#allocation5], %s3301
        %s3303 = sand.u32 %s222, 1
        %s3304 = smul.addr %s3303, 256
        %s3305 = scalar_lea.vmem [#allocation11], %s3304
        // Predicated region
        $region73: #{tpu_custom_call.1} parent=51 // pred_check
          %p3306 = pneg %p232
        $region74: #{tpu_custom_call.1} parent=51 // pred_check_branch
          %3308 = sbr.rel (%p3306) target = $region76
        $region75: #{tpu_custom_call.1} parent=51 // pred_region
          %s3309 = smul.u32 32, %s32
          %s3311 = ssub.s32 4096, 4096
          %3312 = vsyncadd %s3302, %s3311
          %s3313 = smul.addr %s31, 32
          %s3314 = sadd.s32 %s3309, %s3313
          %s3315 = smul.addr %s3314, 128
          %s3316 = scalar_lea.hbm %s8, %s3315
          %s3317 = sshll.u32 %s3305, 4
          %s3318 = int_to_ptr.vmem [resolvable:$true] %s3317
          %3323 = dma.vmem_to_hbm [thread:$0]  %s3318, 4096, %s3316, %s3302, 128, 128, 8
        $region76: #{tpu_custom_call.1} parent=51 // pred_fallthru
          _
      $region52: #{tpu_custom_call.1} parent=5 // pred_fallthru
        _
      %p3324 = scmp.le.s32.totalorder 2, %s22
      // Predicated region
      $region77: #{tpu_custom_call.1} parent=5 // pred_check
        %p3325 = pneg %p3324
      $region78: #{tpu_custom_call.1} parent=5 // pred_check_branch
        %3327 = sbr.rel (%p3325) target = $region80
      $region79: #{tpu_custom_call.1} parent=5 // pred_region
        %s3328 = ssub.s32 %s22, 2
        // Predicated region
        $region81: #{tpu_custom_call.1} parent=79 // pred_check
          %p3329 = pneg %p238
        $region82: #{tpu_custom_call.1} parent=79 // pred_check_branch
          %3331 = sbr.rel (%p3329) target = $region84
        $region83: #{tpu_custom_call.1} parent=79 // pred_region
          %s3332 = sand.u32 %s223, 1
          %s3333 = scalar_lea.sflag [#allocation5], %s3332
          %s3334 = sand.u32 %s223, 1
          %s3335 = smul.addr %s3334, 256
          %s3336 = scalar_lea.vmem [#allocation11], %s3335
          %3337 = dma.done %s3333, 4096
        $region84: #{tpu_custom_call.1} parent=79 // pred_fallthru
          _
      $region80: #{tpu_custom_call.1} parent=5 // pred_fallthru
        _
    $region6: #{tpu_custom_call.1} parent=1 // loop_footer
      %s26 = sadd.s32 1, %s22
    $region7: #{tpu_custom_call.1} parent=1 // loop_footer_branch
      %21 = sbr.rel target = $region3
    $region8: #{tpu_custom_call.1} parent=1 // loop_exit
      _
    %3338 = vsyncpa [#allocation4], 1
    %s3339 = scalar_lea.sflag [#allocation4], 1
    %3340 = vsyncpa %s3339, 1
    %3341 = vsyncpa [#allocation7], 1
    %3342 = vsyncpa [#allocation10], 1
    %3343 = vsyncpa [#allocation5], 1
    %s3344 = scalar_lea.sflag [#allocation5], 1
    %3345 = vsyncpa %s3344, 1

</llo_original>
